<compile_context>
chip_gen: v7x
topology: tpu7x:2x2x1
jax: 0.10.0
libtpu: 0.0.40
codegen_flags: <defaults>
</compile_context>

<pallas_src>
import functools

import numpy as np
import jax
import jax.numpy as jnp
from jax.experimental import pallas as pl
from jax.experimental.pallas import tpu as pltpu

TILE_N = 1024        # spatial-point tile (lane axis) for the pointwise kernels
TILE_HEAD = 512      # tile for fused fc1+fc2 head (keeps the (128,T) temp small)
SQRT_HALF = 0.7071067811865476

_PARALLEL = pltpu.CompilerParams(dimension_semantics=("parallel",))


def _gelu_exact(x):
    # PyTorch F.gelu default = exact erf-based GELU.
    return 0.5 * x * (1.0 + jax.lax.erf(x * SQRT_HALF))


# ---------------------------------------------------------------------------
# Pallas kernels
# ---------------------------------------------------------------------------
def _linear_kernel(x_ref, w_ref, b_ref, o_ref, *, apply_gelu):
    # (Cout, Cin) @ (Cin, T) + (Cout, 1)   — lane-dense output
    y = jnp.dot(w_ref[...], x_ref[...], preferred_element_type=jnp.float32)
    y = y + b_ref[...]
    if apply_gelu:
        y = _gelu_exact(y)
    o_ref[...] = y.astype(o_ref.dtype)


def _residual_kernel(x_ref, s_ref, w_ref, b_ref, o_ref, *, apply_gelu):
    # gelu?( spectral_out + W @ x + b )  — the (W + K)(u) merge of one layer
    y = jnp.dot(w_ref[...], x_ref[...], preferred_element_type=jnp.float32)
    y = s_ref[...] + y + b_ref[...]
    if apply_gelu:
        y = _gelu_exact(y)
    o_ref[...] = y.astype(o_ref.dtype)


def _head_kernel(x_ref, w1_ref, b1_ref, w2_ref, b2_ref, o_ref):
    # fc2( gelu( fc1(x) ) ) fused: the (128, T) intermediate never hits HBM.
    h = jnp.dot(w1_ref[...], x_ref[...], preferred_element_type=jnp.float32)
    h = _gelu_exact(h + b1_ref[...])
    y = jnp.dot(w2_ref[...], h, preferred_element_type=jnp.float32)
    o_ref[...] = (y + b2_ref[...]).astype(o_ref.dtype)


def _spec_mix_kernel(xr_ref, xi_ref, wr_ref, wi_ref, or_ref, oi_ref):
    # x: (B, Cin, Mb), w: (Cin, Cout, Mb) -> out: (B, Cout, Mb)   (complex)
    # out[b, co, m] = sum_ci x[b, ci, m] * w[ci, co, m]
    # Fourier modes live on the lane axis (Mb multiple of 128 / full M), so
    # this is pure lane-dense VPU work; the (b, ci) loop is tiny and unrolled.
    nb = xr_ref.shape[0]
    cin = xr_ref.shape[1]
    for b in range(nb):
        xr_b = xr_ref[b]                     # (Cin, Mb)
        xi_b = xi_ref[b]
        acc_r = None
        acc_i = None
        for ci in range(cin):
            xr_c = xr_b[ci][None, :]         # (1, Mb)  -> sublane broadcast
            xi_c = xi_b[ci][None, :]
            wr_c = wr_ref[ci]                # (Cout, Mb)
            wi_c = wi_ref[ci]
            tr = xr_c * wr_c - xi_c * wi_c   # (Cout, Mb)
            ti = xr_c * wi_c + xi_c * wr_c
            acc_r = tr if acc_r is None else acc_r + tr
            acc_i = ti if acc_i is None else acc_i + ti
        or_ref[b] = acc_r
        oi_ref[b] = acc_i


# ---------------------------------------------------------------------------
# Pallas wrappers
# ---------------------------------------------------------------------------
def _row_tile(n, tile):
    """Pick a lane-aligned tile; prefer exact divisors of n (no partial tail)."""
    if n <= tile:
        return n
    d = (tile // 128) * 128
    while d >= 128:
        if n % d == 0:
            return d
        d -= 128
    return tile   # fall back to a partial last block (masked by Pallas)


def pointwise_linear(x, w, b, apply_gelu, tile=TILE_N):
    """y = gelu?(w @ x + b).  x: (Cin, N), w: (Cout, Cin), b: (Cout, 1)."""
    cin, n = x.shape
    cout = w.shape[0]
    t = _row_tile(n, tile)
    return pl.pallas_call(
        functools.partial(_linear_kernel, apply_gelu=apply_gelu),
        out_shape=jax.ShapeDtypeStruct((cout, n), jnp.float32),
        grid=(pl.cdiv(n, t),),
        in_specs=[
            pl.BlockSpec((cin, t), lambda i: (0, i)),
            pl.BlockSpec((cout, cin), lambda i: (0, 0)),
            pl.BlockSpec((cout, 1), lambda i: (0, 0)),
        ],
        out_specs=pl.BlockSpec((cout, t), lambda i: (0, i)),
        compiler_params=_PARALLEL,
    )(x, w, b)


def fused_residual(x, spec, w, b, apply_gelu, tile=TILE_N):
    """y = gelu?(spec + w @ x + b); output aliases x's HBM buffer."""
    cin, n = x.shape
    cout = w.shape[0]
    t = _row_tile(n, tile)
    alias = {0: 0} if cin == cout else {}
    return pl.pallas_call(
        functools.partial(_residual_kernel, apply_gelu=apply_gelu),
        out_shape=jax.ShapeDtypeStruct((cout, n), jnp.float32),
        grid=(pl.cdiv(n, t),),
        in_specs=[
            pl.BlockSpec((cin, t), lambda i: (0, i)),
            pl.BlockSpec((cout, t), lambda i: (0, i)),
            pl.BlockSpec((cout, cin), lambda i: (0, 0)),
            pl.BlockSpec((cout, 1), lambda i: (0, 0)),
        ],
        out_specs=pl.BlockSpec((cout, t), lambda i: (0, i)),
        input_output_aliases=alias,
        compiler_params=_PARALLEL,
    )(x, spec, w, b)


def projection_head(x, w1, b1, w2, b2, tile=TILE_HEAD):
    """y = w2 @ gelu(w1 @ x + b1) + b2   (fc1 + GELU + fc2 fused)."""
    cin, n = x.shape
    c_mid = w1.shape[0]
    c_out = w2.shape[0]
    t = _row_tile(n, tile)
    return pl.pallas_call(
        _head_kernel,
        out_shape=jax.ShapeDtypeStruct((c_out, n), jnp.float32),
        grid=(pl.cdiv(n, t),),
        in_specs=[
            pl.BlockSpec((cin, t), lambda i: (0, i)),
            pl.BlockSpec((c_mid, cin), lambda i: (0, 0)),
            pl.BlockSpec((c_mid, 1), lambda i: (0, 0)),
            pl.BlockSpec((c_out, c_mid), lambda i: (0, 0)),
            pl.BlockSpec((c_out, 1), lambda i: (0, 0)),
        ],
        out_specs=pl.BlockSpec((c_out, t), lambda i: (0, i)),
        compiler_params=_PARALLEL,
    )(x, w1, b1, w2, b2)


def _mode_block(m, target=1024):
    """Largest lane-aligned block <= target that exactly tiles M."""
    if m <= target or m % 128 != 0:
        return m
    mb = (target // 128) * 128
    while m % mb != 0:
        mb -= 128
    return mb


def spectral_mode_mix(xr, xi, wr, wi):
    """x (B, Cin, M), w (Cin, Cout, M), real/imag f32 pairs.
    Returns (out_r, out_i) of shape (B, Cout, M): out[b,:,m] = x[b,:,m] @ w[:,:,m]."""
    nb, cin, m = xr.shape
    cout = wr.shape[1]
    mb = _mode_block(m)
    return pl.pallas_call(
        _spec_mix_kernel,
        out_shape=(
            jax.ShapeDtypeStruct((nb, cout, m), jnp.float32),
            jax.ShapeDtypeStruct((nb, cout, m), jnp.float32),
        ),
        grid=(m // mb,),
        in_specs=[
            pl.BlockSpec((nb, cin, mb), lambda i: (0, 0, i)),
            pl.BlockSpec((nb, cin, mb), lambda i: (0, 0, i)),
            pl.BlockSpec((cin, cout, mb), lambda i: (0, 0, i)),
            pl.BlockSpec((cin, cout, mb), lambda i: (0, 0, i)),
        ],
        out_specs=(
            pl.BlockSpec((nb, cout, mb), lambda i: (0, 0, i)),
            pl.BlockSpec((nb, cout, mb), lambda i: (0, 0, i)),
        ),
        compiler_params=_PARALLEL,
    )(xr, xi, wr, wi)


# ---------------------------------------------------------------------------
# SpectralConv3d (channels-first)
# ---------------------------------------------------------------------------
def spectral_conv3d(h, wr, wi, modes):
    """h: (Cin, B, X, Y, Zp) f32.
    wr/wi: (Cin, Cout, M), M = 4*m1*m2*m3 — weights1..4 of the torch module,
    pre-flattened along the last axis in corner order
    [ (x-lo,y-lo), (x-hi,y-lo), (x-lo,y-hi), (x-hi,y-hi) ]."""
    m1, m2, m3 = modes
    cin, nb, X, Y, Zp = h.shape
    cout = wr.shape[1]
    M = 4 * m1 * m2 * m3

    x_ft = jnp.fft.rfftn(h, axes=(2, 3, 4))            # (Cin, B, X, Y, Zk) c64

    c1 = x_ft[:, :, :m1, :m2, :m3]                     # -> weights1
    c2 = x_ft[:, :, X - m1:, :m2, :m3]                 # -> weights2
    c3 = x_ft[:, :, :m1, Y - m2:, :m3]                 # -> weights3
    c4 = x_ft[:, :, X - m1:, Y - m2:, :m3]             # -> weights4
    xc = jnp.stack([c1, c2, c3, c4], axis=2)           # (Cin, B, 4, m1, m2, m3)
    xc = jnp.transpose(xc, (1, 0, 2, 3, 4, 5)).reshape(nb, cin, M)

    o_r, o_i = spectral_mode_mix(
        jnp.real(xc).astype(jnp.float32), jnp.imag(xc).astype(jnp.float32),
        wr, wi)                                        # (B, Cout, M)

    oc = jax.lax.complex(o_r, o_i)
    oc = jnp.transpose(oc, (1, 0, 2)).reshape(cout, nb, 4, m1, m2, m3)

    # Assemble only the non-zero frequency slab (kz < m3); the kz zero-padding
    # up to Zp//2+1 happens implicitly inside irfftn(s=...), so no full
    # (B, X, Y, Zk, C) complex zero tensor + scatters.
    zy = jnp.zeros((cout, nb, m1, Y - 2 * m2, m3), jnp.complex64)
    row_lo = jnp.concatenate([oc[:, :, 0], zy, oc[:, :, 2]], axis=3)  # x-lo rows
    row_hi = jnp.concatenate([oc[:, :, 1], zy, oc[:, :, 3]], axis=3)  # x-hi rows
    zx = jnp.zeros((cout, nb, X - 2 * m1, Y, m3), jnp.complex64)
    slab = jnp.concatenate([row_lo, zx, row_hi], axis=2)   # (Cout, B, X, Y, m3)

    out = jnp.fft.irfftn(slab, s=(X, Y, Zp), axes=(2, 3, 4))
    return out.astype(jnp.float32)


# ---------------------------------------------------------------------------
# FNO3d forward
# ---------------------------------------------------------------------------
def get_grid(nb, s):
    # Matches torch get_grid: np.meshgrid (indexing='xy') of three identical
    # linspaces; grid[i, j, k] = (lin[j], lin[i], lin[k]).  Channels-first.
    lin = jnp.asarray(np.linspace(-0.5, 0.5, s).astype(np.float32))
    gx = jnp.broadcast_to(lin[None, :, None], (s, s, s))
    gy = jnp.broadcast_to(lin[:, None, None], (s, s, s))
    gz = jnp.broadcast_to(lin[None, None, :], (s, s, s))
    g = jnp.stack([gx, gy, gz], axis=0)                    # (3, S, S, S)
    return jnp.broadcast_to(g[:, None], (3, nb, s, s, s))


@functools.partial(jax.jit, static_argnames=("modes", "padding"))
def fno3d_forward(params, x, modes, padding=6):
    nb, X, Y, Z = x.shape
    width = params["fc0_w"].shape[0]
    c_final = params["fc2_w"].shape[0]

    # channels-first lift input: [a(x), grid_x, grid_y, grid_z]
    h = jnp.concatenate([x[None].astype(jnp.float32), get_grid(nb, X)], axis=0)

    n0 = nb * X * Y * Z
    h = pointwise_linear(h.reshape(4, n0), params["fc0_w"], params["fc0_b"],
                         apply_gelu=False)
    h = h.reshape(width, nb, X, Y, Z)

    # pad the last spatial (z/time) axis on the right
    h = jnp.pad(h, ((0, 0), (0, 0), (0, 0), (0, 0), (0, padding)))
    Zp = Z + padding
    np_rows = nb * X * Y * Zp

    for layer in range(4):
        spec = spectral_conv3d(h, params[f"conv{layer}_wr"],
                               params[f"conv{layer}_wi"], modes)
        h = fused_residual(h.reshape(width, np_rows),
                           spec.reshape(width, np_rows),
                           params[f"w{layer}_w"], params[f"w{layer}_b"],
                           apply_gelu=(layer < 3))
        h = h.reshape(width, nb, X, Y, Zp)

    h = h[:, :, :, :, :Z]                                  # drop z padding

    out = projection_head(h.reshape(width, nb * X * Y * Z),
                          params["fc1_w"], params["fc1_b"],
                          params["fc2_w"], params["fc2_b"])  # (18, N)
    out = out.reshape(c_final, nb, X, Y, Z)
    return jnp.moveaxis(out, 0, -1)                        # (B, X, Y, Z, 18)


# ---------------------------------------------------------------------------
# Deterministic synthetic parameter init (shapes from FNO3d.__init__)
# ---------------------------------------------------------------------------
def init_params(key, width, modes):
    m1, m2, m3 = modes
    M = 4 * m1 * m2 * m3
    keys = iter(jax.random.split(key, 24))

    def nk():
        return next(keys)

    def lin_init(fan_in, fan_out):
        a = 1.0 / np.sqrt(fan_in)
        w = jax.random.uniform(nk(), (fan_out, fan_in), jnp.float32, -a, a)
        b = jax.random.uniform(nk(), (fan_out, 1), jnp.float32, -a, a)
        return w, b

    p = {}
    p["fc0_w"], p["fc0_b"] = lin_init(4, width)            # nn.Linear(4, width)
    scale = 1.0 / (width * width)
    for L in range(4):
        # weights1..4: complex (Cin, Cout, m1, m2, m3) each; pre-transposed /
        # reshaped ONCE here into the kernel layout (Cin, Cout, M).
        wr = scale * jax.random.uniform(nk(), (4, width, width, m1, m2, m3),
                                        jnp.float32)
        wi = scale * jax.random.uniform(nk(), (4, width, width, m1, m2, m3),
                                        jnp.float32)
        p[f"conv{L}_wr"] = jnp.transpose(wr, (1, 2, 0, 3, 4, 5)).reshape(
            width, width, M)
        p[f"conv{L}_wi"] = jnp.transpose(wi, (1, 2, 0, 3, 4, 5)).reshape(
            width, width, M)
        # nn.Conv3d(width, width, 1) == channel matmul (stored (out, in)) + bias
        p[f"w{L}_w"], p[f"w{L}_b"] = lin_init(width, width)
    p["fc1_w"], p["fc1_b"] = lin_init(width, 128)           # nn.Linear(width, 128)
    p["fc2_w"], p["fc2_b"] = lin_init(128, 18)               # nn.Linear(128, 18)
    return p


if __name__ == "__main__":
    key = jax.random.PRNGKey(0)
    k_in, k_p = jax.random.split(key)

    B, S = 2, 8          # small cube (x = y = z = 8)
    width = 8
    modes = (4, 4, 4)    # modes3 <= (S + padding)//2 + 1

    x = jax.random.normal(k_in, (B, S, S, S), jnp.float32)
    params = init_params(k_p, width, modes)

    out = fno3d_forward(params, x, modes=modes, padding=6)
    out = jax.block_until_ready(out)
    assert out.shape == (B, S, S, S, 18), out.shape
    assert out.dtype == jnp.float32
    assert bool(jnp.all(jnp.isfinite(out)))
    print("KERNEL_OK")
</pallas_src>

<mosaic_0001>
module attributes {stable_mosaic.version = 11 : i64} {
  func.func @_linear_kernel(%arg0: i32, %arg1: memref<4x1024xf32, #tpu.memory_space<vmem>>, %arg2: memref<8x4xf32, #tpu.memory_space<vmem>>, %arg3: memref<8x1xf32, #tpu.memory_space<vmem>>, %arg4: memref<8x1024xf32, #tpu.memory_space<vmem>>) attributes {dimension_semantics = [#tpu.dimension_semantics<parallel>], iteration_bounds = array<i64: 1>, scalar_prefetch = 0 : i64, scratch_operands = 0 : i64, tpu.core_type = #tpu.core_type<tc>, window_params = [{transform_indices = @transform_0, window_bounds = array<i64: 4, 1024>}, {pipeline_mode = #tpu.pipeline_mode<synchronous>, transform_indices = @transform_1, window_bounds = array<i64: 8, 4>}, {pipeline_mode = #tpu.pipeline_mode<synchronous>, transform_indices = @transform_2, window_bounds = array<i64: 8, 1>}, {transform_indices = @transform_3, window_bounds = array<i64: 8, 1024>}]} {
    %c0 = arith.constant 0 : index
    %c0_0 = arith.constant 0 : index
    %0 = vector.load %arg2[%c0, %c0_0] : memref<8x4xf32, #tpu.memory_space<vmem>>, vector<8x4xf32>
    %c0_1 = arith.constant 0 : index
    %c0_2 = arith.constant 0 : index
    %1 = vector.load %arg1[%c0_1, %c0_2] : memref<4x1024xf32, #tpu.memory_space<vmem>>, vector<4x1024xf32>
    %cst = arith.constant dense<0.000000e+00> : vector<8x1024xf32>
    %2 = tpu.matmul %0, %1, %cst {dimension_numbers = #tpu.dot_dimension_numbers<[1], [0], [0], [1], [0, 0, 1, 1], [], []>} : vector<8x4xf32>, vector<4x1024xf32>, vector<8x1024xf32> -> vector<8x1024xf32>
    %c0_3 = arith.constant 0 : index
    %c0_4 = arith.constant 0 : index
    %3 = vector.load %arg3[%c0_3, %c0_4] : memref<8x1xf32, #tpu.memory_space<vmem>>, vector<8x1xf32>
    %4 = vector.broadcast %3 : vector<8x1xf32> to vector<8x1024xf32>
    %5 = arith.addf %2, %4 : vector<8x1024xf32>
    %c0_5 = arith.constant 0 : index
    %c0_6 = arith.constant 0 : index
    %6 = vector.load %arg4[%c0_5, %c0_6] : memref<8x1024xf32, #tpu.memory_space<vmem>>, vector<8x1024xf32>
    tpu.vector_store %arg4[%c0_5, %c0_6], %5 {strides = array<i32>} : memref<8x1024xf32, #tpu.memory_space<vmem>>, vector<8x1024xf32>,
    return
  }
  func.func @transform_0(%arg0: i32) -> (i32, i32) {
    %c0_i32 = arith.constant 0 : i32
    %c0_i32_0 = arith.constant 0 : i32
    return %c0_i32, %arg0 : i32, i32
  }
  func.func @transform_1(%arg0: i32) -> (i32, i32) {
    %c0_i32 = arith.constant 0 : i32
    %c0_i32_0 = arith.constant 0 : i32
    %c0_i32_1 = arith.constant 0 : i32
    return %c0_i32, %c0_i32_0 : i32, i32
  }
  func.func @transform_2(%arg0: i32) -> (i32, i32) {
    %c0_i32 = arith.constant 0 : i32
    %c0_i32_0 = arith.constant 0 : i32
    %c0_i32_1 = arith.constant 0 : i32
    return %c0_i32, %c0_i32_0 : i32, i32
  }
  func.func @transform_3(%arg0: i32) -> (i32, i32) {
    %c0_i32 = arith.constant 0 : i32
    %c0_i32_0 = arith.constant 0 : i32
    return %c0_i32, %arg0 : i32, i32
  }
}

module attributes {stable_mosaic.version = 11 : i64} {
  func.func @_spec_mix_kernel(%arg0: i32, %arg1: memref<2x8x256xf32, #tpu.memory_space<vmem>>, %arg2: memref<2x8x256xf32, #tpu.memory_space<vmem>>, %arg3: memref<8x8x256xf32, #tpu.memory_space<vmem>>, %arg4: memref<8x8x256xf32, #tpu.memory_space<vmem>>, %arg5: memref<2x8x256xf32, #tpu.memory_space<vmem>>, %arg6: memref<2x8x256xf32, #tpu.memory_space<vmem>>) attributes {dimension_semantics = [#tpu.dimension_semantics<parallel>], iteration_bounds = array<i64: 1>, scalar_prefetch = 0 : i64, scratch_operands = 0 : i64, tpu.core_type = #tpu.core_type<tc>, window_params = [{transform_indices = @transform_0, window_bounds = array<i64: 2, 8, 256>}, {transform_indices = @transform_1, window_bounds = array<i64: 2, 8, 256>}, {transform_indices = @transform_2, window_bounds = array<i64: 8, 8, 256>}, {transform_indices = @transform_3, window_bounds = array<i64: 8, 8, 256>}, {transform_indices = @transform_4, window_bounds = array<i64: 2, 8, 256>}, {transform_indices = @transform_5, window_bounds = array<i64: 2, 8, 256>}]} {
    %c0 = arith.constant 0 : index
    %c0_0 = arith.constant 0 : index
    %c0_1 = arith.constant 0 : index
    %0 = vector.load %arg1[%c0, %c0_0, %c0_1] : memref<2x8x256xf32, #tpu.memory_space<vmem>>, vector<1x8x256xf32>
    %1 = vector.shape_cast %0 : vector<1x8x256xf32> to vector<8x256xf32>
    %c0_2 = arith.constant 0 : index
    %c0_3 = arith.constant 0 : index
    %c0_4 = arith.constant 0 : index
    %2 = vector.load %arg2[%c0_2, %c0_3, %c0_4] : memref<2x8x256xf32, #tpu.memory_space<vmem>>, vector<1x8x256xf32>
    %3 = vector.shape_cast %2 : vector<1x8x256xf32> to vector<8x256xf32>
    %4 = vector.extract_strided_slice %1 {offsets = [0, 0], sizes = [1, 256], strides = [1, 1]} : vector<8x256xf32> to vector<1x256xf32>
    %5 = vector.shape_cast %4 : vector<1x256xf32> to vector<256xf32>
    %6 = vector.shape_cast %5 : vector<256xf32> to vector<1x256xf32>
    %7 = vector.extract_strided_slice %3 {offsets = [0, 0], sizes = [1, 256], strides = [1, 1]} : vector<8x256xf32> to vector<1x256xf32>
    %8 = vector.shape_cast %7 : vector<1x256xf32> to vector<256xf32>
    %9 = vector.shape_cast %8 : vector<256xf32> to vector<1x256xf32>
    %c0_5 = arith.constant 0 : index
    %c0_6 = arith.constant 0 : index
    %c0_7 = arith.constant 0 : index
    %10 = vector.load %arg3[%c0_5, %c0_6, %c0_7] : memref<8x8x256xf32, #tpu.memory_space<vmem>>, vector<1x8x256xf32>
    %11 = vector.shape_cast %10 : vector<1x8x256xf32> to vector<8x256xf32>
    %c0_8 = arith.constant 0 : index
    %c0_9 = arith.constant 0 : index
    %c0_10 = arith.constant 0 : index
    %12 = vector.load %arg4[%c0_8, %c0_9, %c0_10] : memref<8x8x256xf32, #tpu.memory_space<vmem>>, vector<1x8x256xf32>
    %13 = vector.shape_cast %12 : vector<1x8x256xf32> to vector<8x256xf32>
    %14 = vector.broadcast %6 : vector<1x256xf32> to vector<8x256xf32>
    %15 = arith.mulf %14, %11 : vector<8x256xf32>
    %16 = vector.broadcast %9 : vector<1x256xf32> to vector<8x256xf32>
    %17 = arith.mulf %16, %13 : vector<8x256xf32>
    %18 = arith.subf %15, %17 : vector<8x256xf32>
    %19 = vector.broadcast %6 : vector<1x256xf32> to vector<8x256xf32>
    %20 = arith.mulf %19, %13 : vector<8x256xf32>
    %21 = vector.broadcast %9 : vector<1x256xf32> to vector<8x256xf32>
    %22 = arith.mulf %21, %11 : vector<8x256xf32>
    %23 = arith.addf %20, %22 : vector<8x256xf32>
    %24 = vector.extract_strided_slice %1 {offsets = [1, 0], sizes = [1, 256], strides = [1, 1]} : vector<8x256xf32> to vector<1x256xf32>
    %25 = vector.shape_cast %24 : vector<1x256xf32> to vector<256xf32>
    %26 = vector.shape_cast %25 : vector<256xf32> to vector<1x256xf32>
    %27 = vector.extract_strided_slice %3 {offsets = [1, 0], sizes = [1, 256], strides = [1, 1]} : vector<8x256xf32> to vector<1x256xf32>
    %28 = vector.shape_cast %27 : vector<1x256xf32> to vector<256xf32>
    %29 = vector.shape_cast %28 : vector<256xf32> to vector<1x256xf32>
    %c1 = arith.constant 1 : index
    %c0_11 = arith.constant 0 : index
    %c0_12 = arith.constant 0 : index
    %30 = vector.load %arg3[%c1, %c0_11, %c0_12] : memref<8x8x256xf32, #tpu.memory_space<vmem>>, vector<1x8x256xf32>
    %31 = vector.shape_cast %30 : vector<1x8x256xf32> to vector<8x256xf32>
    %c1_13 = arith.constant 1 : index
    %c0_14 = arith.constant 0 : index
    %c0_15 = arith.constant 0 : index
    %32 = vector.load %arg4[%c1_13, %c0_14, %c0_15] : memref<8x8x256xf32, #tpu.memory_space<vmem>>, vector<1x8x256xf32>
    %33 = vector.shape_cast %32 : vector<1x8x256xf32> to vector<8x256xf32>
    %34 = vector.broadcast %26 : vector<1x256xf32> to vector<8x256xf32>
    %35 = arith.mulf %34, %31 : vector<8x256xf32>
    %36 = vector.broadcast %29 : vector<1x256xf32> to vector<8x256xf32>
    %37 = arith.mulf %36, %33 : vector<8x256xf32>
    %38 = arith.subf %35, %37 : vector<8x256xf32>
    %39 = vector.broadcast %26 : vector<1x256xf32> to vector<8x256xf32>
    %40 = arith.mulf %39, %33 : vector<8x256xf32>
    %41 = vector.broadcast %29 : vector<1x256xf32> to vector<8x256xf32>
    %42 = arith.mulf %41, %31 : vector<8x256xf32>
    %43 = arith.addf %40, %42 : vector<8x256xf32>
    %44 = arith.addf %18, %38 : vector<8x256xf32>
    %45 = arith.addf %23, %43 : vector<8x256xf32>
    %46 = vector.extract_strided_slice %1 {offsets = [2, 0], sizes = [1, 256], strides = [1, 1]} : vector<8x256xf32> to vector<1x256xf32>
    %47 = vector.shape_cast %46 : vector<1x256xf32> to vector<256xf32>
    %48 = vector.shape_cast %47 : vector<256xf32> to vector<1x256xf32>
    %49 = vector.extract_strided_slice %3 {offsets = [2, 0], sizes = [1, 256], strides = [1, 1]} : vector<8x256xf32> to vector<1x256xf32>
    %50 = vector.shape_cast %49 : vector<1x256xf32> to vector<256xf32>
    %51 = vector.shape_cast %50 : vector<256xf32> to vector<1x256xf32>
    %c2 = arith.constant 2 : index
    %c0_16 = arith.constant 0 : index
    %c0_17 = arith.constant 0 : index
    %52 = vector.load %arg3[%c2, %c0_16, %c0_17] : memref<8x8x256xf32, #tpu.memory_space<vmem>>, vector<1x8x256xf32>
    %53 = vector.shape_cast %52 : vector<1x8x256xf32> to vector<8x256xf32>
    %c2_18 = arith.constant 2 : index
    %c0_19 = arith.constant 0 : index
    %c0_20 = arith.constant 0 : index
    %54 = vector.load %arg4[%c2_18, %c0_19, %c0_20] : memref<8x8x256xf32, #tpu.memory_space<vmem>>, vector<1x8x256xf32>
    %55 = vector.shape_cast %54 : vector<1x8x256xf32> to vector<8x256xf32>
    %56 = vector.broadcast %48 : vector<1x256xf32> to vector<8x256xf32>
    %57 = arith.mulf %56, %53 : vector<8x256xf32>
    %58 = vector.broadcast %51 : vector<1x256xf32> to vector<8x256xf32>
    %59 = arith.mulf %58, %55 : vector<8x256xf32>
    %60 = arith.subf %57, %59 : vector<8x256xf32>
    %61 = vector.broadcast %48 : vector<1x256xf32> to vector<8x256xf32>
    %62 = arith.mulf %61, %55 : vector<8x256xf32>
    %63 = vector.broadcast %51 : vector<1x256xf32> to vector<8x256xf32>
    %64 = arith.mulf %63, %53 : vector<8x256xf32>
    %65 = arith.addf %62, %64 : vector<8x256xf32>
    %66 = arith.addf %44, %60 : vector<8x256xf32>
    %67 = arith.addf %45, %65 : vector<8x256xf32>
    %68 = vector.extract_strided_slice %1 {offsets = [3, 0], sizes = [1, 256], strides = [1, 1]} : vector<8x256xf32> to vector<1x256xf32>
    %69 = vector.shape_cast %68 : vector<1x256xf32> to vector<256xf32>
    %70 = vector.shape_cast %69 : vector<256xf32> to vector<1x256xf32>
    %71 = vector.extract_strided_slice %3 {offsets = [3, 0], sizes = [1, 256], strides = [1, 1]} : vector<8x256xf32> to vector<1x256xf32>
    %72 = vector.shape_cast %71 : vector<1x256xf32> to vector<256xf32>
    %73 = vector.shape_cast %72 : vector<256xf32> to vector<1x256xf32>
    %c3 = arith.constant 3 : index
    %c0_21 = arith.constant 0 : index
    %c0_22 = arith.constant 0 : index
    %74 = vector.load %arg3[%c3, %c0_21, %c0_22] : memref<8x8x256xf32, #tpu.memory_space<vmem>>, vector<1x8x256xf32>
    %75 = vector.shape_cast %74 : vector<1x8x256xf32> to vector<8x256xf32>
    %c3_23 = arith.constant 3 : index
    %c0_24 = arith.constant 0 : index
    %c0_25 = arith.constant 0 : index
    %76 = vector.load %arg4[%c3_23, %c0_24, %c0_25] : memref<8x8x256xf32, #tpu.memory_space<vmem>>, vector<1x8x256xf32>
    %77 = vector.shape_cast %76 : vector<1x8x256xf32> to vector<8x256xf32>
    %78 = vector.broadcast %70 : vector<1x256xf32> to vector<8x256xf32>
    %79 = arith.mulf %78, %75 : vector<8x256xf32>
    %80 = vector.broadcast %73 : vector<1x256xf32> to vector<8x256xf32>
    %81 = arith.mulf %80, %77 : vector<8x256xf32>
    %82 = arith.subf %79, %81 : vector<8x256xf32>
    %83 = vector.broadcast %70 : vector<1x256xf32> to vector<8x256xf32>
    %84 = arith.mulf %83, %77 : vector<8x256xf32>
    %85 = vector.broadcast %73 : vector<1x256xf32> to vector<8x256xf32>
    %86 = arith.mulf %85, %75 : vector<8x256xf32>
    %87 = arith.addf %84, %86 : vector<8x256xf32>
    %88 = arith.addf %66, %82 : vector<8x256xf32>
    %89 = arith.addf %67, %87 : vector<8x256xf32>
    %90 = vector.extract_strided_slice %1 {offsets = [4, 0], sizes = [1, 256], strides = [1, 1]} : vector<8x256xf32> to vector<1x256xf32>
    %91 = vector.shape_cast %90 : vector<1x256xf32> to vector<256xf32>
    %92 = vector.shape_cast %91 : vector<256xf32> to vector<1x256xf32>
    %93 = vector.extract_strided_slice %3 {offsets = [4, 0], sizes = [1, 256], strides = [1, 1]} : vector<8x256xf32> to vector<1x256xf32>
    %94 = vector.shape_cast %93 : vector<1x256xf32> to vector<256xf32>
    %95 = vector.shape_cast %94 : vector<256xf32> to vector<1x256xf32>
    %c4 = arith.constant 4 : index
    %c0_26 = arith.constant 0 : index
    %c0_27 = arith.constant 0 : index
    %96 = vector.load %arg3[%c4, %c0_26, %c0_27] : memref<8x8x256xf32, #tpu.memory_space<vmem>>, vector<1x8x256xf32>
    %97 = vector.shape_cast %96 : vector<1x8x256xf32> to vector<8x256xf32>
    %c4_28 = arith.constant 4 : index
    %c0_29 = arith.constant 0 : index
    %c0_30 = arith.constant 0 : index
    %98 = vector.load %arg4[%c4_28, %c0_29, %c0_30] : memref<8x8x256xf32, #tpu.memory_space<vmem>>, vector<1x8x256xf32>
    %99 = vector.shape_cast %98 : vector<1x8x256xf32> to vector<8x256xf32>
    %100 = vector.broadcast %92 : vector<1x256xf32> to vector<8x256xf32>
    %101 = arith.mulf %100, %97 : vector<8x256xf32>
    %102 = vector.broadcast %95 : vector<1x256xf32> to vector<8x256xf32>
    %103 = arith.mulf %102, %99 : vector<8x256xf32>
    %104 = arith.subf %101, %103 : vector<8x256xf32>
    %105 = vector.broadcast %92 : vector<1x256xf32> to vector<8x256xf32>
    %106 = arith.mulf %105, %99 : vector<8x256xf32>
    %107 = vector.broadcast %95 : vector<1x256xf32> to vector<8x256xf32>
    %108 = arith.mulf %107, %97 : vector<8x256xf32>
    %109 = arith.addf %106, %108 : vector<8x256xf32>
    %110 = arith.addf %88, %104 : vector<8x256xf32>
    %111 = arith.addf %89, %109 : vector<8x256xf32>
    %112 = vector.extract_strided_slice %1 {offsets = [5, 0], sizes = [1, 256], strides = [1, 1]} : vector<8x256xf32> to vector<1x256xf32>
    %113 = vector.shape_cast %112 : vector<1x256xf32> to vector<256xf32>
    %114 = vector.shape_cast %113 : vector<256xf32> to vector<1x256xf32>
    %115 = vector.extract_strided_slice %3 {offsets = [5, 0], sizes = [1, 256], strides = [1, 1]} : vector<8x256xf32> to vector<1x256xf32>
    %116 = vector.shape_cast %115 : vector<1x256xf32> to vector<256xf32>
    %117 = vector.shape_cast %116 : vector<256xf32> to vector<1x256xf32>
    %c5 = arith.constant 5 : index
    %c0_31 = arith.constant 0 : index
    %c0_32 = arith.constant 0 : index
    %118 = vector.load %arg3[%c5, %c0_31, %c0_32] : memref<8x8x256xf32, #tpu.memory_space<vmem>>, vector<1x8x256xf32>
    %119 = vector.shape_cast %118 : vector<1x8x256xf32> to vector<8x256xf32>
    %c5_33 = arith.constant 5 : index
    %c0_34 = arith.constant 0 : index
    %c0_35 = arith.constant 0 : index
    %120 = vector.load %arg4[%c5_33, %c0_34, %c0_35] : memref<8x8x256xf32, #tpu.memory_space<vmem>>, vector<1x8x256xf32>
    %121 = vector.shape_cast %120 : vector<1x8x256xf32> to vector<8x256xf32>
    %122 = vector.broadcast %114 : vector<1x256xf32> to vector<8x256xf32>
    %123 = arith.mulf %122, %119 : vector<8x256xf32>
    %124 = vector.broadcast %117 : vector<1x256xf32> to vector<8x256xf32>
    %125 = arith.mulf %124, %121 : vector<8x256xf32>
    %126 = arith.subf %123, %125 : vector<8x256xf32>
    %127 = vector.broadcast %114 : vector<1x256xf32> to vector<8x256xf32>
    %128 = arith.mulf %127, %121 : vector<8x256xf32>
    %129 = vector.broadcast %117 : vector<1x256xf32> to vector<8x256xf32>
    %130 = arith.mulf %129, %119 : vector<8x256xf32>
    %131 = arith.addf %128, %130 : vector<8x256xf32>
    %132 = arith.addf %110, %126 : vector<8x256xf32>
    %133 = arith.addf %111, %131 : vector<8x256xf32>
    %134 = vector.extract_strided_slice %1 {offsets = [6, 0], sizes = [1, 256], strides = [1, 1]} : vector<8x256xf32> to vector<1x256xf32>
    %135 = vector.shape_cast %134 : vector<1x256xf32> to vector<256xf32>
    %136 = vector.shape_cast %135 : vector<256xf32> to vector<1x256xf32>
    %137 = vector.extract_strided_slice %3 {offsets = [6, 0], sizes = [1, 256], strides = [1, 1]} : vector<8x256xf32> to vector<1x256xf32>
    %138 = vector.shape_cast %137 : vector<1x256xf32> to vector<256xf32>
    %139 = vector.shape_cast %138 : vector<256xf32> to vector<1x256xf32>
    %c6 = arith.constant 6 : index
    %c0_36 = arith.constant 0 : index
    %c0_37 = arith.constant 0 : index
    %140 = vector.load %arg3[%c6, %c0_36, %c0_37] : memref<8x8x256xf32, #tpu.memory_space<vmem>>, vector<1x8x256xf32>
    %141 = vector.shape_cast %140 : vector<1x8x256xf32> to vector<8x256xf32>
    %c6_38 = arith.constant 6 : index
    %c0_39 = arith.constant 0 : index
    %c0_40 = arith.constant 0 : index
    %142 = vector.load %arg4[%c6_38, %c0_39, %c0_40] : memref<8x8x256xf32, #tpu.memory_space<vmem>>, vector<1x8x256xf32>
    %143 = vector.shape_cast %142 : vector<1x8x256xf32> to vector<8x256xf32>
    %144 = vector.broadcast %136 : vector<1x256xf32> to vector<8x256xf32>
    %145 = arith.mulf %144, %141 : vector<8x256xf32>
    %146 = vector.broadcast %139 : vector<1x256xf32> to vector<8x256xf32>
    %147 = arith.mulf %146, %143 : vector<8x256xf32>
    %148 = arith.subf %145, %147 : vector<8x256xf32>
    %149 = vector.broadcast %136 : vector<1x256xf32> to vector<8x256xf32>
    %150 = arith.mulf %149, %143 : vector<8x256xf32>
    %151 = vector.broadcast %139 : vector<1x256xf32> to vector<8x256xf32>
    %152 = arith.mulf %151, %141 : vector<8x256xf32>
    %153 = arith.addf %150, %152 : vector<8x256xf32>
    %154 = arith.addf %132, %148 : vector<8x256xf32>
    %155 = arith.addf %133, %153 : vector<8x256xf32>
    %156 = vector.extract_strided_slice %1 {offsets = [7, 0], sizes = [1, 256], strides = [1, 1]} : vector<8x256xf32> to vector<1x256xf32>
    %157 = vector.shape_cast %156 : vector<1x256xf32> to vector<256xf32>
    %158 = vector.shape_cast %157 : vector<256xf32> to vector<1x256xf32>
    %159 = vector.extract_strided_slice %3 {offsets = [7, 0], sizes = [1, 256], strides = [1, 1]} : vector<8x256xf32> to vector<1x256xf32>
    %160 = vector.shape_cast %159 : vector<1x256xf32> to vector<256xf32>
    %161 = vector.shape_cast %160 : vector<256xf32> to vector<1x256xf32>
    %c7 = arith.constant 7 : index
    %c0_41 = arith.constant 0 : index
    %c0_42 = arith.constant 0 : index
    %162 = vector.load %arg3[%c7, %c0_41, %c0_42] : memref<8x8x256xf32, #tpu.memory_space<vmem>>, vector<1x8x256xf32>
    %163 = vector.shape_cast %162 : vector<1x8x256xf32> to vector<8x256xf32>
    %c7_43 = arith.constant 7 : index
    %c0_44 = arith.constant 0 : index
    %c0_45 = arith.constant 0 : index
    %164 = vector.load %arg4[%c7_43, %c0_44, %c0_45] : memref<8x8x256xf32, #tpu.memory_space<vmem>>, vector<1x8x256xf32>
    %165 = vector.shape_cast %164 : vector<1x8x256xf32> to vector<8x256xf32>
    %166 = vector.broadcast %158 : vector<1x256xf32> to vector<8x256xf32>
    %167 = arith.mulf %166, %163 : vector<8x256xf32>
    %168 = vector.broadcast %161 : vector<1x256xf32> to vector<8x256xf32>
    %169 = arith.mulf %168, %165 : vector<8x256xf32>
    %170 = arith.subf %167, %169 : vector<8x256xf32>
    %171 = vector.broadcast %158 : vector<1x256xf32> to vector<8x256xf32>
    %172 = arith.mulf %171, %165 : vector<8x256xf32>
    %173 = vector.broadcast %161 : vector<1x256xf32> to vector<8x256xf32>
    %174 = arith.mulf %173, %163 : vector<8x256xf32>
    %175 = arith.addf %172, %174 : vector<8x256xf32>
    %176 = arith.addf %154, %170 : vector<8x256xf32>
    %177 = arith.addf %155, %175 : vector<8x256xf32>
    %c0_46 = arith.constant 0 : index
    %c0_47 = arith.constant 0 : index
    %c0_48 = arith.constant 0 : index
    %178 = vector.load %arg5[%c0_46, %c0_47, %c0_48] : memref<2x8x256xf32, #tpu.memory_space<vmem>>, vector<1x8x256xf32>
    %179 = vector.shape_cast %178 : vector<1x8x256xf32> to vector<8x256xf32>
    %180 = vector.shape_cast %176 : vector<8x256xf32> to vector<1x8x256xf32>
    tpu.vector_store %arg5[%c0_46, %c0_47, %c0_48], %180 {strides = array<i32>} : memref<2x8x256xf32, #tpu.memory_space<vmem>>, vector<1x8x256xf32>,
    %c0_49 = arith.constant 0 : index
    %c0_50 = arith.constant 0 : index
    %c0_51 = arith.constant 0 : index
    %181 = vector.load %arg6[%c0_49, %c0_50, %c0_51] : memref<2x8x256xf32, #tpu.memory_space<vmem>>, vector<1x8x256xf32>
    %182 = vector.shape_cast %181 : vector<1x8x256xf32> to vector<8x256xf32>
    %183 = vector.shape_cast %177 : vector<8x256xf32> to vector<1x8x256xf32>
    tpu.vector_store %arg6[%c0_49, %c0_50, %c0_51], %183 {strides = array<i32>} : memref<2x8x256xf32, #tpu.memory_space<vmem>>, vector<1x8x256xf32>,
    %c1_52 = arith.constant 1 : index
    %c0_53 = arith.constant 0 : index
    %c0_54 = arith.constant 0 : index
    %184 = vector.load %arg1[%c1_52, %c0_53, %c0_54] : memref<2x8x256xf32, #tpu.memory_space<vmem>>, vector<1x8x256xf32>
    %185 = vector.shape_cast %184 : vector<1x8x256xf32> to vector<8x256xf32>
    %c1_55 = arith.constant 1 : index
    %c0_56 = arith.constant 0 : index
    %c0_57 = arith.constant 0 : index
    %186 = vector.load %arg2[%c1_55, %c0_56, %c0_57] : memref<2x8x256xf32, #tpu.memory_space<vmem>>, vector<1x8x256xf32>
    %187 = vector.shape_cast %186 : vector<1x8x256xf32> to vector<8x256xf32>
    %188 = vector.extract_strided_slice %185 {offsets = [0, 0], sizes = [1, 256], strides = [1, 1]} : vector<8x256xf32> to vector<1x256xf32>
    %189 = vector.shape_cast %188 : vector<1x256xf32> to vector<256xf32>
    %190 = vector.shape_cast %189 : vector<256xf32> to vector<1x256xf32>
    %191 = vector.extract_strided_slice %187 {offsets = [0, 0], sizes = [1, 256], strides = [1, 1]} : vector<8x256xf32> to vector<1x256xf32>
    %192 = vector.shape_cast %191 : vector<1x256xf32> to vector<256xf32>
    %193 = vector.shape_cast %192 : vector<256xf32> to vector<1x256xf32>
    %c0_58 = arith.constant 0 : index
    %c0_59 = arith.constant 0 : index
    %c0_60 = arith.constant 0 : index
    %194 = vector.load %arg3[%c0_58, %c0_59, %c0_60] : memref<8x8x256xf32, #tpu.memory_space<vmem>>, vector<1x8x256xf32>
    %195 = vector.shape_cast %194 : vector<1x8x256xf32> to vector<8x256xf32>
    %c0_61 = arith.constant 0 : index
    %c0_62 = arith.constant 0 : index
    %c0_63 = arith.constant 0 : index
    %196 = vector.load %arg4[%c0_61, %c0_62, %c0_63] : memref<8x8x256xf32, #tpu.memory_space<vmem>>, vector<1x8x256xf32>
    %197 = vector.shape_cast %196 : vector<1x8x256xf32> to vector<8x256xf32>
    %198 = vector.broadcast %190 : vector<1x256xf32> to vector<8x256xf32>
    %199 = arith.mulf %198, %195 : vector<8x256xf32>
    %200 = vector.broadcast %193 : vector<1x256xf32> to vector<8x256xf32>
    %201 = arith.mulf %200, %197 : vector<8x256xf32>
    %202 = arith.subf %199, %201 : vector<8x256xf32>
    %203 = vector.broadcast %190 : vector<1x256xf32> to vector<8x256xf32>
    %204 = arith.mulf %203, %197 : vector<8x256xf32>
    %205 = vector.broadcast %193 : vector<1x256xf32> to vector<8x256xf32>
    %206 = arith.mulf %205, %195 : vector<8x256xf32>
    %207 = arith.addf %204, %206 : vector<8x256xf32>
    %208 = vector.extract_strided_slice %185 {offsets = [1, 0], sizes = [1, 256], strides = [1, 1]} : vector<8x256xf32> to vector<1x256xf32>
    %209 = vector.shape_cast %208 : vector<1x256xf32> to vector<256xf32>
    %210 = vector.shape_cast %209 : vector<256xf32> to vector<1x256xf32>
    %211 = vector.extract_strided_slice %187 {offsets = [1, 0], sizes = [1, 256], strides = [1, 1]} : vector<8x256xf32> to vector<1x256xf32>
    %212 = vector.shape_cast %211 : vector<1x256xf32> to vector<256xf32>
    %213 = vector.shape_cast %212 : vector<256xf32> to vector<1x256xf32>
    %c1_64 = arith.constant 1 : index
    %c0_65 = arith.constant 0 : index
    %c0_66 = arith.constant 0 : index
    %214 = vector.load %arg3[%c1_64, %c0_65, %c0_66] : memref<8x8x256xf32, #tpu.memory_space<vmem>>, vector<1x8x256xf32>
    %215 = vector.shape_cast %214 : vector<1x8x256xf32> to vector<8x256xf32>
    %c1_67 = arith.constant 1 : index
    %c0_68 = arith.constant 0 : index
    %c0_69 = arith.constant 0 : index
    %216 = vector.load %arg4[%c1_67, %c0_68, %c0_69] : memref<8x8x256xf32, #tpu.memory_space<vmem>>, vector<1x8x256xf32>
    %217 = vector.shape_cast %216 : vector<1x8x256xf32> to vector<8x256xf32>
    %218 = vector.broadcast %210 : vector<1x256xf32> to vector<8x256xf32>
    %219 = arith.mulf %218, %215 : vector<8x256xf32>
    %220 = vector.broadcast %213 : vector<1x256xf32> to vector<8x256xf32>
    %221 = arith.mulf %220, %217 : vector<8x256xf32>
    %222 = arith.subf %219, %221 : vector<8x256xf32>
    %223 = vector.broadcast %210 : vector<1x256xf32> to vector<8x256xf32>
    %224 = arith.mulf %223, %217 : vector<8x256xf32>
    %225 = vector.broadcast %213 : vector<1x256xf32> to vector<8x256xf32>
    %226 = arith.mulf %225, %215 : vector<8x256xf32>
    %227 = arith.addf %224, %226 : vector<8x256xf32>
    %228 = arith.addf %202, %222 : vector<8x256xf32>
    %229 = arith.addf %207, %227 : vector<8x256xf32>
    %230 = vector.extract_strided_slice %185 {offsets = [2, 0], sizes = [1, 256], strides = [1, 1]} : vector<8x256xf32> to vector<1x256xf32>
    %231 = vector.shape_cast %230 : vector<1x256xf32> to vector<256xf32>
    %232 = vector.shape_cast %231 : vector<256xf32> to vector<1x256xf32>
    %233 = vector.extract_strided_slice %187 {offsets = [2, 0], sizes = [1, 256], strides = [1, 1]} : vector<8x256xf32> to vector<1x256xf32>
    %234 = vector.shape_cast %233 : vector<1x256xf32> to vector<256xf32>
    %235 = vector.shape_cast %234 : vector<256xf32> to vector<1x256xf32>
    %c2_70 = arith.constant 2 : index
    %c0_71 = arith.constant 0 : index
    %c0_72 = arith.constant 0 : index
    %236 = vector.load %arg3[%c2_70, %c0_71, %c0_72] : memref<8x8x256xf32, #tpu.memory_space<vmem>>, vector<1x8x256xf32>
    %237 = vector.shape_cast %236 : vector<1x8x256xf32> to vector<8x256xf32>
    %c2_73 = arith.constant 2 : index
    %c0_74 = arith.constant 0 : index
    %c0_75 = arith.constant 0 : index
    %238 = vector.load %arg4[%c2_73, %c0_74, %c0_75] : memref<8x8x256xf32, #tpu.memory_space<vmem>>, vector<1x8x256xf32>
    %239 = vector.shape_cast %238 : vector<1x8x256xf32> to vector<8x256xf32>
    %240 = vector.broadcast %232 : vector<1x256xf32> to vector<8x256xf32>
    %241 = arith.mulf %240, %237 : vector<8x256xf32>
    %242 = vector.broadcast %235 : vector<1x256xf32> to vector<8x256xf32>
    %243 = arith.mulf %242, %239 : vector<8x256xf32>
    %244 = arith.subf %241, %243 : vector<8x256xf32>
    %245 = vector.broadcast %232 : vector<1x256xf32> to vector<8x256xf32>
    %246 = arith.mulf %245, %239 : vector<8x256xf32>
    %247 = vector.broadcast %235 : vector<1x256xf32> to vector<8x256xf32>
    %248 = arith.mulf %247, %237 : vector<8x256xf32>
    %249 = arith.addf %246, %248 : vector<8x256xf32>
    %250 = arith.addf %228, %244 : vector<8x256xf32>
    %251 = arith.addf %229, %249 : vector<8x256xf32>
    %252 = vector.extract_strided_slice %185 {offsets = [3, 0], sizes = [1, 256], strides = [1, 1]} : vector<8x256xf32> to vector<1x256xf32>
    %253 = vector.shape_cast %252 : vector<1x256xf32> to vector<256xf32>
    %254 = vector.shape_cast %253 : vector<256xf32> to vector<1x256xf32>
    %255 = vector.extract_strided_slice %187 {offsets = [3, 0], sizes = [1, 256], strides = [1, 1]} : vector<8x256xf32> to vector<1x256xf32>
    %256 = vector.shape_cast %255 : vector<1x256xf32> to vector<256xf32>
    %257 = vector.shape_cast %256 : vector<256xf32> to vector<1x256xf32>
    %c3_76 = arith.constant 3 : index
    %c0_77 = arith.constant 0 : index
    %c0_78 = arith.constant 0 : index
    %258 = vector.load %arg3[%c3_76, %c0_77, %c0_78] : memref<8x8x256xf32, #tpu.memory_space<vmem>>, vector<1x8x256xf32>
    %259 = vector.shape_cast %258 : vector<1x8x256xf32> to vector<8x256xf32>
    %c3_79 = arith.constant 3 : index
    %c0_80 = arith.constant 0 : index
    %c0_81 = arith.constant 0 : index
    %260 = vector.load %arg4[%c3_79, %c0_80, %c0_81] : memref<8x8x256xf32, #tpu.memory_space<vmem>>, vector<1x8x256xf32>
    %261 = vector.shape_cast %260 : vector<1x8x256xf32> to vector<8x256xf32>
    %262 = vector.broadcast %254 : vector<1x256xf32> to vector<8x256xf32>
    %263 = arith.mulf %262, %259 : vector<8x256xf32>
    %264 = vector.broadcast %257 : vector<1x256xf32> to vector<8x256xf32>
    %265 = arith.mulf %264, %261 : vector<8x256xf32>
    %266 = arith.subf %263, %265 : vector<8x256xf32>
    %267 = vector.broadcast %254 : vector<1x256xf32> to vector<8x256xf32>
    %268 = arith.mulf %267, %261 : vector<8x256xf32>
    %269 = vector.broadcast %257 : vector<1x256xf32> to vector<8x256xf32>
    %270 = arith.mulf %269, %259 : vector<8x256xf32>
    %271 = arith.addf %268, %270 : vector<8x256xf32>
    %272 = arith.addf %250, %266 : vector<8x256xf32>
    %273 = arith.addf %251, %271 : vector<8x256xf32>
    %274 = vector.extract_strided_slice %185 {offsets = [4, 0], sizes = [1, 256], strides = [1, 1]} : vector<8x256xf32> to vector<1x256xf32>
    %275 = vector.shape_cast %274 : vector<1x256xf32> to vector<256xf32>
    %276 = vector.shape_cast %275 : vector<256xf32> to vector<1x256xf32>
    %277 = vector.extract_strided_slice %187 {offsets = [4, 0], sizes = [1, 256], strides = [1, 1]} : vector<8x256xf32> to vector<1x256xf32>
    %278 = vector.shape_cast %277 : vector<1x256xf32> to vector<256xf32>
    %279 = vector.shape_cast %278 : vector<256xf32> to vector<1x256xf32>
    %c4_82 = arith.constant 4 : index
    %c0_83 = arith.constant 0 : index
    %c0_84 = arith.constant 0 : index
    %280 = vector.load %arg3[%c4_82, %c0_83, %c0_84] : memref<8x8x256xf32, #tpu.memory_space<vmem>>, vector<1x8x256xf32>
    %281 = vector.shape_cast %280 : vector<1x8x256xf32> to vector<8x256xf32>
    %c4_85 = arith.constant 4 : index
    %c0_86 = arith.constant 0 : index
    %c0_87 = arith.constant 0 : index
    %282 = vector.load %arg4[%c4_85, %c0_86, %c0_87] : memref<8x8x256xf32, #tpu.memory_space<vmem>>, vector<1x8x256xf32>
    %283 = vector.shape_cast %282 : vector<1x8x256xf32> to vector<8x256xf32>
    %284 = vector.broadcast %276 : vector<1x256xf32> to vector<8x256xf32>
    %285 = arith.mulf %284, %281 : vector<8x256xf32>
    %286 = vector.broadcast %279 : vector<1x256xf32> to vector<8x256xf32>
    %287 = arith.mulf %286, %283 : vector<8x256xf32>
    %288 = arith.subf %285, %287 : vector<8x256xf32>
    %289 = vector.broadcast %276 : vector<1x256xf32> to vector<8x256xf32>
    %290 = arith.mulf %289, %283 : vector<8x256xf32>
    %291 = vector.broadcast %279 : vector<1x256xf32> to vector<8x256xf32>
    %292 = arith.mulf %291, %281 : vector<8x256xf32>
    %293 = arith.addf %290, %292 : vector<8x256xf32>
    %294 = arith.addf %272, %288 : vector<8x256xf32>
    %295 = arith.addf %273, %293 : vector<8x256xf32>
    %296 = vector.extract_strided_slice %185 {offsets = [5, 0], sizes = [1, 256], strides = [1, 1]} : vector<8x256xf32> to vector<1x256xf32>
    %297 = vector.shape_cast %296 : vector<1x256xf32> to vector<256xf32>
    %298 = vector.shape_cast %297 : vector<256xf32> to vector<1x256xf32>
    %299 = vector.extract_strided_slice %187 {offsets = [5, 0], sizes = [1, 256], strides = [1, 1]} : vector<8x256xf32> to vector<1x256xf32>
    %300 = vector.shape_cast %299 : vector<1x256xf32> to vector<256xf32>
    %301 = vector.shape_cast %300 : vector<256xf32> to vector<1x256xf32>
    %c5_88 = arith.constant 5 : index
    %c0_89 = arith.constant 0 : index
    %c0_90 = arith.constant 0 : index
    %302 = vector.load %arg3[%c5_88, %c0_89, %c0_90] : memref<8x8x256xf32, #tpu.memory_space<vmem>>, vector<1x8x256xf32>
    %303 = vector.shape_cast %302 : vector<1x8x256xf32> to vector<8x256xf32>
    %c5_91 = arith.constant 5 : index
    %c0_92 = arith.constant 0 : index
    %c0_93 = arith.constant 0 : index
    %304 = vector.load %arg4[%c5_91, %c0_92, %c0_93] : memref<8x8x256xf32, #tpu.memory_space<vmem>>, vector<1x8x256xf32>
    %305 = vector.shape_cast %304 : vector<1x8x256xf32> to vector<8x256xf32>
    %306 = vector.broadcast %298 : vector<1x256xf32> to vector<8x256xf32>
    %307 = arith.mulf %306, %303 : vector<8x256xf32>
    %308 = vector.broadcast %301 : vector<1x256xf32> to vector<8x256xf32>
    %309 = arith.mulf %308, %305 : vector<8x256xf32>
    %310 = arith.subf %307, %309 : vector<8x256xf32>
    %311 = vector.broadcast %298 : vector<1x256xf32> to vector<8x256xf32>
    %312 = arith.mulf %311, %305 : vector<8x256xf32>
    %313 = vector.broadcast %301 : vector<1x256xf32> to vector<8x256xf32>
    %314 = arith.mulf %313, %303 : vector<8x256xf32>
    %315 = arith.addf %312, %314 : vector<8x256xf32>
    %316 = arith.addf %294, %310 : vector<8x256xf32>
    %317 = arith.addf %295, %315 : vector<8x256xf32>
    %318 = vector.extract_strided_slice %185 {offsets = [6, 0], sizes = [1, 256], strides = [1, 1]} : vector<8x256xf32> to vector<1x256xf32>
    %319 = vector.shape_cast %318 : vector<1x256xf32> to vector<256xf32>
    %320 = vector.shape_cast %319 : vector<256xf32> to vector<1x256xf32>
    %321 = vector.extract_strided_slice %187 {offsets = [6, 0], sizes = [1, 256], strides = [1, 1]} : vector<8x256xf32> to vector<1x256xf32>
    %322 = vector.shape_cast %321 : vector<1x256xf32> to vector<256xf32>
    %323 = vector.shape_cast %322 : vector<256xf32> to vector<1x256xf32>
    %c6_94 = arith.constant 6 : index
    %c0_95 = arith.constant 0 : index
    %c0_96 = arith.constant 0 : index
    %324 = vector.load %arg3[%c6_94, %c0_95, %c0_96] : memref<8x8x256xf32, #tpu.memory_space<vmem>>, vector<1x8x256xf32>
    %325 = vector.shape_cast %324 : vector<1x8x256xf32> to vector<8x256xf32>
    %c6_97 = arith.constant 6 : index
    %c0_98 = arith.constant 0 : index
    %c0_99 = arith.constant 0 : index
    %326 = vector.load %arg4[%c6_97, %c0_98, %c0_99] : memref<8x8x256xf32, #tpu.memory_space<vmem>>, vector<1x8x256xf32>
    %327 = vector.shape_cast %326 : vector<1x8x256xf32> to vector<8x256xf32>
    %328 = vector.broadcast %320 : vector<1x256xf32> to vector<8x256xf32>
    %329 = arith.mulf %328, %325 : vector<8x256xf32>
    %330 = vector.broadcast %323 : vector<1x256xf32> to vector<8x256xf32>
    %331 = arith.mulf %330, %327 : vector<8x256xf32>
    %332 = arith.subf %329, %331 : vector<8x256xf32>
    %333 = vector.broadcast %320 : vector<1x256xf32> to vector<8x256xf32>
    %334 = arith.mulf %333, %327 : vector<8x256xf32>
    %335 = vector.broadcast %323 : vector<1x256xf32> to vector<8x256xf32>
    %336 = arith.mulf %335, %325 : vector<8x256xf32>
    %337 = arith.addf %334, %336 : vector<8x256xf32>
    %338 = arith.addf %316, %332 : vector<8x256xf32>
    %339 = arith.addf %317, %337 : vector<8x256xf32>
    %340 = vector.extract_strided_slice %185 {offsets = [7, 0], sizes = [1, 256], strides = [1, 1]} : vector<8x256xf32> to vector<1x256xf32>
    %341 = vector.shape_cast %340 : vector<1x256xf32> to vector<256xf32>
    %342 = vector.shape_cast %341 : vector<256xf32> to vector<1x256xf32>
    %343 = vector.extract_strided_slice %187 {offsets = [7, 0], sizes = [1, 256], strides = [1, 1]} : vector<8x256xf32> to vector<1x256xf32>
    %344 = vector.shape_cast %343 : vector<1x256xf32> to vector<256xf32>
    %345 = vector.shape_cast %344 : vector<256xf32> to vector<1x256xf32>
    %c7_100 = arith.constant 7 : index
    %c0_101 = arith.constant 0 : index
    %c0_102 = arith.constant 0 : index
    %346 = vector.load %arg3[%c7_100, %c0_101, %c0_102] : memref<8x8x256xf32, #tpu.memory_space<vmem>>, vector<1x8x256xf32>
    %347 = vector.shape_cast %346 : vector<1x8x256xf32> to vector<8x256xf32>
    %c7_103 = arith.constant 7 : index
    %c0_104 = arith.constant 0 : index
    %c0_105 = arith.constant 0 : index
    %348 = vector.load %arg4[%c7_103, %c0_104, %c0_105] : memref<8x8x256xf32, #tpu.memory_space<vmem>>, vector<1x8x256xf32>
    %349 = vector.shape_cast %348 : vector<1x8x256xf32> to vector<8x256xf32>
    %350 = vector.broadcast %342 : vector<1x256xf32> to vector<8x256xf32>
    %351 = arith.mulf %350, %347 : vector<8x256xf32>
    %352 = vector.broadcast %345 : vector<1x256xf32> to vector<8x256xf32>
    %353 = arith.mulf %352, %349 : vector<8x256xf32>
    %354 = arith.subf %351, %353 : vector<8x256xf32>
    %355 = vector.broadcast %342 : vector<1x256xf32> to vector<8x256xf32>
    %356 = arith.mulf %355, %349 : vector<8x256xf32>
    %357 = vector.broadcast %345 : vector<1x256xf32> to vector<8x256xf32>
    %358 = arith.mulf %357, %347 : vector<8x256xf32>
    %359 = arith.addf %356, %358 : vector<8x256xf32>
    %360 = arith.addf %338, %354 : vector<8x256xf32>
    %361 = arith.addf %339, %359 : vector<8x256xf32>
    %c1_106 = arith.constant 1 : index
    %c0_107 = arith.constant 0 : index
    %c0_108 = arith.constant 0 : index
    %362 = vector.load %arg5[%c1_106, %c0_107, %c0_108] : memref<2x8x256xf32, #tpu.memory_space<vmem>>, vector<1x8x256xf32>
    %363 = vector.shape_cast %362 : vector<1x8x256xf32> to vector<8x256xf32>
    %364 = vector.shape_cast %360 : vector<8x256xf32> to vector<1x8x256xf32>
    tpu.vector_store %arg5[%c1_106, %c0_107, %c0_108], %364 {strides = array<i32>} : memref<2x8x256xf32, #tpu.memory_space<vmem>>, vector<1x8x256xf32>,
    %c1_109 = arith.constant 1 : index
    %c0_110 = arith.constant 0 : index
    %c0_111 = arith.constant 0 : index
    %365 = vector.load %arg6[%c1_109, %c0_110, %c0_111] : memref<2x8x256xf32, #tpu.memory_space<vmem>>, vector<1x8x256xf32>
    %366 = vector.shape_cast %365 : vector<1x8x256xf32> to vector<8x256xf32>
    %367 = vector.shape_cast %361 : vector<8x256xf32> to vector<1x8x256xf32>
    tpu.vector_store %arg6[%c1_109, %c0_110, %c0_111], %367 {strides = array<i32>} : memref<2x8x256xf32, #tpu.memory_space<vmem>>, vector<1x8x256xf32>,
    return
  }
  func.func @transform_0(%arg0: i32) -> (i32, i32, i32) {
    %c0_i32 = arith.constant 0 : i32
    %c0_i32_0 = arith.constant 0 : i32
    %c0_i32_1 = arith.constant 0 : i32
    return %c0_i32, %c0_i32_0, %arg0 : i32, i32, i32
  }
  func.func @transform_1(%arg0: i32) -> (i32, i32, i32) {
    %c0_i32 = arith.constant 0 : i32
    %c0_i32_0 = arith.constant 0 : i32
    %c0_i32_1 = arith.constant 0 : i32
    return %c0_i32, %c0_i32_0, %arg0 : i32, i32, i32
  }
  func.func @transform_2(%arg0: i32) -> (i32, i32, i32) {
    %c0_i32 = arith.constant 0 : i32
    %c0_i32_0 = arith.constant 0 : i32
    %c0_i32_1 = arith.constant 0 : i32
    return %c0_i32, %c0_i32_0, %arg0 : i32, i32, i32
  }
  func.func @transform_3(%arg0: i32) -> (i32, i32, i32) {
    %c0_i32 = arith.constant 0 : i32
    %c0_i32_0 = arith.constant 0 : i32
    %c0_i32_1 = arith.constant 0 : i32
    return %c0_i32, %c0_i32_0, %arg0 : i32, i32, i32
  }
  func.func @transform_4(%arg0: i32) -> (i32, i32, i32) {
    %c0_i32 = arith.constant 0 : i32
    %c0_i32_0 = arith.constant 0 : i32
    %c0_i32_1 = arith.constant 0 : i32
    return %c0_i32, %c0_i32_0, %arg0 : i32, i32, i32
  }
  func.func @transform_5(%arg0: i32) -> (i32, i32, i32) {
    %c0_i32 = arith.constant 0 : i32
    %c0_i32_0 = arith.constant 0 : i32
    %c0_i32_1 = arith.constant 0 : i32
    return %c0_i32, %c0_i32_0, %arg0 : i32, i32, i32
  }
}

module attributes {stable_mosaic.version = 11 : i64} {
  func.func @_residual_kernel(%arg0: i32, %arg1: memref<8x896xf32, #tpu.memory_space<vmem>>, %arg2: memref<8x896xf32, #tpu.memory_space<vmem>>, %arg3: memref<8x8xf32, #tpu.memory_space<vmem>>, %arg4: memref<8x1xf32, #tpu.memory_space<vmem>>, %arg5: memref<8x896xf32, #tpu.memory_space<vmem>>) attributes {dimension_semantics = [#tpu.dimension_semantics<parallel>], iteration_bounds = array<i64: 2>, scalar_prefetch = 0 : i64, scratch_operands = 0 : i64, tpu.core_type = #tpu.core_type<tc>, window_params = [{transform_indices = @transform_0, window_bounds = array<i64: 8, 896>}, {transform_indices = @transform_1, window_bounds = array<i64: 8, 896>}, {pipeline_mode = #tpu.pipeline_mode<synchronous>, transform_indices = @transform_2, window_bounds = array<i64: 8, 8>}, {pipeline_mode = #tpu.pipeline_mode<synchronous>, transform_indices = @transform_3, window_bounds = array<i64: 8, 1>}, {transform_indices = @transform_4, window_bounds = array<i64: 8, 896>}]} {
    %c0 = arith.constant 0 : index
    %c0_0 = arith.constant 0 : index
    %0 = vector.load %arg3[%c0, %c0_0] : memref<8x8xf32, #tpu.memory_space<vmem>>, vector<8x8xf32>
    %c0_1 = arith.constant 0 : index
    %c0_2 = arith.constant 0 : index
    %1 = vector.load %arg1[%c0_1, %c0_2] : memref<8x896xf32, #tpu.memory_space<vmem>>, vector<8x896xf32>
    %cst = arith.constant dense<0.000000e+00> : vector<8x896xf32>
    %2 = tpu.matmul %0, %1, %cst {dimension_numbers = #tpu.dot_dimension_numbers<[1], [0], [0], [1], [0, 0, 1, 1], [], []>} : vector<8x8xf32>, vector<8x896xf32>, vector<8x896xf32> -> vector<8x896xf32>
    %c0_3 = arith.constant 0 : index
    %c0_4 = arith.constant 0 : index
    %3 = vector.load %arg2[%c0_3, %c0_4] : memref<8x896xf32, #tpu.memory_space<vmem>>, vector<8x896xf32>
    %4 = arith.addf %3, %2 : vector<8x896xf32>
    %c0_5 = arith.constant 0 : index
    %c0_6 = arith.constant 0 : index
    %5 = vector.load %arg4[%c0_5, %c0_6] : memref<8x1xf32, #tpu.memory_space<vmem>>, vector<8x1xf32>
    %6 = vector.broadcast %5 : vector<8x1xf32> to vector<8x896xf32>
    %7 = arith.addf %4, %6 : vector<8x896xf32>
    %cst_7 = arith.constant 5.000000e-01 : f32
    %8 = vector.broadcast %cst_7 : f32 to vector<8x896xf32>
    %9 = arith.mulf %8, %7 : vector<8x896xf32>
    %cst_8 = arith.constant 0.707106769 : f32
    %10 = vector.broadcast %cst_8 : f32 to vector<8x896xf32>
    %11 = arith.mulf %7, %10 : vector<8x896xf32>
    %12 = math.erf %11 : vector<8x896xf32>
    %cst_9 = arith.constant 1.000000e+00 : f32
    %13 = vector.broadcast %cst_9 : f32 to vector<8x896xf32>
    %14 = arith.addf %13, %12 : vector<8x896xf32>
    %15 = arith.mulf %9, %14 : vector<8x896xf32>
    %c0_10 = arith.constant 0 : index
    %c0_11 = arith.constant 0 : index
    %16 = vector.load %arg5[%c0_10, %c0_11] : memref<8x896xf32, #tpu.memory_space<vmem>>, vector<8x896xf32>
    tpu.vector_store %arg5[%c0_10, %c0_11], %15 {strides = array<i32>} : memref<8x896xf32, #tpu.memory_space<vmem>>, vector<8x896xf32>,
    return
  }
  func.func @transform_0(%arg0: i32) -> (i32, i32) {
    %c0_i32 = arith.constant 0 : i32
    %c0_i32_0 = arith.constant 0 : i32
    return %c0_i32, %arg0 : i32, i32
  }
  func.func @transform_1(%arg0: i32) -> (i32, i32) {
    %c0_i32 = arith.constant 0 : i32
    %c0_i32_0 = arith.constant 0 : i32
    return %c0_i32, %arg0 : i32, i32
  }
  func.func @transform_2(%arg0: i32) -> (i32, i32) {
    %c0_i32 = arith.constant 0 : i32
    %c0_i32_0 = arith.constant 0 : i32
    %c0_i32_1 = arith.constant 0 : i32
    return %c0_i32, %c0_i32_0 : i32, i32
  }
  func.func @transform_3(%arg0: i32) -> (i32, i32) {
    %c0_i32 = arith.constant 0 : i32
    %c0_i32_0 = arith.constant 0 : i32
    %c0_i32_1 = arith.constant 0 : i32
    return %c0_i32, %c0_i32_0 : i32, i32
  }
  func.func @transform_4(%arg0: i32) -> (i32, i32) {
    %c0_i32 = arith.constant 0 : i32
    %c0_i32_0 = arith.constant 0 : i32
    return %c0_i32, %arg0 : i32, i32
  }
}

module attributes {stable_mosaic.version = 11 : i64} {
  func.func @_residual_kernel(%arg0: i32, %arg1: memref<8x896xf32, #tpu.memory_space<vmem>>, %arg2: memref<8x896xf32, #tpu.memory_space<vmem>>, %arg3: memref<8x8xf32, #tpu.memory_space<vmem>>, %arg4: memref<8x1xf32, #tpu.memory_space<vmem>>, %arg5: memref<8x896xf32, #tpu.memory_space<vmem>>) attributes {dimension_semantics = [#tpu.dimension_semantics<parallel>], iteration_bounds = array<i64: 2>, scalar_prefetch = 0 : i64, scratch_operands = 0 : i64, tpu.core_type = #tpu.core_type<tc>, window_params = [{transform_indices = @transform_0, window_bounds = array<i64: 8, 896>}, {transform_indices = @transform_1, window_bounds = array<i64: 8, 896>}, {pipeline_mode = #tpu.pipeline_mode<synchronous>, transform_indices = @transform_2, window_bounds = array<i64: 8, 8>}, {pipeline_mode = #tpu.pipeline_mode<synchronous>, transform_indices = @transform_3, window_bounds = array<i64: 8, 1>}, {transform_indices = @transform_4, window_bounds = array<i64: 8, 896>}]} {
    %c0 = arith.constant 0 : index
    %c0_0 = arith.constant 0 : index
    %0 = vector.load %arg3[%c0, %c0_0] : memref<8x8xf32, #tpu.memory_space<vmem>>, vector<8x8xf32>
    %c0_1 = arith.constant 0 : index
    %c0_2 = arith.constant 0 : index
    %1 = vector.load %arg1[%c0_1, %c0_2] : memref<8x896xf32, #tpu.memory_space<vmem>>, vector<8x896xf32>
    %cst = arith.constant dense<0.000000e+00> : vector<8x896xf32>
    %2 = tpu.matmul %0, %1, %cst {dimension_numbers = #tpu.dot_dimension_numbers<[1], [0], [0], [1], [0, 0, 1, 1], [], []>} : vector<8x8xf32>, vector<8x896xf32>, vector<8x896xf32> -> vector<8x896xf32>
    %c0_3 = arith.constant 0 : index
    %c0_4 = arith.constant 0 : index
    %3 = vector.load %arg2[%c0_3, %c0_4] : memref<8x896xf32, #tpu.memory_space<vmem>>, vector<8x896xf32>
    %4 = arith.addf %3, %2 : vector<8x896xf32>
    %c0_5 = arith.constant 0 : index
    %c0_6 = arith.constant 0 : index
    %5 = vector.load %arg4[%c0_5, %c0_6] : memref<8x1xf32, #tpu.memory_space<vmem>>, vector<8x1xf32>
    %6 = vector.broadcast %5 : vector<8x1xf32> to vector<8x896xf32>
    %7 = arith.addf %4, %6 : vector<8x896xf32>
    %c0_7 = arith.constant 0 : index
    %c0_8 = arith.constant 0 : index
    %8 = vector.load %arg5[%c0_7, %c0_8] : memref<8x896xf32, #tpu.memory_space<vmem>>, vector<8x896xf32>
    tpu.vector_store %arg5[%c0_7, %c0_8], %7 {strides = array<i32>} : memref<8x896xf32, #tpu.memory_space<vmem>>, vector<8x896xf32>,
    return
  }
  func.func @transform_0(%arg0: i32) -> (i32, i32) {
    %c0_i32 = arith.constant 0 : i32
    %c0_i32_0 = arith.constant 0 : i32
    return %c0_i32, %arg0 : i32, i32
  }
  func.func @transform_1(%arg0: i32) -> (i32, i32) {
    %c0_i32 = arith.constant 0 : i32
    %c0_i32_0 = arith.constant 0 : i32
    return %c0_i32, %arg0 : i32, i32
  }
  func.func @transform_2(%arg0: i32) -> (i32, i32) {
    %c0_i32 = arith.constant 0 : i32
    %c0_i32_0 = arith.constant 0 : i32
    %c0_i32_1 = arith.constant 0 : i32
    return %c0_i32, %c0_i32_0 : i32, i32
  }
  func.func @transform_3(%arg0: i32) -> (i32, i32) {
    %c0_i32 = arith.constant 0 : i32
    %c0_i32_0 = arith.constant 0 : i32
    %c0_i32_1 = arith.constant 0 : i32
    return %c0_i32, %c0_i32_0 : i32, i32
  }
  func.func @transform_4(%arg0: i32) -> (i32, i32) {
    %c0_i32 = arith.constant 0 : i32
    %c0_i32_0 = arith.constant 0 : i32
    return %c0_i32, %arg0 : i32, i32
  }
}

module attributes {stable_mosaic.version = 11 : i64} {
  func.func @_head_kernel(%arg0: i32, %arg1: memref<8x512xf32, #tpu.memory_space<vmem>>, %arg2: memref<128x8xf32, #tpu.memory_space<vmem>>, %arg3: memref<128x1xf32, #tpu.memory_space<vmem>>, %arg4: memref<18x128xf32, #tpu.memory_space<vmem>>, %arg5: memref<18x1xf32, #tpu.memory_space<vmem>>, %arg6: memref<18x512xf32, #tpu.memory_space<vmem>>) attributes {dimension_semantics = [#tpu.dimension_semantics<parallel>], iteration_bounds = array<i64: 2>, scalar_prefetch = 0 : i64, scratch_operands = 0 : i64, tpu.core_type = #tpu.core_type<tc>, window_params = [{transform_indices = @transform_0, window_bounds = array<i64: 8, 512>}, {pipeline_mode = #tpu.pipeline_mode<synchronous>, transform_indices = @transform_1, window_bounds = array<i64: 128, 8>}, {pipeline_mode = #tpu.pipeline_mode<synchronous>, transform_indices = @transform_2, window_bounds = array<i64: 128, 1>}, {pipeline_mode = #tpu.pipeline_mode<synchronous>, transform_indices = @transform_3, window_bounds = array<i64: 18, 128>}, {pipeline_mode = #tpu.pipeline_mode<synchronous>, transform_indices = @transform_4, window_bounds = array<i64: 18, 1>}, {transform_indices = @transform_5, window_bounds = array<i64: 18, 512>}]} {
    %c0 = arith.constant 0 : index
    %c0_0 = arith.constant 0 : index
    %0 = vector.load %arg2[%c0, %c0_0] : memref<128x8xf32, #tpu.memory_space<vmem>>, vector<128x8xf32>
    %c0_1 = arith.constant 0 : index
    %c0_2 = arith.constant 0 : index
    %1 = vector.load %arg1[%c0_1, %c0_2] : memref<8x512xf32, #tpu.memory_space<vmem>>, vector<8x512xf32>
    %cst = arith.constant dense<0.000000e+00> : vector<128x512xf32>
    %2 = tpu.matmul %0, %1, %cst {dimension_numbers = #tpu.dot_dimension_numbers<[1], [0], [0], [1], [0, 0, 1, 1], [], []>} : vector<128x8xf32>, vector<8x512xf32>, vector<128x512xf32> -> vector<128x512xf32>
    %c0_3 = arith.constant 0 : index
    %c0_4 = arith.constant 0 : index
    %3 = vector.load %arg3[%c0_3, %c0_4] : memref<128x1xf32, #tpu.memory_space<vmem>>, vector<128x1xf32>
    %4 = vector.broadcast %3 : vector<128x1xf32> to vector<128x512xf32>
    %5 = arith.addf %2, %4 : vector<128x512xf32>
    %cst_5 = arith.constant 5.000000e-01 : f32
    %6 = vector.broadcast %cst_5 : f32 to vector<128x512xf32>
    %7 = arith.mulf %6, %5 : vector<128x512xf32>
    %cst_6 = arith.constant 0.707106769 : f32
    %8 = vector.broadcast %cst_6 : f32 to vector<128x512xf32>
    %9 = arith.mulf %5, %8 : vector<128x512xf32>
    %10 = math.erf %9 : vector<128x512xf32>
    %cst_7 = arith.constant 1.000000e+00 : f32
    %11 = vector.broadcast %cst_7 : f32 to vector<128x512xf32>
    %12 = arith.addf %11, %10 : vector<128x512xf32>
    %13 = arith.mulf %7, %12 : vector<128x512xf32>
    %c0_8 = arith.constant 0 : index
    %c0_9 = arith.constant 0 : index
    %14 = vector.load %arg4[%c0_8, %c0_9] : memref<18x128xf32, #tpu.memory_space<vmem>>, vector<18x128xf32>
    %cst_10 = arith.constant dense<0.000000e+00> : vector<18x512xf32>
    %15 = tpu.matmul %14, %13, %cst_10 {dimension_numbers = #tpu.dot_dimension_numbers<[1], [0], [0], [1], [0, 0, 1, 1], [], []>} : vector<18x128xf32>, vector<128x512xf32>, vector<18x512xf32> -> vector<18x512xf32>
    %c0_11 = arith.constant 0 : index
    %c0_12 = arith.constant 0 : index
    %16 = vector.load %arg5[%c0_11, %c0_12] : memref<18x1xf32, #tpu.memory_space<vmem>>, vector<18x1xf32>
    %17 = vector.broadcast %16 : vector<18x1xf32> to vector<18x512xf32>
    %18 = arith.addf %15, %17 : vector<18x512xf32>
    %c0_13 = arith.constant 0 : index
    %c0_14 = arith.constant 0 : index
    %19 = vector.load %arg6[%c0_13, %c0_14] : memref<18x512xf32, #tpu.memory_space<vmem>>, vector<18x512xf32>
    tpu.vector_store %arg6[%c0_13, %c0_14], %18 {strides = array<i32>} : memref<18x512xf32, #tpu.memory_space<vmem>>, vector<18x512xf32>,
    return
  }
  func.func @transform_0(%arg0: i32) -> (i32, i32) {
    %c0_i32 = arith.constant 0 : i32
    %c0_i32_0 = arith.constant 0 : i32
    return %c0_i32, %arg0 : i32, i32
  }
  func.func @transform_1(%arg0: i32) -> (i32, i32) {
    %c0_i32 = arith.constant 0 : i32
    %c0_i32_0 = arith.constant 0 : i32
    %c0_i32_1 = arith.constant 0 : i32
    return %c0_i32, %c0_i32_0 : i32, i32
  }
  func.func @transform_2(%arg0: i32) -> (i32, i32) {
    %c0_i32 = arith.constant 0 : i32
    %c0_i32_0 = arith.constant 0 : i32
    %c0_i32_1 = arith.constant 0 : i32
    return %c0_i32, %c0_i32_0 : i32, i32
  }
  func.func @transform_3(%arg0: i32) -> (i32, i32) {
    %c0_i32 = arith.constant 0 : i32
    %c0_i32_0 = arith.constant 0 : i32
    %c0_i32_1 = arith.constant 0 : i32
    return %c0_i32, %c0_i32_0 : i32, i32
  }
  func.func @transform_4(%arg0: i32) -> (i32, i32) {
    %c0_i32 = arith.constant 0 : i32
    %c0_i32_0 = arith.constant 0 : i32
    %c0_i32_1 = arith.constant 0 : i32
    return %c0_i32, %c0_i32_0 : i32, i32
  }
  func.func @transform_5(%arg0: i32) -> (i32, i32) {
    %c0_i32 = arith.constant 0 : i32
    %c0_i32_0 = arith.constant 0 : i32
    return %c0_i32, %arg0 : i32, i32
  }
}

</mosaic_0001>

<llo_original>
// kernel: fno3d_forward.10
$region0: #{fno3d_forward.10}
  #allocation0 [shape = 'u32[]', space=smem, size = 0x4, offset = 0x4, fixed_abs, tag = 'smem constant byte address 0x4 - core index']
  #allocation1 [shape = 'u32[144,128]{1,0:T(1,128)}', space=vmem, size = 0x12000, scoped, tag = 'internal scratch']
  %s0 = inlined_call_operand.vmem [shape: f32[4,1024], index: 0, kind: input, shape index: {}]
  %s1 = inlined_call_operand.vmem [shape: f32[8,4], index: 1, kind: input, shape index: {}]
  %s2 = inlined_call_operand.vmem [shape: f32[8,1], index: 2, kind: input, shape index: {}]
  %s3 = inlined_call_operand.vmem [shape: f32[8,1024], index: 3, kind: output, shape index: {}]
  %s4 = sld [smem:[#allocation0]]
  $region22: #{fno3d_forward.10} parent=0
    _
  %s6 = ssub.s32 1, %s4
  %s7 = scalar_select 0, %s6, %s4
  // Predicated region
  $region2: #{fno3d_forward.10} parent=0 // pred_check
    _
  $region3: #{fno3d_forward.10} parent=0 // pred_check_branch
    %9 = sbr.rel (0) target = $region5
  $region4: #{fno3d_forward.10} parent=0 // pred_region
    _
  $region5: #{fno3d_forward.10} parent=0 // pred_fallthru
    _
  // Predicated region
  $region6: #{fno3d_forward.10} parent=0 // pred_check
    _
  $region7: #{fno3d_forward.10} parent=0 // pred_check_branch
    %11 = sbr.rel (0) target = $region9
  $region8: #{fno3d_forward.10} parent=0 // pred_region
    _
  $region9: #{fno3d_forward.10} parent=0 // pred_fallthru
    _
  // Predicated region
  $region10: #{fno3d_forward.10} parent=0 // pred_check
    _
  $region11: #{fno3d_forward.10} parent=0 // pred_check_branch
    %13 = sbr.rel (0) target = $region13
  $region12: #{fno3d_forward.10} parent=0 // pred_region
    _
  $region13: #{fno3d_forward.10} parent=0 // pred_fallthru
    _
  %v14 = vld [vmem:[%s1] sm:$0xff]
  %v15 = vld [vmem:[%s0] sm:$0xff]
  %v16 = vld [vmem:[%s0 + $0x8] sm:$0xff]
  %v17 = vld [vmem:[%s0 + $0x10] sm:$0xff]
  %v18 = vld [vmem:[%s0 + $0x18] sm:$0xff]
  %v19 = vld [vmem:[%s2] sm:$0xff]
  %21 = vset.pattern.permute.xlu0 0
  %22 = vperm.xlu0 %21, %v19
  %v23 = vpop.permute.xlu0 %22
  %v29 = vcombine.high %v15, %v15
  %v30 = vcombine.high %v16, %v16
  %v31 = vcombine.high %v17, %v17
  %v32 = vcombine.high %v18, %v18
  %vm33 = vcmask 31744
  %v35 = vsel %vm33, %v14, 0
  %vm37 = vcmask 1043456
  %v38 = vsel %vm37, %v15, 0
  %v40 = vsel %vm37, %v29, 0
  %v42 = vsel %vm37, %v16, 0
  %v44 = vsel %vm37, %v30, 0
  %v46 = vsel %vm37, %v17, 0
  %v48 = vsel %vm37, %v31, 0
  %v50 = vsel %vm37, %v18, 0
  %v52 = vsel %vm37, %v32, 0
  %54 = vmatprep.subr.mxu0 %v40
  %55 = vmatpush1.msra.mxu0 %v38
  %56 = vmatprep.subr.mxu0 0.0
  %57 = vmatpush1.msra.mxu0 0.0
  %58 = vmatprep.subr.mxu0 0.0
  %59 = vmatpush1.msra.mxu0 0.0
  %60 = vmatprep.subr.mxu0 0.0
  %61 = vmatpush1.msra.mxu0 0.0
  %62 = vmatprep.subr.mxu0 0.0
  %63 = vmatpush1.msra.mxu0 0.0
  %64 = vmatprep.subr.mxu0 0.0
  %65 = vmatpush1.msra.mxu0 0.0
  %66 = vmatprep.subr.mxu0 0.0
  %67 = vmatpush1.msra.mxu0 0.0
  %68 = vmatprep.subr.mxu0 0.0
  %69 = vmatpush1.msra.mxu0 0.0
  %70 = vmatprep.subr.mxu0 0.0
  %71 = vmatpush1.msra.mxu0 0.0
  %72 = vmatprep.subr.mxu0 0.0
  %73 = vmatpush1.msra.mxu0 0.0
  %74 = vmatprep.subr.mxu0 0.0
  %75 = vmatpush1.msra.mxu0 0.0
  %76 = vmatprep.subr.mxu0 0.0
  %77 = vmatpush1.msra.mxu0 0.0
  %78 = vmatprep.subr.mxu0 0.0
  %79 = vmatpush1.msra.mxu0 0.0
  %80 = vmatprep.subr.mxu0 0.0
  %81 = vmatpush1.msra.mxu0 0.0
  %82 = vmatprep.subr.mxu0 0.0
  %83 = vmatpush1.msra.mxu0 0.0
  %84 = vmatprep.subr.mxu0 0.0
  %85 = vmatpush1.msra.mxu0 0.0
  %86 = vmatprep.subr.mxu0 0.0
  %87 = vmatpush1.msra.mxu0 0.0
  %88 = vmatprep.subr.mxu0 0.0
  %89 = vmatpush1.msra.mxu0 0.0
  %90 = vmatprep.subr.mxu0 0.0
  %91 = vmatpush1.msra.mxu0 0.0
  %92 = vmatprep.subr.mxu0 0.0
  %93 = vmatpush1.msra.mxu0 0.0
  %94 = vmatprep.subr.mxu0 0.0
  %95 = vmatpush1.msra.mxu0 0.0
  %96 = vmatprep.subr.mxu0 0.0
  %97 = vmatpush1.msra.mxu0 0.0
  %98 = vmatprep.subr.mxu0 0.0
  %99 = vmatpush1.msra.mxu0 0.0
  %100 = vmatprep.subr.mxu0 0.0
  %101 = vmatpush1.msra.mxu0 0.0
  %102 = vmatprep.subr.mxu0 0.0
  %103 = vmatpush1.msra.mxu0 0.0
  %104 = vmatprep.subr.mxu0 0.0
  %105 = vmatpush1.msra.mxu0 0.0
  %106 = vmatprep.subr.mxu0 0.0
  %107 = vmatpush1.msra.mxu0 0.0
  %108 = vmatprep.subr.mxu0 0.0
  %109 = vmatpush1.msra.mxu0 0.0
  %110 = vmatprep.subr.mxu0 0.0
  %111 = vmatpush1.msra.mxu0 0.0
  %112 = vmatprep.subr.mxu0 0.0
  %113 = vmatpush1.msra.mxu0 0.0
  %114 = vmatprep.subr.mxu0 0.0
  %115 = vmatpush1.msra.mxu0 0.0
  %116 = vmatprep.subr.mxu0 0.0
  %117 = vmatpush1.msra.mxu0 0.0
  %118 = vmatprep.mubr.f32.mxu0 0.0
  %119 = vmatmul.mubr.f32.gmra.mrb[0].mxu0 %v35
  %v120 = vpop.f32.mrb[0].mxu0
  %v121 = vadd.f32 %v23, %v120
  %v122 = vpop.f32.mrb[0].mxu0
  %v123 = vadd.f32 %v23, %v122
  %124 = vdwg.mxu0
  %125 = vmatprep.subr.mxu0 %v44
  %126 = vmatpush1.msra.mxu0 %v42
  %127 = vmatprep.subr.mxu0 0.0
  %128 = vmatpush1.msra.mxu0 0.0
  %129 = vmatprep.subr.mxu0 0.0
  %130 = vmatpush1.msra.mxu0 0.0
  %131 = vmatprep.subr.mxu0 0.0
  %132 = vmatpush1.msra.mxu0 0.0
  %133 = vmatprep.subr.mxu0 0.0
  %134 = vmatpush1.msra.mxu0 0.0
  %135 = vmatprep.subr.mxu0 0.0
  %136 = vmatpush1.msra.mxu0 0.0
  %137 = vmatprep.subr.mxu0 0.0
  %138 = vmatpush1.msra.mxu0 0.0
  %139 = vmatprep.subr.mxu0 0.0
  %140 = vmatpush1.msra.mxu0 0.0
  %141 = vmatprep.subr.mxu0 0.0
  %142 = vmatpush1.msra.mxu0 0.0
  %143 = vmatprep.subr.mxu0 0.0
  %144 = vmatpush1.msra.mxu0 0.0
  %145 = vmatprep.subr.mxu0 0.0
  %146 = vmatpush1.msra.mxu0 0.0
  %147 = vmatprep.subr.mxu0 0.0
  %148 = vmatpush1.msra.mxu0 0.0
  %149 = vmatprep.subr.mxu0 0.0
  %150 = vmatpush1.msra.mxu0 0.0
  %151 = vmatprep.subr.mxu0 0.0
  %152 = vmatpush1.msra.mxu0 0.0
  %153 = vmatprep.subr.mxu0 0.0
  %154 = vmatpush1.msra.mxu0 0.0
  %155 = vmatprep.subr.mxu0 0.0
  %156 = vmatpush1.msra.mxu0 0.0
  %157 = vmatprep.subr.mxu0 0.0
  %158 = vmatpush1.msra.mxu0 0.0
  %159 = vmatprep.subr.mxu0 0.0
  %160 = vmatpush1.msra.mxu0 0.0
  %161 = vmatprep.subr.mxu0 0.0
  %162 = vmatpush1.msra.mxu0 0.0
  %163 = vmatprep.subr.mxu0 0.0
  %164 = vmatpush1.msra.mxu0 0.0
  %165 = vmatprep.subr.mxu0 0.0
  %166 = vmatpush1.msra.mxu0 0.0
  %167 = vmatprep.subr.mxu0 0.0
  %168 = vmatpush1.msra.mxu0 0.0
  %169 = vmatprep.subr.mxu0 0.0
  %170 = vmatpush1.msra.mxu0 0.0
  %171 = vmatprep.subr.mxu0 0.0
  %172 = vmatpush1.msra.mxu0 0.0
  %173 = vmatprep.subr.mxu0 0.0
  %174 = vmatpush1.msra.mxu0 0.0
  %175 = vmatprep.subr.mxu0 0.0
  %176 = vmatpush1.msra.mxu0 0.0
  %177 = vmatprep.subr.mxu0 0.0
  %178 = vmatpush1.msra.mxu0 0.0
  %179 = vmatprep.subr.mxu0 0.0
  %180 = vmatpush1.msra.mxu0 0.0
  %181 = vmatprep.subr.mxu0 0.0
  %182 = vmatpush1.msra.mxu0 0.0
  %183 = vmatprep.subr.mxu0 0.0
  %184 = vmatpush1.msra.mxu0 0.0
  %185 = vmatprep.subr.mxu0 0.0
  %186 = vmatpush1.msra.mxu0 0.0
  %187 = vmatprep.subr.mxu0 0.0
  %188 = vmatpush1.msra.mxu0 0.0
  %189 = vmatprep.mubr.f32.mxu0 0.0
  %190 = vmatmul.mubr.f32.gmra.mrb[0].mxu0 %v35
  %v191 = vpop.f32.mrb[0].mxu0
  %v192 = vadd.f32 %v23, %v191
  %v193 = vpop.f32.mrb[0].mxu0
  %v194 = vadd.f32 %v23, %v193
  %195 = vdwg.mxu0
  %196 = vmatprep.subr.mxu0 %v48
  %197 = vmatpush1.msra.mxu0 %v46
  %198 = vmatprep.subr.mxu0 0.0
  %199 = vmatpush1.msra.mxu0 0.0
  %200 = vmatprep.subr.mxu0 0.0
  %201 = vmatpush1.msra.mxu0 0.0
  %202 = vmatprep.subr.mxu0 0.0
  %203 = vmatpush1.msra.mxu0 0.0
  %204 = vmatprep.subr.mxu0 0.0
  %205 = vmatpush1.msra.mxu0 0.0
  %206 = vmatprep.subr.mxu0 0.0
  %207 = vmatpush1.msra.mxu0 0.0
  %208 = vmatprep.subr.mxu0 0.0
  %209 = vmatpush1.msra.mxu0 0.0
  %210 = vmatprep.subr.mxu0 0.0
  %211 = vmatpush1.msra.mxu0 0.0
  %212 = vmatprep.subr.mxu0 0.0
  %213 = vmatpush1.msra.mxu0 0.0
  %214 = vmatprep.subr.mxu0 0.0
  %215 = vmatpush1.msra.mxu0 0.0
  %216 = vmatprep.subr.mxu0 0.0
  %217 = vmatpush1.msra.mxu0 0.0
  %218 = vmatprep.subr.mxu0 0.0
  %219 = vmatpush1.msra.mxu0 0.0
  %220 = vmatprep.subr.mxu0 0.0
  %221 = vmatpush1.msra.mxu0 0.0
  %222 = vmatprep.subr.mxu0 0.0
  %223 = vmatpush1.msra.mxu0 0.0
  %224 = vmatprep.subr.mxu0 0.0
  %225 = vmatpush1.msra.mxu0 0.0
  %226 = vmatprep.subr.mxu0 0.0
  %227 = vmatpush1.msra.mxu0 0.0
  %228 = vmatprep.subr.mxu0 0.0
  %229 = vmatpush1.msra.mxu0 0.0
  %230 = vmatprep.subr.mxu0 0.0
  %231 = vmatpush1.msra.mxu0 0.0
  %232 = vmatprep.subr.mxu0 0.0
  %233 = vmatpush1.msra.mxu0 0.0
  %234 = vmatprep.subr.mxu0 0.0
  %235 = vmatpush1.msra.mxu0 0.0
  %236 = vmatprep.subr.mxu0 0.0
  %237 = vmatpush1.msra.mxu0 0.0
  %238 = vmatprep.subr.mxu0 0.0
  %239 = vmatpush1.msra.mxu0 0.0
  %240 = vmatprep.subr.mxu0 0.0
  %241 = vmatpush1.msra.mxu0 0.0
  %242 = vmatprep.subr.mxu0 0.0
  %243 = vmatpush1.msra.mxu0 0.0
  %244 = vmatprep.subr.mxu0 0.0
  %245 = vmatpush1.msra.mxu0 0.0
  %246 = vmatprep.subr.mxu0 0.0
  %247 = vmatpush1.msra.mxu0 0.0
  %248 = vmatprep.subr.mxu0 0.0
  %249 = vmatpush1.msra.mxu0 0.0
  %250 = vmatprep.subr.mxu0 0.0
  %251 = vmatpush1.msra.mxu0 0.0
  %252 = vmatprep.subr.mxu0 0.0
  %253 = vmatpush1.msra.mxu0 0.0
  %254 = vmatprep.subr.mxu0 0.0
  %255 = vmatpush1.msra.mxu0 0.0
  %256 = vmatprep.subr.mxu0 0.0
  %257 = vmatpush1.msra.mxu0 0.0
  %258 = vmatprep.subr.mxu0 0.0
  %259 = vmatpush1.msra.mxu0 0.0
  %260 = vmatprep.mubr.f32.mxu0 0.0
  %261 = vmatmul.mubr.f32.gmra.mrb[0].mxu0 %v35
  %v262 = vpop.f32.mrb[0].mxu0
  %v263 = vadd.f32 %v23, %v262
  %v264 = vpop.f32.mrb[0].mxu0
  %v265 = vadd.f32 %v23, %v264
  %266 = vdwg.mxu0
  %267 = vmatprep.subr.mxu0 %v52
  %268 = vmatpush1.msra.mxu0 %v50
  %269 = vmatprep.subr.mxu0 0.0
  %270 = vmatpush1.msra.mxu0 0.0
  %271 = vmatprep.subr.mxu0 0.0
  %272 = vmatpush1.msra.mxu0 0.0
  %273 = vmatprep.subr.mxu0 0.0
  %274 = vmatpush1.msra.mxu0 0.0
  %275 = vmatprep.subr.mxu0 0.0
  %276 = vmatpush1.msra.mxu0 0.0
  %277 = vmatprep.subr.mxu0 0.0
  %278 = vmatpush1.msra.mxu0 0.0
  %279 = vmatprep.subr.mxu0 0.0
  %280 = vmatpush1.msra.mxu0 0.0
  %281 = vmatprep.subr.mxu0 0.0
  %282 = vmatpush1.msra.mxu0 0.0
  %283 = vmatprep.subr.mxu0 0.0
  %284 = vmatpush1.msra.mxu0 0.0
  %285 = vmatprep.subr.mxu0 0.0
  %286 = vmatpush1.msra.mxu0 0.0
  %287 = vmatprep.subr.mxu0 0.0
  %288 = vmatpush1.msra.mxu0 0.0
  %289 = vmatprep.subr.mxu0 0.0
  %290 = vmatpush1.msra.mxu0 0.0
  %291 = vmatprep.subr.mxu0 0.0
  %292 = vmatpush1.msra.mxu0 0.0
  %293 = vmatprep.subr.mxu0 0.0
  %294 = vmatpush1.msra.mxu0 0.0
  %295 = vmatprep.subr.mxu0 0.0
  %296 = vmatpush1.msra.mxu0 0.0
  %297 = vmatprep.subr.mxu0 0.0
  %298 = vmatpush1.msra.mxu0 0.0
  %299 = vmatprep.subr.mxu0 0.0
  %300 = vmatpush1.msra.mxu0 0.0
  %301 = vmatprep.subr.mxu0 0.0
  %302 = vmatpush1.msra.mxu0 0.0
  %303 = vmatprep.subr.mxu0 0.0
  %304 = vmatpush1.msra.mxu0 0.0
  %305 = vmatprep.subr.mxu0 0.0
  %306 = vmatpush1.msra.mxu0 0.0
  %307 = vmatprep.subr.mxu0 0.0
  %308 = vmatpush1.msra.mxu0 0.0
  %309 = vmatprep.subr.mxu0 0.0
  %310 = vmatpush1.msra.mxu0 0.0
  %311 = vmatprep.subr.mxu0 0.0
  %312 = vmatpush1.msra.mxu0 0.0
  %313 = vmatprep.subr.mxu0 0.0
  %314 = vmatpush1.msra.mxu0 0.0
  %315 = vmatprep.subr.mxu0 0.0
  %316 = vmatpush1.msra.mxu0 0.0
  %317 = vmatprep.subr.mxu0 0.0
  %318 = vmatpush1.msra.mxu0 0.0
  %319 = vmatprep.subr.mxu0 0.0
  %320 = vmatpush1.msra.mxu0 0.0
  %321 = vmatprep.subr.mxu0 0.0
  %322 = vmatpush1.msra.mxu0 0.0
  %323 = vmatprep.subr.mxu0 0.0
  %324 = vmatpush1.msra.mxu0 0.0
  %325 = vmatprep.subr.mxu0 0.0
  %326 = vmatpush1.msra.mxu0 0.0
  %327 = vmatprep.subr.mxu0 0.0
  %328 = vmatpush1.msra.mxu0 0.0
  %329 = vmatprep.subr.mxu0 0.0
  %330 = vmatpush1.msra.mxu0 0.0
  %331 = vmatprep.mubr.f32.mxu0 0.0
  %332 = vmatmul.mubr.f32.gmra.mrb[0].mxu0 %v35
  %v333 = vpop.f32.mrb[0].mxu0
  %v334 = vadd.f32 %v23, %v333
  %v335 = vpop.f32.mrb[0].mxu0
  %v336 = vadd.f32 %v23, %v335
  %337 = vdwg.mxu0
  %338 = vst [vmem:[%s3] sm:$0xff] %v121
  %339 = vst [vmem:[%s3 + $0x8] sm:$0xff] %v123
  %340 = vst [vmem:[%s3 + $0x10] sm:$0xff] %v192
  %341 = vst [vmem:[%s3 + $0x18] sm:$0xff] %v194
  %342 = vst [vmem:[%s3 + $0x20] sm:$0xff] %v263
  %343 = vst [vmem:[%s3 + $0x28] sm:$0xff] %v265
  %344 = vst [vmem:[%s3 + $0x30] sm:$0xff] %v334
  %345 = vst [vmem:[%s3 + $0x38] sm:$0xff] %v336
  // Predicated region
  $region14: #{fno3d_forward.10} parent=0 // pred_check
    _
  $region15: #{fno3d_forward.10} parent=0 // pred_check_branch
    %347 = sbr.rel (0) target = $region17
  $region16: #{fno3d_forward.10} parent=0 // pred_region
    _
  $region17: #{fno3d_forward.10} parent=0 // pred_fallthru
    _
  // Predicated region
  $region18: #{fno3d_forward.10} parent=0 // pred_check
    _
  $region19: #{fno3d_forward.10} parent=0 // pred_check_branch
    %349 = sbr.rel (0) target = $region21
  $region20: #{fno3d_forward.10} parent=0 // pred_region
    _
  $region21: #{fno3d_forward.10} parent=0 // pred_fallthru
    _

// kernel: fno3d_forward.11
$region0: #{fno3d_forward.11}
  #allocation0 [shape = 'u32[]', space=smem, size = 0x4, offset = 0x4, fixed_abs, tag = 'smem constant byte address 0x4 - core index']
  #allocation1 [shape = 'u32[144,128]{1,0:T(1,128)}', space=vmem, size = 0x12000, scoped, tag = 'internal scratch']
  %s0 = inlined_call_operand.vmem [shape: f32[2,8,256], index: 0, kind: input, shape index: {}]
  %s1 = inlined_call_operand.vmem [shape: f32[2,8,256], index: 1, kind: input, shape index: {}]
  %s2 = inlined_call_operand.vmem [shape: f32[8,8,256], index: 2, kind: input, shape index: {}]
  %s3 = inlined_call_operand.vmem [shape: f32[8,8,256], index: 3, kind: input, shape index: {}]
  %s4 = inlined_call_operand.vmem [shape: f32[2,8,256], index: 4, kind: output, shape index: {0}]
  %s5 = inlined_call_operand.vmem [shape: f32[2,8,256], index: 5, kind: output, shape index: {1}]
  %6 = xla_tuple %s4, %s5
  %s7 = sld [smem:[#allocation0]]
  $region34: #{fno3d_forward.11} parent=0
    _
  %s9 = ssub.s32 1, %s7
  %s10 = scalar_select 0, %s9, %s7
  // Predicated region
  $region2: #{fno3d_forward.11} parent=0 // pred_check
    _
  $region3: #{fno3d_forward.11} parent=0 // pred_check_branch
    %12 = sbr.rel (0) target = $region5
  $region4: #{fno3d_forward.11} parent=0 // pred_region
    _
  $region5: #{fno3d_forward.11} parent=0 // pred_fallthru
    _
  // Predicated region
  $region6: #{fno3d_forward.11} parent=0 // pred_check
    _
  $region7: #{fno3d_forward.11} parent=0 // pred_check_branch
    %14 = sbr.rel (0) target = $region9
  $region8: #{fno3d_forward.11} parent=0 // pred_region
    _
  $region9: #{fno3d_forward.11} parent=0 // pred_fallthru
    _
  // Predicated region
  $region10: #{fno3d_forward.11} parent=0 // pred_check
    _
  $region11: #{fno3d_forward.11} parent=0 // pred_check_branch
    %16 = sbr.rel (0) target = $region13
  $region12: #{fno3d_forward.11} parent=0 // pred_region
    _
  $region13: #{fno3d_forward.11} parent=0 // pred_fallthru
    _
  // Predicated region
  $region14: #{fno3d_forward.11} parent=0 // pred_check
    _
  $region15: #{fno3d_forward.11} parent=0 // pred_check_branch
    %18 = sbr.rel (0) target = $region17
  $region16: #{fno3d_forward.11} parent=0 // pred_region
    _
  $region17: #{fno3d_forward.11} parent=0 // pred_fallthru
    _
  %v19 = vld [vmem:[%s0] sm:$0xff]
  %v20 = vld [vmem:[%s0 + $0x8] sm:$0xff]
  %v21 = vld [vmem:[%s1] sm:$0xff]
  %v22 = vld [vmem:[%s1 + $0x8] sm:$0xff]
  %v23 = vld [vmem:[%s2] sm:$0xff]
  %v24 = vld [vmem:[%s2 + $0x8] sm:$0xff]
  %v25 = vld [vmem:[%s3] sm:$0xff]
  %v26 = vld [vmem:[%s3 + $0x8] sm:$0xff]
  %v27 = vlaneseq
  %v28 = vshrl.u32 %v27, 7
  %v29 = vsub.s32 0, %v28
  %v30 = vrot.slane %v19, %v29
  %v31 = vlaneseq
  %v32 = vshrl.u32 %v31, 7
  %v33 = vsub.s32 0, %v32
  %v34 = vrot.slane %v20, %v33
  %v35 = vmul.f32 %v30, %v23
  %v36 = vmul.f32 %v34, %v24
  %v37 = vlaneseq
  %v38 = vshrl.u32 %v37, 7
  %v39 = vsub.s32 0, %v38
  %v40 = vrot.slane %v21, %v39
  %v41 = vlaneseq
  %v42 = vshrl.u32 %v41, 7
  %v43 = vsub.s32 0, %v42
  %v44 = vrot.slane %v22, %v43
  %v45 = vmul.f32 %v40, %v25
  %v46 = vmul.f32 %v44, %v26
  %v47 = vsub.f32 %v35, %v45
  %v48 = vsub.f32 %v36, %v46
  %v49 = vmul.f32 %v30, %v25
  %v50 = vmul.f32 %v34, %v26
  %v51 = vmul.f32 %v40, %v23
  %v52 = vmul.f32 %v44, %v24
  %v53 = vadd.f32 %v49, %v51
  %v54 = vadd.f32 %v50, %v52
  %s55 = scalar_lea.vmem %s2, 16
  %v56 = vld [vmem:[%s55] sm:$0xff]
  %v57 = vld [vmem:[%s55 + $0x8] sm:$0xff]
  %s58 = scalar_lea.vmem %s3, 16
  %v59 = vld [vmem:[%s58] sm:$0xff]
  %v60 = vld [vmem:[%s58 + $0x8] sm:$0xff]
  %v61 = vlaneseq
  %v62 = vshrl.u32 %v61, 7
  %v63 = vsub.s32 1, %v62
  %v64 = vrot.slane %v19, %v63
  %v65 = vlaneseq
  %v66 = vshrl.u32 %v65, 7
  %v67 = vsub.s32 1, %v66
  %v68 = vrot.slane %v20, %v67
  %v69 = vmul.f32 %v64, %v56
  %v70 = vmul.f32 %v68, %v57
  %v71 = vlaneseq
  %v72 = vshrl.u32 %v71, 7
  %v73 = vsub.s32 1, %v72
  %v74 = vrot.slane %v21, %v73
  %v75 = vlaneseq
  %v76 = vshrl.u32 %v75, 7
  %v77 = vsub.s32 1, %v76
  %v78 = vrot.slane %v22, %v77
  %v79 = vmul.f32 %v74, %v59
  %v80 = vmul.f32 %v78, %v60
  %v81 = vsub.f32 %v69, %v79
  %v82 = vsub.f32 %v70, %v80
  %v83 = vmul.f32 %v64, %v59
  %v84 = vmul.f32 %v68, %v60
  %v85 = vmul.f32 %v74, %v56
  %v86 = vmul.f32 %v78, %v57
  %v87 = vadd.f32 %v83, %v85
  %v88 = vadd.f32 %v84, %v86
  %v89 = vadd.f32 %v47, %v81
  %v90 = vadd.f32 %v48, %v82
  %v91 = vadd.f32 %v53, %v87
  %v92 = vadd.f32 %v54, %v88
  %s93 = scalar_lea.vmem %s2, 32
  %v94 = vld [vmem:[%s93] sm:$0xff]
  %v95 = vld [vmem:[%s93 + $0x8] sm:$0xff]
  %s96 = scalar_lea.vmem %s3, 32
  %v97 = vld [vmem:[%s96] sm:$0xff]
  %v98 = vld [vmem:[%s96 + $0x8] sm:$0xff]
  %v99 = vlaneseq
  %v100 = vshrl.u32 %v99, 7
  %v101 = vsub.s32 2, %v100
  %v102 = vrot.slane %v19, %v101
  %v103 = vlaneseq
  %v104 = vshrl.u32 %v103, 7
  %v105 = vsub.s32 2, %v104
  %v106 = vrot.slane %v20, %v105
  %v107 = vmul.f32 %v102, %v94
  %v108 = vmul.f32 %v106, %v95
  %v109 = vlaneseq
  %v110 = vshrl.u32 %v109, 7
  %v111 = vsub.s32 2, %v110
  %v112 = vrot.slane %v21, %v111
  %v113 = vlaneseq
  %v114 = vshrl.u32 %v113, 7
  %v115 = vsub.s32 2, %v114
  %v116 = vrot.slane %v22, %v115
  %v117 = vmul.f32 %v112, %v97
  %v118 = vmul.f32 %v116, %v98
  %v119 = vsub.f32 %v107, %v117
  %v120 = vsub.f32 %v108, %v118
  %v121 = vmul.f32 %v102, %v97
  %v122 = vmul.f32 %v106, %v98
  %v123 = vmul.f32 %v112, %v94
  %v124 = vmul.f32 %v116, %v95
  %v125 = vadd.f32 %v121, %v123
  %v126 = vadd.f32 %v122, %v124
  %v127 = vadd.f32 %v89, %v119
  %v128 = vadd.f32 %v90, %v120
  %v129 = vadd.f32 %v91, %v125
  %v130 = vadd.f32 %v92, %v126
  %s131 = scalar_lea.vmem %s2, 48
  %v132 = vld [vmem:[%s131] sm:$0xff]
  %v133 = vld [vmem:[%s131 + $0x8] sm:$0xff]
  %s134 = scalar_lea.vmem %s3, 48
  %v135 = vld [vmem:[%s134] sm:$0xff]
  %v136 = vld [vmem:[%s134 + $0x8] sm:$0xff]
  %v137 = vlaneseq
  %v138 = vshrl.u32 %v137, 7
  %v139 = vsub.s32 3, %v138
  %v140 = vrot.slane %v19, %v139
  %v141 = vlaneseq
  %v142 = vshrl.u32 %v141, 7
  %v143 = vsub.s32 3, %v142
  %v144 = vrot.slane %v20, %v143
  %v145 = vmul.f32 %v140, %v132
  %v146 = vmul.f32 %v144, %v133
  %v147 = vlaneseq
  %v148 = vshrl.u32 %v147, 7
  %v149 = vsub.s32 3, %v148
  %v150 = vrot.slane %v21, %v149
  %v151 = vlaneseq
  %v152 = vshrl.u32 %v151, 7
  %v153 = vsub.s32 3, %v152
  %v154 = vrot.slane %v22, %v153
  %v155 = vmul.f32 %v150, %v135
  %v156 = vmul.f32 %v154, %v136
  %v157 = vsub.f32 %v145, %v155
  %v158 = vsub.f32 %v146, %v156
  %v159 = vmul.f32 %v140, %v135
  %v160 = vmul.f32 %v144, %v136
  %v161 = vmul.f32 %v150, %v132
  %v162 = vmul.f32 %v154, %v133
  %v163 = vadd.f32 %v159, %v161
  %v164 = vadd.f32 %v160, %v162
  %v165 = vadd.f32 %v127, %v157
  %v166 = vadd.f32 %v128, %v158
  %v167 = vadd.f32 %v129, %v163
  %v168 = vadd.f32 %v130, %v164
  %s169 = scalar_lea.vmem %s2, 64
  %v170 = vld [vmem:[%s169] sm:$0xff]
  %v171 = vld [vmem:[%s169 + $0x8] sm:$0xff]
  %s172 = scalar_lea.vmem %s3, 64
  %v173 = vld [vmem:[%s172] sm:$0xff]
  %v174 = vld [vmem:[%s172 + $0x8] sm:$0xff]
  %v175 = vlaneseq
  %v176 = vshrl.u32 %v175, 7
  %v177 = vsub.s32 4, %v176
  %v178 = vrot.slane %v19, %v177
  %v179 = vlaneseq
  %v180 = vshrl.u32 %v179, 7
  %v181 = vsub.s32 4, %v180
  %v182 = vrot.slane %v20, %v181
  %v183 = vmul.f32 %v178, %v170
  %v184 = vmul.f32 %v182, %v171
  %v185 = vlaneseq
  %v186 = vshrl.u32 %v185, 7
  %v187 = vsub.s32 4, %v186
  %v188 = vrot.slane %v21, %v187
  %v189 = vlaneseq
  %v190 = vshrl.u32 %v189, 7
  %v191 = vsub.s32 4, %v190
  %v192 = vrot.slane %v22, %v191
  %v193 = vmul.f32 %v188, %v173
  %v194 = vmul.f32 %v192, %v174
  %v195 = vsub.f32 %v183, %v193
  %v196 = vsub.f32 %v184, %v194
  %v197 = vmul.f32 %v178, %v173
  %v198 = vmul.f32 %v182, %v174
  %v199 = vmul.f32 %v188, %v170
  %v200 = vmul.f32 %v192, %v171
  %v201 = vadd.f32 %v197, %v199
  %v202 = vadd.f32 %v198, %v200
  %v203 = vadd.f32 %v165, %v195
  %v204 = vadd.f32 %v166, %v196
  %v205 = vadd.f32 %v167, %v201
  %v206 = vadd.f32 %v168, %v202
  %s207 = scalar_lea.vmem %s2, 80
  %v208 = vld [vmem:[%s207] sm:$0xff]
  %v209 = vld [vmem:[%s207 + $0x8] sm:$0xff]
  %s210 = scalar_lea.vmem %s3, 80
  %v211 = vld [vmem:[%s210] sm:$0xff]
  %v212 = vld [vmem:[%s210 + $0x8] sm:$0xff]
  %v213 = vlaneseq
  %v214 = vshrl.u32 %v213, 7
  %v215 = vsub.s32 5, %v214
  %v216 = vrot.slane %v19, %v215
  %v217 = vlaneseq
  %v218 = vshrl.u32 %v217, 7
  %v219 = vsub.s32 5, %v218
  %v220 = vrot.slane %v20, %v219
  %v221 = vmul.f32 %v216, %v208
  %v222 = vmul.f32 %v220, %v209
  %v223 = vlaneseq
  %v224 = vshrl.u32 %v223, 7
  %v225 = vsub.s32 5, %v224
  %v226 = vrot.slane %v21, %v225
  %v227 = vlaneseq
  %v228 = vshrl.u32 %v227, 7
  %v229 = vsub.s32 5, %v228
  %v230 = vrot.slane %v22, %v229
  %v231 = vmul.f32 %v226, %v211
  %v232 = vmul.f32 %v230, %v212
  %v233 = vsub.f32 %v221, %v231
  %v234 = vsub.f32 %v222, %v232
  %v235 = vmul.f32 %v216, %v211
  %v236 = vmul.f32 %v220, %v212
  %v237 = vmul.f32 %v226, %v208
  %v238 = vmul.f32 %v230, %v209
  %v239 = vadd.f32 %v235, %v237
  %v240 = vadd.f32 %v236, %v238
  %v241 = vadd.f32 %v203, %v233
  %v242 = vadd.f32 %v204, %v234
  %v243 = vadd.f32 %v205, %v239
  %v244 = vadd.f32 %v206, %v240
  %s245 = scalar_lea.vmem %s2, 96
  %v246 = vld [vmem:[%s245] sm:$0xff]
  %v247 = vld [vmem:[%s245 + $0x8] sm:$0xff]
  %s248 = scalar_lea.vmem %s3, 96
  %v249 = vld [vmem:[%s248] sm:$0xff]
  %v250 = vld [vmem:[%s248 + $0x8] sm:$0xff]
  %v251 = vlaneseq
  %v252 = vshrl.u32 %v251, 7
  %v253 = vsub.s32 6, %v252
  %v254 = vrot.slane %v19, %v253
  %v255 = vlaneseq
  %v256 = vshrl.u32 %v255, 7
  %v257 = vsub.s32 6, %v256
  %v258 = vrot.slane %v20, %v257
  %v259 = vmul.f32 %v254, %v246
  %v260 = vmul.f32 %v258, %v247
  %v261 = vlaneseq
  %v262 = vshrl.u32 %v261, 7
  %v263 = vsub.s32 6, %v262
  %v264 = vrot.slane %v21, %v263
  %v265 = vlaneseq
  %v266 = vshrl.u32 %v265, 7
  %v267 = vsub.s32 6, %v266
  %v268 = vrot.slane %v22, %v267
  %v269 = vmul.f32 %v264, %v249
  %v270 = vmul.f32 %v268, %v250
  %v271 = vsub.f32 %v259, %v269
  %v272 = vsub.f32 %v260, %v270
  %v273 = vmul.f32 %v254, %v249
  %v274 = vmul.f32 %v258, %v250
  %v275 = vmul.f32 %v264, %v246
  %v276 = vmul.f32 %v268, %v247
  %v277 = vadd.f32 %v273, %v275
  %v278 = vadd.f32 %v274, %v276
  %v279 = vadd.f32 %v241, %v271
  %v280 = vadd.f32 %v242, %v272
  %v281 = vadd.f32 %v243, %v277
  %v282 = vadd.f32 %v244, %v278
  %s283 = scalar_lea.vmem %s2, 112
  %v284 = vld [vmem:[%s283] sm:$0xff]
  %v285 = vld [vmem:[%s283 + $0x8] sm:$0xff]
  %s286 = scalar_lea.vmem %s3, 112
  %v287 = vld [vmem:[%s286] sm:$0xff]
  %v288 = vld [vmem:[%s286 + $0x8] sm:$0xff]
  %v289 = vlaneseq
  %v290 = vshrl.u32 %v289, 7
  %v291 = vsub.s32 7, %v290
  %v292 = vrot.slane %v19, %v291
  %v293 = vlaneseq
  %v294 = vshrl.u32 %v293, 7
  %v295 = vsub.s32 7, %v294
  %v296 = vrot.slane %v20, %v295
  %v297 = vmul.f32 %v292, %v284
  %v298 = vmul.f32 %v296, %v285
  %v299 = vlaneseq
  %v300 = vshrl.u32 %v299, 7
  %v301 = vsub.s32 7, %v300
  %v302 = vrot.slane %v21, %v301
  %v303 = vlaneseq
  %v304 = vshrl.u32 %v303, 7
  %v305 = vsub.s32 7, %v304
  %v306 = vrot.slane %v22, %v305
  %v307 = vmul.f32 %v302, %v287
  %v308 = vmul.f32 %v306, %v288
  %v309 = vsub.f32 %v297, %v307
  %v310 = vsub.f32 %v298, %v308
  %v311 = vmul.f32 %v292, %v287
  %v312 = vmul.f32 %v296, %v288
  %v313 = vmul.f32 %v302, %v284
  %v314 = vmul.f32 %v306, %v285
  %v315 = vadd.f32 %v311, %v313
  %v316 = vadd.f32 %v312, %v314
  %v317 = vadd.f32 %v279, %v309
  %v318 = vadd.f32 %v280, %v310
  %v319 = vadd.f32 %v281, %v315
  %v320 = vadd.f32 %v282, %v316
  %321 = vst [vmem:[%s4] sm:$0xff] %v317
  %322 = vst [vmem:[%s4 + $0x8] sm:$0xff] %v318
  %323 = vst [vmem:[%s5] sm:$0xff] %v319
  %324 = vst [vmem:[%s5 + $0x8] sm:$0xff] %v320
  %s325 = scalar_lea.vmem %s0, 16
  %v326 = vld [vmem:[%s325] sm:$0xff]
  %v327 = vld [vmem:[%s325 + $0x8] sm:$0xff]
  %s328 = scalar_lea.vmem %s1, 16
  %v329 = vld [vmem:[%s328] sm:$0xff]
  %v330 = vld [vmem:[%s328 + $0x8] sm:$0xff]
  %v331 = vld [vmem:[%s2] sm:$0xff]
  %v332 = vld [vmem:[%s2 + $0x8] sm:$0xff]
  %v333 = vld [vmem:[%s3] sm:$0xff]
  %v334 = vld [vmem:[%s3 + $0x8] sm:$0xff]
  %v335 = vlaneseq
  %v336 = vshrl.u32 %v335, 7
  %v337 = vsub.s32 0, %v336
  %v338 = vrot.slane %v326, %v337
  %v339 = vlaneseq
  %v340 = vshrl.u32 %v339, 7
  %v341 = vsub.s32 0, %v340
  %v342 = vrot.slane %v327, %v341
  %v343 = vmul.f32 %v338, %v331
  %v344 = vmul.f32 %v342, %v332
  %v345 = vlaneseq
  %v346 = vshrl.u32 %v345, 7
  %v347 = vsub.s32 0, %v346
  %v348 = vrot.slane %v329, %v347
  %v349 = vlaneseq
  %v350 = vshrl.u32 %v349, 7
  %v351 = vsub.s32 0, %v350
  %v352 = vrot.slane %v330, %v351
  %v353 = vmul.f32 %v348, %v333
  %v354 = vmul.f32 %v352, %v334
  %v355 = vsub.f32 %v343, %v353
  %v356 = vsub.f32 %v344, %v354
  %v357 = vmul.f32 %v338, %v333
  %v358 = vmul.f32 %v342, %v334
  %v359 = vmul.f32 %v348, %v331
  %v360 = vmul.f32 %v352, %v332
  %v361 = vadd.f32 %v357, %v359
  %v362 = vadd.f32 %v358, %v360
  %v363 = vld [vmem:[%s55] sm:$0xff]
  %v364 = vld [vmem:[%s55 + $0x8] sm:$0xff]
  %v365 = vld [vmem:[%s58] sm:$0xff]
  %v366 = vld [vmem:[%s58 + $0x8] sm:$0xff]
  %v367 = vlaneseq
  %v368 = vshrl.u32 %v367, 7
  %v369 = vsub.s32 1, %v368
  %v370 = vrot.slane %v326, %v369
  %v371 = vlaneseq
  %v372 = vshrl.u32 %v371, 7
  %v373 = vsub.s32 1, %v372
  %v374 = vrot.slane %v327, %v373
  %v375 = vmul.f32 %v370, %v363
  %v376 = vmul.f32 %v374, %v364
  %v377 = vlaneseq
  %v378 = vshrl.u32 %v377, 7
  %v379 = vsub.s32 1, %v378
  %v380 = vrot.slane %v329, %v379
  %v381 = vlaneseq
  %v382 = vshrl.u32 %v381, 7
  %v383 = vsub.s32 1, %v382
  %v384 = vrot.slane %v330, %v383
  %v385 = vmul.f32 %v380, %v365
  %v386 = vmul.f32 %v384, %v366
  %v387 = vsub.f32 %v375, %v385
  %v388 = vsub.f32 %v376, %v386
  %v389 = vmul.f32 %v370, %v365
  %v390 = vmul.f32 %v374, %v366
  %v391 = vmul.f32 %v380, %v363
  %v392 = vmul.f32 %v384, %v364
  %v393 = vadd.f32 %v389, %v391
  %v394 = vadd.f32 %v390, %v392
  %v395 = vadd.f32 %v355, %v387
  %v396 = vadd.f32 %v356, %v388
  %v397 = vadd.f32 %v361, %v393
  %v398 = vadd.f32 %v362, %v394
  %v399 = vld [vmem:[%s93] sm:$0xff]
  %v400 = vld [vmem:[%s93 + $0x8] sm:$0xff]
  %v401 = vld [vmem:[%s96] sm:$0xff]
  %v402 = vld [vmem:[%s96 + $0x8] sm:$0xff]
  %v403 = vlaneseq
  %v404 = vshrl.u32 %v403, 7
  %v405 = vsub.s32 2, %v404
  %v406 = vrot.slane %v326, %v405
  %v407 = vlaneseq
  %v408 = vshrl.u32 %v407, 7
  %v409 = vsub.s32 2, %v408
  %v410 = vrot.slane %v327, %v409
  %v411 = vmul.f32 %v406, %v399
  %v412 = vmul.f32 %v410, %v400
  %v413 = vlaneseq
  %v414 = vshrl.u32 %v413, 7
  %v415 = vsub.s32 2, %v414
  %v416 = vrot.slane %v329, %v415
  %v417 = vlaneseq
  %v418 = vshrl.u32 %v417, 7
  %v419 = vsub.s32 2, %v418
  %v420 = vrot.slane %v330, %v419
  %v421 = vmul.f32 %v416, %v401
  %v422 = vmul.f32 %v420, %v402
  %v423 = vsub.f32 %v411, %v421
  %v424 = vsub.f32 %v412, %v422
  %v425 = vmul.f32 %v406, %v401
  %v426 = vmul.f32 %v410, %v402
  %v427 = vmul.f32 %v416, %v399
  %v428 = vmul.f32 %v420, %v400
  %v429 = vadd.f32 %v425, %v427
  %v430 = vadd.f32 %v426, %v428
  %v431 = vadd.f32 %v395, %v423
  %v432 = vadd.f32 %v396, %v424
  %v433 = vadd.f32 %v397, %v429
  %v434 = vadd.f32 %v398, %v430
  %v435 = vld [vmem:[%s131] sm:$0xff]
  %v436 = vld [vmem:[%s131 + $0x8] sm:$0xff]
  %v437 = vld [vmem:[%s134] sm:$0xff]
  %v438 = vld [vmem:[%s134 + $0x8] sm:$0xff]
  %v439 = vlaneseq
  %v440 = vshrl.u32 %v439, 7
  %v441 = vsub.s32 3, %v440
  %v442 = vrot.slane %v326, %v441
  %v443 = vlaneseq
  %v444 = vshrl.u32 %v443, 7
  %v445 = vsub.s32 3, %v444
  %v446 = vrot.slane %v327, %v445
  %v447 = vmul.f32 %v442, %v435
  %v448 = vmul.f32 %v446, %v436
  %v449 = vlaneseq
  %v450 = vshrl.u32 %v449, 7
  %v451 = vsub.s32 3, %v450
  %v452 = vrot.slane %v329, %v451
  %v453 = vlaneseq
  %v454 = vshrl.u32 %v453, 7
  %v455 = vsub.s32 3, %v454
  %v456 = vrot.slane %v330, %v455
  %v457 = vmul.f32 %v452, %v437
  %v458 = vmul.f32 %v456, %v438
  %v459 = vsub.f32 %v447, %v457
  %v460 = vsub.f32 %v448, %v458
  %v461 = vmul.f32 %v442, %v437
  %v462 = vmul.f32 %v446, %v438
  %v463 = vmul.f32 %v452, %v435
  %v464 = vmul.f32 %v456, %v436
  %v465 = vadd.f32 %v461, %v463
  %v466 = vadd.f32 %v462, %v464
  %v467 = vadd.f32 %v431, %v459
  %v468 = vadd.f32 %v432, %v460
  %v469 = vadd.f32 %v433, %v465
  %v470 = vadd.f32 %v434, %v466
  %v471 = vld [vmem:[%s169] sm:$0xff]
  %v472 = vld [vmem:[%s169 + $0x8] sm:$0xff]
  %v473 = vld [vmem:[%s172] sm:$0xff]
  %v474 = vld [vmem:[%s172 + $0x8] sm:$0xff]
  %v475 = vlaneseq
  %v476 = vshrl.u32 %v475, 7
  %v477 = vsub.s32 4, %v476
  %v478 = vrot.slane %v326, %v477
  %v479 = vlaneseq
  %v480 = vshrl.u32 %v479, 7
  %v481 = vsub.s32 4, %v480
  %v482 = vrot.slane %v327, %v481
  %v483 = vmul.f32 %v478, %v471
  %v484 = vmul.f32 %v482, %v472
  %v485 = vlaneseq
  %v486 = vshrl.u32 %v485, 7
  %v487 = vsub.s32 4, %v486
  %v488 = vrot.slane %v329, %v487
  %v489 = vlaneseq
  %v490 = vshrl.u32 %v489, 7
  %v491 = vsub.s32 4, %v490
  %v492 = vrot.slane %v330, %v491
  %v493 = vmul.f32 %v488, %v473
  %v494 = vmul.f32 %v492, %v474
  %v495 = vsub.f32 %v483, %v493
  %v496 = vsub.f32 %v484, %v494
  %v497 = vmul.f32 %v478, %v473
  %v498 = vmul.f32 %v482, %v474
  %v499 = vmul.f32 %v488, %v471
  %v500 = vmul.f32 %v492, %v472
  %v501 = vadd.f32 %v497, %v499
  %v502 = vadd.f32 %v498, %v500
  %v503 = vadd.f32 %v467, %v495
  %v504 = vadd.f32 %v468, %v496
  %v505 = vadd.f32 %v469, %v501
  %v506 = vadd.f32 %v470, %v502
  %v507 = vld [vmem:[%s207] sm:$0xff]
  %v508 = vld [vmem:[%s207 + $0x8] sm:$0xff]
  %v509 = vld [vmem:[%s210] sm:$0xff]
  %v510 = vld [vmem:[%s210 + $0x8] sm:$0xff]
  %v511 = vlaneseq
  %v512 = vshrl.u32 %v511, 7
  %v513 = vsub.s32 5, %v512
  %v514 = vrot.slane %v326, %v513
  %v515 = vlaneseq
  %v516 = vshrl.u32 %v515, 7
  %v517 = vsub.s32 5, %v516
  %v518 = vrot.slane %v327, %v517
  %v519 = vmul.f32 %v514, %v507
  %v520 = vmul.f32 %v518, %v508
  %v521 = vlaneseq
  %v522 = vshrl.u32 %v521, 7
  %v523 = vsub.s32 5, %v522
  %v524 = vrot.slane %v329, %v523
  %v525 = vlaneseq
  %v526 = vshrl.u32 %v525, 7
  %v527 = vsub.s32 5, %v526
  %v528 = vrot.slane %v330, %v527
  %v529 = vmul.f32 %v524, %v509
  %v530 = vmul.f32 %v528, %v510
  %v531 = vsub.f32 %v519, %v529
  %v532 = vsub.f32 %v520, %v530
  %v533 = vmul.f32 %v514, %v509
  %v534 = vmul.f32 %v518, %v510
  %v535 = vmul.f32 %v524, %v507
  %v536 = vmul.f32 %v528, %v508
  %v537 = vadd.f32 %v533, %v535
  %v538 = vadd.f32 %v534, %v536
  %v539 = vadd.f32 %v503, %v531
  %v540 = vadd.f32 %v504, %v532
  %v541 = vadd.f32 %v505, %v537
  %v542 = vadd.f32 %v506, %v538
  %v543 = vld [vmem:[%s245] sm:$0xff]
  %v544 = vld [vmem:[%s245 + $0x8] sm:$0xff]
  %v545 = vld [vmem:[%s248] sm:$0xff]
  %v546 = vld [vmem:[%s248 + $0x8] sm:$0xff]
  %v547 = vlaneseq
  %v548 = vshrl.u32 %v547, 7
  %v549 = vsub.s32 6, %v548
  %v550 = vrot.slane %v326, %v549
  %v551 = vlaneseq
  %v552 = vshrl.u32 %v551, 7
  %v553 = vsub.s32 6, %v552
  %v554 = vrot.slane %v327, %v553
  %v555 = vmul.f32 %v550, %v543
  %v556 = vmul.f32 %v554, %v544
  %v557 = vlaneseq
  %v558 = vshrl.u32 %v557, 7
  %v559 = vsub.s32 6, %v558
  %v560 = vrot.slane %v329, %v559
  %v561 = vlaneseq
  %v562 = vshrl.u32 %v561, 7
  %v563 = vsub.s32 6, %v562
  %v564 = vrot.slane %v330, %v563
  %v565 = vmul.f32 %v560, %v545
  %v566 = vmul.f32 %v564, %v546
  %v567 = vsub.f32 %v555, %v565
  %v568 = vsub.f32 %v556, %v566
  %v569 = vmul.f32 %v550, %v545
  %v570 = vmul.f32 %v554, %v546
  %v571 = vmul.f32 %v560, %v543
  %v572 = vmul.f32 %v564, %v544
  %v573 = vadd.f32 %v569, %v571
  %v574 = vadd.f32 %v570, %v572
  %v575 = vadd.f32 %v539, %v567
  %v576 = vadd.f32 %v540, %v568
  %v577 = vadd.f32 %v541, %v573
  %v578 = vadd.f32 %v542, %v574
  %v579 = vld [vmem:[%s283] sm:$0xff]
  %v580 = vld [vmem:[%s283 + $0x8] sm:$0xff]
  %v581 = vld [vmem:[%s286] sm:$0xff]
  %v582 = vld [vmem:[%s286 + $0x8] sm:$0xff]
  %v583 = vlaneseq
  %v584 = vshrl.u32 %v583, 7
  %v585 = vsub.s32 7, %v584
  %v586 = vrot.slane %v326, %v585
  %v587 = vlaneseq
  %v588 = vshrl.u32 %v587, 7
  %v589 = vsub.s32 7, %v588
  %v590 = vrot.slane %v327, %v589
  %v591 = vmul.f32 %v586, %v579
  %v592 = vmul.f32 %v590, %v580
  %v593 = vlaneseq
  %v594 = vshrl.u32 %v593, 7
  %v595 = vsub.s32 7, %v594
  %v596 = vrot.slane %v329, %v595
  %v597 = vlaneseq
  %v598 = vshrl.u32 %v597, 7
  %v599 = vsub.s32 7, %v598
  %v600 = vrot.slane %v330, %v599
  %v601 = vmul.f32 %v596, %v581
  %v602 = vmul.f32 %v600, %v582
  %v603 = vsub.f32 %v591, %v601
  %v604 = vsub.f32 %v592, %v602
  %v605 = vmul.f32 %v586, %v581
  %v606 = vmul.f32 %v590, %v582
  %v607 = vmul.f32 %v596, %v579
  %v608 = vmul.f32 %v600, %v580
  %v609 = vadd.f32 %v605, %v607
  %v610 = vadd.f32 %v606, %v608
  %v611 = vadd.f32 %v575, %v603
  %v612 = vadd.f32 %v576, %v604
  %v613 = vadd.f32 %v577, %v609
  %v614 = vadd.f32 %v578, %v610
  %s615 = scalar_lea.vmem %s4, 16
  %616 = vst [vmem:[%s615] sm:$0xff] %v611
  %617 = vst [vmem:[%s615 + $0x8] sm:$0xff] %v612
  %s618 = scalar_lea.vmem %s5, 16
  %619 = vst [vmem:[%s618] sm:$0xff] %v613
  %620 = vst [vmem:[%s618 + $0x8] sm:$0xff] %v614
  // Predicated region
  $region18: #{fno3d_forward.11} parent=0 // pred_check
    _
  $region19: #{fno3d_forward.11} parent=0 // pred_check_branch
    %622 = sbr.rel (0) target = $region21
  $region20: #{fno3d_forward.11} parent=0 // pred_region
    _
  $region21: #{fno3d_forward.11} parent=0 // pred_fallthru
    _
  // Predicated region
  $region22: #{fno3d_forward.11} parent=0 // pred_check
    _
  $region23: #{fno3d_forward.11} parent=0 // pred_check_branch
    %624 = sbr.rel (0) target = $region25
  $region24: #{fno3d_forward.11} parent=0 // pred_region
    _
  $region25: #{fno3d_forward.11} parent=0 // pred_fallthru
    _
  // Predicated region
  $region26: #{fno3d_forward.11} parent=0 // pred_check
    _
  $region27: #{fno3d_forward.11} parent=0 // pred_check_branch
    %626 = sbr.rel (0) target = $region29
  $region28: #{fno3d_forward.11} parent=0 // pred_region
    _
  $region29: #{fno3d_forward.11} parent=0 // pred_fallthru
    _
  // Predicated region
  $region30: #{fno3d_forward.11} parent=0 // pred_check
    _
  $region31: #{fno3d_forward.11} parent=0 // pred_check_branch
    %628 = sbr.rel (0) target = $region33
  $region32: #{fno3d_forward.11} parent=0 // pred_region
    _
  $region33: #{fno3d_forward.11} parent=0 // pred_fallthru
    _

// kernel: reverse.8
$region0: #{reverse.8}
  #allocation0 [shape = 's32[1]{0}', space=sflag, size = 0x4, scoped, tag = 'scoped memory for reverse.8']
  %s0 = inlined_call_operand.vmem [shape: f32[8,2,8,8,6], index: 0, kind: input, shape index: {}]
  %s1 = inlined_call_operand.vmem [shape: f32[8,2,8,8,6], index: 1, kind: output, shape index: {}]
  %s2 = scalar_lea.vmem %s0, 40
  %v3 = vld [vmem:[%s2] sm:$0xff]
  %4 = vst [vmem:[%s1] sm:$0xff] %v3
  %s5 = scalar_lea.vmem %s0, 136
  %v6 = vld [vmem:[%s5] sm:$0xff]
  %s7 = scalar_lea.vmem %s1, 96
  %8 = vst [vmem:[%s7] sm:$0xff] %v6
  %s9 = scalar_lea.vmem %s0, 232
  %v10 = vld [vmem:[%s9] sm:$0xff]
  %s11 = scalar_lea.vmem %s1, 192
  %12 = vst [vmem:[%s11] sm:$0xff] %v10
  %s13 = scalar_lea.vmem %s0, 328
  %v14 = vld [vmem:[%s13] sm:$0xff]
  %s15 = scalar_lea.vmem %s1, 288
  %16 = vst [vmem:[%s15] sm:$0xff] %v14
  %s17 = scalar_lea.vmem %s0, 424
  %v18 = vld [vmem:[%s17] sm:$0xff]
  %s19 = scalar_lea.vmem %s1, 384
  %20 = vst [vmem:[%s19] sm:$0xff] %v18
  %s21 = scalar_lea.vmem %s0, 520
  %v22 = vld [vmem:[%s21] sm:$0xff]
  %s23 = scalar_lea.vmem %s1, 480
  %24 = vst [vmem:[%s23] sm:$0xff] %v22
  %s25 = scalar_lea.vmem %s0, 616
  %v26 = vld [vmem:[%s25] sm:$0xff]
  %s27 = scalar_lea.vmem %s1, 576
  %28 = vst [vmem:[%s27] sm:$0xff] %v26
  %s29 = scalar_lea.vmem %s0, 712
  %v30 = vld [vmem:[%s29] sm:$0xff]
  %s31 = scalar_lea.vmem %s1, 672
  %32 = vst [vmem:[%s31] sm:$0xff] %v30
  %s33 = scalar_lea.vmem %s0, 88
  %v34 = vld [vmem:[%s33] sm:$0xff]
  %s35 = scalar_lea.vmem %s1, 48
  %36 = vst [vmem:[%s35] sm:$0xff] %v34
  %s37 = scalar_lea.vmem %s0, 184
  %v38 = vld [vmem:[%s37] sm:$0xff]
  %s39 = scalar_lea.vmem %s1, 144
  %40 = vst [vmem:[%s39] sm:$0xff] %v38
  %s41 = scalar_lea.vmem %s0, 280
  %v42 = vld [vmem:[%s41] sm:$0xff]
  %s43 = scalar_lea.vmem %s1, 240
  %44 = vst [vmem:[%s43] sm:$0xff] %v42
  %s45 = scalar_lea.vmem %s0, 376
  %v46 = vld [vmem:[%s45] sm:$0xff]
  %s47 = scalar_lea.vmem %s1, 336
  %48 = vst [vmem:[%s47] sm:$0xff] %v46
  %s49 = scalar_lea.vmem %s0, 472
  %v50 = vld [vmem:[%s49] sm:$0xff]
  %s51 = scalar_lea.vmem %s1, 432
  %52 = vst [vmem:[%s51] sm:$0xff] %v50
  %s53 = scalar_lea.vmem %s0, 568
  %v54 = vld [vmem:[%s53] sm:$0xff]
  %s55 = scalar_lea.vmem %s1, 528
  %56 = vst [vmem:[%s55] sm:$0xff] %v54
  %s57 = scalar_lea.vmem %s0, 664
  %v58 = vld [vmem:[%s57] sm:$0xff]
  %s59 = scalar_lea.vmem %s1, 624
  %60 = vst [vmem:[%s59] sm:$0xff] %v58
  %s61 = scalar_lea.vmem %s0, 760
  %v62 = vld [vmem:[%s61] sm:$0xff]
  %s63 = scalar_lea.vmem %s1, 720
  %64 = vst [vmem:[%s63] sm:$0xff] %v62
  %s65 = scalar_lea.vmem %s0, 32
  %v66 = vld [vmem:[%s65] sm:$0xff]
  %s67 = scalar_lea.vmem %s1, 8
  %68 = vst [vmem:[%s67] sm:$0xff] %v66
  %s69 = scalar_lea.vmem %s0, 128
  %v70 = vld [vmem:[%s69] sm:$0xff]
  %s71 = scalar_lea.vmem %s1, 104
  %72 = vst [vmem:[%s71] sm:$0xff] %v70
  %s73 = scalar_lea.vmem %s0, 224
  %v74 = vld [vmem:[%s73] sm:$0xff]
  %s75 = scalar_lea.vmem %s1, 200
  %76 = vst [vmem:[%s75] sm:$0xff] %v74
  %s77 = scalar_lea.vmem %s0, 320
  %v78 = vld [vmem:[%s77] sm:$0xff]
  %s79 = scalar_lea.vmem %s1, 296
  %80 = vst [vmem:[%s79] sm:$0xff] %v78
  %s81 = scalar_lea.vmem %s0, 416
  %v82 = vld [vmem:[%s81] sm:$0xff]
  %s83 = scalar_lea.vmem %s1, 392
  %84 = vst [vmem:[%s83] sm:$0xff] %v82
  %s85 = scalar_lea.vmem %s0, 512
  %v86 = vld [vmem:[%s85] sm:$0xff]
  %s87 = scalar_lea.vmem %s1, 488
  %88 = vst [vmem:[%s87] sm:$0xff] %v86
  %s89 = scalar_lea.vmem %s0, 608
  %v90 = vld [vmem:[%s89] sm:$0xff]
  %s91 = scalar_lea.vmem %s1, 584
  %92 = vst [vmem:[%s91] sm:$0xff] %v90
  %s93 = scalar_lea.vmem %s0, 704
  %v94 = vld [vmem:[%s93] sm:$0xff]
  %s95 = scalar_lea.vmem %s1, 680
  %96 = vst [vmem:[%s95] sm:$0xff] %v94
  %s97 = scalar_lea.vmem %s0, 80
  %v98 = vld [vmem:[%s97] sm:$0xff]
  %s99 = scalar_lea.vmem %s1, 56
  %100 = vst [vmem:[%s99] sm:$0xff] %v98
  %s101 = scalar_lea.vmem %s0, 176
  %v102 = vld [vmem:[%s101] sm:$0xff]
  %s103 = scalar_lea.vmem %s1, 152
  %104 = vst [vmem:[%s103] sm:$0xff] %v102
  %s105 = scalar_lea.vmem %s0, 272
  %v106 = vld [vmem:[%s105] sm:$0xff]
  %s107 = scalar_lea.vmem %s1, 248
  %108 = vst [vmem:[%s107] sm:$0xff] %v106
  %s109 = scalar_lea.vmem %s0, 368
  %v110 = vld [vmem:[%s109] sm:$0xff]
  %s111 = scalar_lea.vmem %s1, 344
  %112 = vst [vmem:[%s111] sm:$0xff] %v110
  %s113 = scalar_lea.vmem %s0, 464
  %v114 = vld [vmem:[%s113] sm:$0xff]
  %s115 = scalar_lea.vmem %s1, 440
  %116 = vst [vmem:[%s115] sm:$0xff] %v114
  %s117 = scalar_lea.vmem %s0, 560
  %v118 = vld [vmem:[%s117] sm:$0xff]
  %s119 = scalar_lea.vmem %s1, 536
  %120 = vst [vmem:[%s119] sm:$0xff] %v118
  %s121 = scalar_lea.vmem %s0, 656
  %v122 = vld [vmem:[%s121] sm:$0xff]
  %s123 = scalar_lea.vmem %s1, 632
  %124 = vst [vmem:[%s123] sm:$0xff] %v122
  %s125 = scalar_lea.vmem %s0, 752
  %v126 = vld [vmem:[%s125] sm:$0xff]
  %s127 = scalar_lea.vmem %s1, 728
  %128 = vst [vmem:[%s127] sm:$0xff] %v126
  %s129 = scalar_lea.vmem %s0, 24
  %v130 = vld [vmem:[%s129] sm:$0xff]
  %s131 = scalar_lea.vmem %s1, 16
  %132 = vst [vmem:[%s131] sm:$0xff] %v130
  %s133 = scalar_lea.vmem %s0, 120
  %v134 = vld [vmem:[%s133] sm:$0xff]
  %s135 = scalar_lea.vmem %s1, 112
  %136 = vst [vmem:[%s135] sm:$0xff] %v134
  %s137 = scalar_lea.vmem %s0, 216
  %v138 = vld [vmem:[%s137] sm:$0xff]
  %s139 = scalar_lea.vmem %s1, 208
  %140 = vst [vmem:[%s139] sm:$0xff] %v138
  %s141 = scalar_lea.vmem %s0, 312
  %v142 = vld [vmem:[%s141] sm:$0xff]
  %s143 = scalar_lea.vmem %s1, 304
  %144 = vst [vmem:[%s143] sm:$0xff] %v142
  %s145 = scalar_lea.vmem %s0, 408
  %v146 = vld [vmem:[%s145] sm:$0xff]
  %s147 = scalar_lea.vmem %s1, 400
  %148 = vst [vmem:[%s147] sm:$0xff] %v146
  %s149 = scalar_lea.vmem %s0, 504
  %v150 = vld [vmem:[%s149] sm:$0xff]
  %s151 = scalar_lea.vmem %s1, 496
  %152 = vst [vmem:[%s151] sm:$0xff] %v150
  %s153 = scalar_lea.vmem %s0, 600
  %v154 = vld [vmem:[%s153] sm:$0xff]
  %s155 = scalar_lea.vmem %s1, 592
  %156 = vst [vmem:[%s155] sm:$0xff] %v154
  %s157 = scalar_lea.vmem %s0, 696
  %v158 = vld [vmem:[%s157] sm:$0xff]
  %s159 = scalar_lea.vmem %s1, 688
  %160 = vst [vmem:[%s159] sm:$0xff] %v158
  %s161 = scalar_lea.vmem %s0, 72
  %v162 = vld [vmem:[%s161] sm:$0xff]
  %s163 = scalar_lea.vmem %s1, 64
  %164 = vst [vmem:[%s163] sm:$0xff] %v162
  %s165 = scalar_lea.vmem %s0, 168
  %v166 = vld [vmem:[%s165] sm:$0xff]
  %s167 = scalar_lea.vmem %s1, 160
  %168 = vst [vmem:[%s167] sm:$0xff] %v166
  %s169 = scalar_lea.vmem %s0, 264
  %v170 = vld [vmem:[%s169] sm:$0xff]
  %s171 = scalar_lea.vmem %s1, 256
  %172 = vst [vmem:[%s171] sm:$0xff] %v170
  %s173 = scalar_lea.vmem %s0, 360
  %v174 = vld [vmem:[%s173] sm:$0xff]
  %s175 = scalar_lea.vmem %s1, 352
  %176 = vst [vmem:[%s175] sm:$0xff] %v174
  %s177 = scalar_lea.vmem %s0, 456
  %v178 = vld [vmem:[%s177] sm:$0xff]
  %s179 = scalar_lea.vmem %s1, 448
  %180 = vst [vmem:[%s179] sm:$0xff] %v178
  %s181 = scalar_lea.vmem %s0, 552
  %v182 = vld [vmem:[%s181] sm:$0xff]
  %s183 = scalar_lea.vmem %s1, 544
  %184 = vst [vmem:[%s183] sm:$0xff] %v182
  %s185 = scalar_lea.vmem %s0, 648
  %v186 = vld [vmem:[%s185] sm:$0xff]
  %s187 = scalar_lea.vmem %s1, 640
  %188 = vst [vmem:[%s187] sm:$0xff] %v186
  %s189 = scalar_lea.vmem %s0, 744
  %v190 = vld [vmem:[%s189] sm:$0xff]
  %s191 = scalar_lea.vmem %s1, 736
  %192 = vst [vmem:[%s191] sm:$0xff] %v190
  %s193 = scalar_lea.vmem %s0, 16
  %v194 = vld [vmem:[%s193] sm:$0xff]
  %s195 = scalar_lea.vmem %s1, 24
  %196 = vst [vmem:[%s195] sm:$0xff] %v194
  %s197 = scalar_lea.vmem %s0, 112
  %v198 = vld [vmem:[%s197] sm:$0xff]
  %s199 = scalar_lea.vmem %s1, 120
  %200 = vst [vmem:[%s199] sm:$0xff] %v198
  %s201 = scalar_lea.vmem %s0, 208
  %v202 = vld [vmem:[%s201] sm:$0xff]
  %s203 = scalar_lea.vmem %s1, 216
  %204 = vst [vmem:[%s203] sm:$0xff] %v202
  %s205 = scalar_lea.vmem %s0, 304
  %v206 = vld [vmem:[%s205] sm:$0xff]
  %s207 = scalar_lea.vmem %s1, 312
  %208 = vst [vmem:[%s207] sm:$0xff] %v206
  %s209 = scalar_lea.vmem %s0, 400
  %v210 = vld [vmem:[%s209] sm:$0xff]
  %s211 = scalar_lea.vmem %s1, 408
  %212 = vst [vmem:[%s211] sm:$0xff] %v210
  %s213 = scalar_lea.vmem %s0, 496
  %v214 = vld [vmem:[%s213] sm:$0xff]
  %s215 = scalar_lea.vmem %s1, 504
  %216 = vst [vmem:[%s215] sm:$0xff] %v214
  %s217 = scalar_lea.vmem %s0, 592
  %v218 = vld [vmem:[%s217] sm:$0xff]
  %s219 = scalar_lea.vmem %s1, 600
  %220 = vst [vmem:[%s219] sm:$0xff] %v218
  %s221 = scalar_lea.vmem %s0, 688
  %v222 = vld [vmem:[%s221] sm:$0xff]
  %s223 = scalar_lea.vmem %s1, 696
  %224 = vst [vmem:[%s223] sm:$0xff] %v222
  %s225 = scalar_lea.vmem %s0, 64
  %v226 = vld [vmem:[%s225] sm:$0xff]
  %s227 = scalar_lea.vmem %s1, 72
  %228 = vst [vmem:[%s227] sm:$0xff] %v226
  %s229 = scalar_lea.vmem %s0, 160
  %v230 = vld [vmem:[%s229] sm:$0xff]
  %s231 = scalar_lea.vmem %s1, 168
  %232 = vst [vmem:[%s231] sm:$0xff] %v230
  %s233 = scalar_lea.vmem %s0, 256
  %v234 = vld [vmem:[%s233] sm:$0xff]
  %s235 = scalar_lea.vmem %s1, 264
  %236 = vst [vmem:[%s235] sm:$0xff] %v234
  %s237 = scalar_lea.vmem %s0, 352
  %v238 = vld [vmem:[%s237] sm:$0xff]
  %s239 = scalar_lea.vmem %s1, 360
  %240 = vst [vmem:[%s239] sm:$0xff] %v238
  %s241 = scalar_lea.vmem %s0, 448
  %v242 = vld [vmem:[%s241] sm:$0xff]
  %s243 = scalar_lea.vmem %s1, 456
  %244 = vst [vmem:[%s243] sm:$0xff] %v242
  %s245 = scalar_lea.vmem %s0, 544
  %v246 = vld [vmem:[%s245] sm:$0xff]
  %s247 = scalar_lea.vmem %s1, 552
  %248 = vst [vmem:[%s247] sm:$0xff] %v246
  %s249 = scalar_lea.vmem %s0, 640
  %v250 = vld [vmem:[%s249] sm:$0xff]
  %s251 = scalar_lea.vmem %s1, 648
  %252 = vst [vmem:[%s251] sm:$0xff] %v250
  %s253 = scalar_lea.vmem %s0, 736
  %v254 = vld [vmem:[%s253] sm:$0xff]
  %s255 = scalar_lea.vmem %s1, 744
  %256 = vst [vmem:[%s255] sm:$0xff] %v254
  %s257 = scalar_lea.vmem %s0, 8
  %v258 = vld [vmem:[%s257] sm:$0xff]
  %s259 = scalar_lea.vmem %s1, 32
  %260 = vst [vmem:[%s259] sm:$0xff] %v258
  %s261 = scalar_lea.vmem %s0, 104
  %v262 = vld [vmem:[%s261] sm:$0xff]
  %s263 = scalar_lea.vmem %s1, 128
  %264 = vst [vmem:[%s263] sm:$0xff] %v262
  %s265 = scalar_lea.vmem %s0, 200
  %v266 = vld [vmem:[%s265] sm:$0xff]
  %s267 = scalar_lea.vmem %s1, 224
  %268 = vst [vmem:[%s267] sm:$0xff] %v266
  %s269 = scalar_lea.vmem %s0, 296
  %v270 = vld [vmem:[%s269] sm:$0xff]
  %s271 = scalar_lea.vmem %s1, 320
  %272 = vst [vmem:[%s271] sm:$0xff] %v270
  %s273 = scalar_lea.vmem %s0, 392
  %v274 = vld [vmem:[%s273] sm:$0xff]
  %s275 = scalar_lea.vmem %s1, 416
  %276 = vst [vmem:[%s275] sm:$0xff] %v274
  %s277 = scalar_lea.vmem %s0, 488
  %v278 = vld [vmem:[%s277] sm:$0xff]
  %s279 = scalar_lea.vmem %s1, 512
  %280 = vst [vmem:[%s279] sm:$0xff] %v278
  %s281 = scalar_lea.vmem %s0, 584
  %v282 = vld [vmem:[%s281] sm:$0xff]
  %s283 = scalar_lea.vmem %s1, 608
  %284 = vst [vmem:[%s283] sm:$0xff] %v282
  %s285 = scalar_lea.vmem %s0, 680
  %v286 = vld [vmem:[%s285] sm:$0xff]
  %s287 = scalar_lea.vmem %s1, 704
  %288 = vst [vmem:[%s287] sm:$0xff] %v286
  %s289 = scalar_lea.vmem %s0, 56
  %v290 = vld [vmem:[%s289] sm:$0xff]
  %s291 = scalar_lea.vmem %s1, 80
  %292 = vst [vmem:[%s291] sm:$0xff] %v290
  %s293 = scalar_lea.vmem %s0, 152
  %v294 = vld [vmem:[%s293] sm:$0xff]
  %s295 = scalar_lea.vmem %s1, 176
  %296 = vst [vmem:[%s295] sm:$0xff] %v294
  %s297 = scalar_lea.vmem %s0, 248
  %v298 = vld [vmem:[%s297] sm:$0xff]
  %s299 = scalar_lea.vmem %s1, 272
  %300 = vst [vmem:[%s299] sm:$0xff] %v298
  %s301 = scalar_lea.vmem %s0, 344
  %v302 = vld [vmem:[%s301] sm:$0xff]
  %s303 = scalar_lea.vmem %s1, 368
  %304 = vst [vmem:[%s303] sm:$0xff] %v302
  %s305 = scalar_lea.vmem %s0, 440
  %v306 = vld [vmem:[%s305] sm:$0xff]
  %s307 = scalar_lea.vmem %s1, 464
  %308 = vst [vmem:[%s307] sm:$0xff] %v306
  %s309 = scalar_lea.vmem %s0, 536
  %v310 = vld [vmem:[%s309] sm:$0xff]
  %s311 = scalar_lea.vmem %s1, 560
  %312 = vst [vmem:[%s311] sm:$0xff] %v310
  %s313 = scalar_lea.vmem %s0, 632
  %v314 = vld [vmem:[%s313] sm:$0xff]
  %s315 = scalar_lea.vmem %s1, 656
  %316 = vst [vmem:[%s315] sm:$0xff] %v314
  %s317 = scalar_lea.vmem %s0, 728
  %v318 = vld [vmem:[%s317] sm:$0xff]
  %s319 = scalar_lea.vmem %s1, 752
  %320 = vst [vmem:[%s319] sm:$0xff] %v318
  %v321 = vld [vmem:[%s0] sm:$0xff]
  %s322 = scalar_lea.vmem %s1, 40
  %323 = vst [vmem:[%s322] sm:$0xff] %v321
  %s324 = scalar_lea.vmem %s0, 96
  %v325 = vld [vmem:[%s324] sm:$0xff]
  %s326 = scalar_lea.vmem %s1, 136
  %327 = vst [vmem:[%s326] sm:$0xff] %v325
  %s328 = scalar_lea.vmem %s0, 192
  %v329 = vld [vmem:[%s328] sm:$0xff]
  %s330 = scalar_lea.vmem %s1, 232
  %331 = vst [vmem:[%s330] sm:$0xff] %v329
  %s332 = scalar_lea.vmem %s0, 288
  %v333 = vld [vmem:[%s332] sm:$0xff]
  %s334 = scalar_lea.vmem %s1, 328
  %335 = vst [vmem:[%s334] sm:$0xff] %v333
  %s336 = scalar_lea.vmem %s0, 384
  %v337 = vld [vmem:[%s336] sm:$0xff]
  %s338 = scalar_lea.vmem %s1, 424
  %339 = vst [vmem:[%s338] sm:$0xff] %v337
  %s340 = scalar_lea.vmem %s0, 480
  %v341 = vld [vmem:[%s340] sm:$0xff]
  %s342 = scalar_lea.vmem %s1, 520
  %343 = vst [vmem:[%s342] sm:$0xff] %v341
  %s344 = scalar_lea.vmem %s0, 576
  %v345 = vld [vmem:[%s344] sm:$0xff]
  %s346 = scalar_lea.vmem %s1, 616
  %347 = vst [vmem:[%s346] sm:$0xff] %v345
  %s348 = scalar_lea.vmem %s0, 672
  %v349 = vld [vmem:[%s348] sm:$0xff]
  %s350 = scalar_lea.vmem %s1, 712
  %351 = vst [vmem:[%s350] sm:$0xff] %v349
  %s352 = scalar_lea.vmem %s0, 48
  %v353 = vld [vmem:[%s352] sm:$0xff]
  %s354 = scalar_lea.vmem %s1, 88
  %355 = vst [vmem:[%s354] sm:$0xff] %v353
  %s356 = scalar_lea.vmem %s0, 144
  %v357 = vld [vmem:[%s356] sm:$0xff]
  %s358 = scalar_lea.vmem %s1, 184
  %359 = vst [vmem:[%s358] sm:$0xff] %v357
  %s360 = scalar_lea.vmem %s0, 240
  %v361 = vld [vmem:[%s360] sm:$0xff]
  %s362 = scalar_lea.vmem %s1, 280
  %363 = vst [vmem:[%s362] sm:$0xff] %v361
  %s364 = scalar_lea.vmem %s0, 336
  %v365 = vld [vmem:[%s364] sm:$0xff]
  %s366 = scalar_lea.vmem %s1, 376
  %367 = vst [vmem:[%s366] sm:$0xff] %v365
  %s368 = scalar_lea.vmem %s0, 432
  %v369 = vld [vmem:[%s368] sm:$0xff]
  %s370 = scalar_lea.vmem %s1, 472
  %371 = vst [vmem:[%s370] sm:$0xff] %v369
  %s372 = scalar_lea.vmem %s0, 528
  %v373 = vld [vmem:[%s372] sm:$0xff]
  %s374 = scalar_lea.vmem %s1, 568
  %375 = vst [vmem:[%s374] sm:$0xff] %v373
  %s376 = scalar_lea.vmem %s0, 624
  %v377 = vld [vmem:[%s376] sm:$0xff]
  %s378 = scalar_lea.vmem %s1, 664
  %379 = vst [vmem:[%s378] sm:$0xff] %v377
  %s380 = scalar_lea.vmem %s0, 720
  %v381 = vld [vmem:[%s380] sm:$0xff]
  %s382 = scalar_lea.vmem %s1, 760
  %383 = vst [vmem:[%s382] sm:$0xff] %v381

// kernel: fno3d_forward.12
$region0: #{fno3d_forward.12}
  #allocation0 [shape = 'u32[]', space=smem, size = 0x4, offset = 0x4, fixed_abs, tag = 'smem constant byte address 0x4 - core index']
  #allocation1 [shape = 'u32[144,128]{1,0:T(1,128)}', space=vmem, size = 0x12000, scoped, tag = 'internal scratch']
  %s0 = inlined_call_operand.vmem [shape: f32[8,1792], index: 0, kind: input, shape index: {}, may-alias: {0,4}]
  %s1 = inlined_call_operand.vmem [shape: f32[8,1792], index: 1, kind: input, shape index: {}]
  %s2 = inlined_call_operand.vmem [shape: f32[8,8], index: 2, kind: input, shape index: {}]
  %s3 = inlined_call_operand.vmem [shape: f32[8,1], index: 3, kind: input, shape index: {}]
  %s4 = inlined_call_operand.vmem [shape: f32[8,1792], index: 4, kind: output, shape index: {}, may-alias: {0,4}]
  %s5 = sld [smem:[#allocation0]]
  $region49: #{fno3d_forward.12} parent=0
    _
  %s7 = ssub.s32 1, %s5
  %s8 = scalar_select 0, %s7, %s5
  loop: start=0, step=1, limit=4
  $region2: #{fno3d_forward.12} parent=0 // loop_pre_header
    _
  $region3: #{fno3d_forward.12} parent=0 // loop_header
    %s10 = sphi 0, %s14
    %p11 = scmp.ge.s32.totalorder %s10, 4
    %s20 = sphi 0, %s22
    %s23 = sphi 0, %s20
    %s24 = sphi 0, %s23
    %s40 = sphi 0, %s24
    %s46 = sphi 0, %s48
    %s49 = sphi 0, %s46
    %s50 = sphi 0, %s49
    %s66 = sphi 0, %s50
    %s70 = sphi 0, %s70
    %s72 = sphi 0, %s70
    %s73 = sphi 0, %s72
    %s87 = sphi 0, %s73
    %s91 = sphi 0, %s91
    %s93 = sphi 0, %s91
    %s94 = sphi 0, %s93
    %s108 = sphi 0, %s94
    %s114 = sphi 0, %s116
    %s117 = sphi 0, %s114
    %s118 = sphi 0, %s117
    %s134 = sphi 0, %s118
  $region4: #{fno3d_forward.12} parent=0 // loop_header_branch
    %13 = sbr.rel (%p11) target = $region8
  $region5: #{fno3d_forward.12} parent=0 // loop_body
    %s15 = ssub.s32 %s10, 1
    %s16 = ssub.s32 %s10, 2
    %s17 = sadd.s32 %s10, 1
    %s18 = ssub.s32 %s10, %s17
    %p19 = scmp.eq.s32.totalorder %s18, 0
    %s21 = sadd.s32 %s20, 1
    %s22 = scalar_select %p19, %s20, %s21
    %p25 = pneg %p19
    %p26 = scmp.eq.s32.totalorder %s10, 1
    %p27 = por %p25, %p26
    %p28 = scmp.ne.s32.totalorder %s20, %s23
    %p29 = scmp.eq.s32.totalorder %s10, 0
    %p30 = por %p28, %p29
    %p31 = scmp.ne.s32.totalorder %s20, %s23
    %p32 = scmp.eq.s32.totalorder %s15, 1
    %p33 = por %p31, %p32
    %p34 = scmp.ne.s32.totalorder %s23, %s24
    %p35 = scmp.eq.s32.totalorder %s15, 0
    %p36 = por %p34, %p35
    %p37 = scmp.ne.s32.totalorder %s23, %s24
    %p38 = scmp.eq.s32.totalorder %s16, 1
    %p39 = por %p37, %p38
    %p41 = scmp.ne.s32.totalorder %s24, %s40
    %p42 = scmp.eq.s32.totalorder %s16, 0
    %p43 = por %p41, %p42
    %s44 = ssub.s32 %s10, %s17
    %p45 = scmp.eq.s32.totalorder %s44, 0
    %s47 = sadd.s32 %s46, 1
    %s48 = scalar_select %p45, %s46, %s47
    %p51 = pneg %p45
    %p52 = scmp.eq.s32.totalorder %s10, 1
    %p53 = por %p51, %p52
    %p54 = scmp.ne.s32.totalorder %s46, %s49
    %p55 = scmp.eq.s32.totalorder %s10, 0
    %p56 = por %p54, %p55
    %p57 = scmp.ne.s32.totalorder %s46, %s49
    %p58 = scmp.eq.s32.totalorder %s15, 1
    %p59 = por %p57, %p58
    %p60 = scmp.ne.s32.totalorder %s49, %s50
    %p61 = scmp.eq.s32.totalorder %s15, 0
    %p62 = por %p60, %p61
    %p63 = scmp.ne.s32.totalorder %s49, %s50
    %p64 = scmp.eq.s32.totalorder %s16, 1
    %p65 = por %p63, %p64
    %p67 = scmp.ne.s32.totalorder %s50, %s66
    %p68 = scmp.eq.s32.totalorder %s16, 0
    %p69 = por %p67, %p68
    %s71 = sadd.s32 %s70, 1
    %p74 = scmp.eq.s32.totalorder %s10, 1
    %p75 = scmp.ne.s32.totalorder %s70, %s72
    %p76 = scmp.eq.s32.totalorder %s10, 0
    %p77 = por %p75, %p76
    %p78 = scmp.ne.s32.totalorder %s70, %s72
    %p79 = scmp.eq.s32.totalorder %s15, 1
    %p80 = por %p78, %p79
    %p81 = scmp.ne.s32.totalorder %s72, %s73
    %p82 = scmp.eq.s32.totalorder %s15, 0
    %p83 = por %p81, %p82
    %p84 = scmp.ne.s32.totalorder %s72, %s73
    %p85 = scmp.eq.s32.totalorder %s16, 1
    %p86 = por %p84, %p85
    %p88 = scmp.ne.s32.totalorder %s73, %s87
    %p89 = scmp.eq.s32.totalorder %s16, 0
    %p90 = por %p88, %p89
    %s92 = sadd.s32 %s91, 1
    %p95 = scmp.eq.s32.totalorder %s10, 1
    %p96 = scmp.ne.s32.totalorder %s91, %s93
    %p97 = scmp.eq.s32.totalorder %s10, 0
    %p98 = por %p96, %p97
    %p99 = scmp.ne.s32.totalorder %s91, %s93
    %p100 = scmp.eq.s32.totalorder %s15, 1
    %p101 = por %p99, %p100
    %p102 = scmp.ne.s32.totalorder %s93, %s94
    %p103 = scmp.eq.s32.totalorder %s15, 0
    %p104 = por %p102, %p103
    %p105 = scmp.ne.s32.totalorder %s93, %s94
    %p106 = scmp.eq.s32.totalorder %s16, 1
    %p107 = por %p105, %p106
    %p109 = scmp.ne.s32.totalorder %s94, %s108
    %p110 = scmp.eq.s32.totalorder %s16, 0
    %p111 = por %p109, %p110
    %s112 = ssub.s32 %s10, %s17
    %p113 = scmp.eq.s32.totalorder %s112, 0
    %s115 = sadd.s32 %s114, 1
    %s116 = scalar_select %p113, %s114, %s115
    %p119 = pneg %p113
    %p120 = scmp.eq.s32.totalorder %s10, 1
    %p121 = por %p119, %p120
    %p122 = scmp.ne.s32.totalorder %s114, %s117
    %p123 = scmp.eq.s32.totalorder %s10, 0
    %p124 = por %p122, %p123
    %p125 = scmp.ne.s32.totalorder %s114, %s117
    %p126 = scmp.eq.s32.totalorder %s15, 1
    %p127 = por %p125, %p126
    %p128 = scmp.ne.s32.totalorder %s117, %s118
    %p129 = scmp.eq.s32.totalorder %s15, 0
    %p130 = por %p128, %p129
    %p131 = scmp.ne.s32.totalorder %s117, %s118
    %p132 = scmp.eq.s32.totalorder %s16, 1
    %p133 = por %p131, %p132
    %p135 = scmp.ne.s32.totalorder %s118, %s134
    %p136 = scmp.eq.s32.totalorder %s16, 0
    %p137 = por %p135, %p136
    %p138 = scmp.le.s32.totalorder 1, %s10
    %p139 = scmp.lt.s32.totalorder %s10, 3
    %p140 = pnand %p138, %p139
    %p141 = pneg %p140
    // Predicated region
    $region9: #{fno3d_forward.12} parent=5 // pred_check
      _
    $region10: #{fno3d_forward.12} parent=5 // pred_check_branch
      %143 = sbr.rel (%p140) target = $region12
    $region11: #{fno3d_forward.12} parent=5 // pred_region
      %s144 = ssub.s32 %s10, 1
      // Predicated region
      $region13: #{fno3d_forward.12} parent=11 // pred_check
        %p145 = pneg %p83
      $region14: #{fno3d_forward.12} parent=11 // pred_check_branch
        %147 = sbr.rel (%p145) target = $region16
      $region15: #{fno3d_forward.12} parent=11 // pred_region
        _
      $region16: #{fno3d_forward.12} parent=11 // pred_fallthru
        _
      // Predicated region
      $region17: #{fno3d_forward.12} parent=11 // pred_check
        %p148 = pneg %p104
      $region18: #{fno3d_forward.12} parent=11 // pred_check_branch
        %150 = sbr.rel (%p148) target = $region20
      $region19: #{fno3d_forward.12} parent=11 // pred_region
        _
      $region20: #{fno3d_forward.12} parent=11 // pred_fallthru
        _
    $region12: #{fno3d_forward.12} parent=5 // pred_fallthru
      _
    %p151 = scmp.lt.s32.totalorder %s10, 2
    // Predicated region
    $region21: #{fno3d_forward.12} parent=5 // pred_check
      %p152 = pneg %p151
    $region22: #{fno3d_forward.12} parent=5 // pred_check_branch
      %154 = sbr.rel (%p152) target = $region24
    $region23: #{fno3d_forward.12} parent=5 // pred_region
      // Predicated region
      $region25: #{fno3d_forward.12} parent=23 // pred_check
        %p155 = pneg %p30
      $region26: #{fno3d_forward.12} parent=23 // pred_check_branch
        %157 = sbr.rel (%p155) target = $region28
      $region27: #{fno3d_forward.12} parent=23 // pred_region
        %s158 = smul.u32 7, %s10
        %p159 = scmp.lt.s32.totalorder %s158, 13
        %s160 = scalar_select %p159, %s158, 13
        %s161 = smul.addr %s160, 8
        %s162 = scalar_lea.vmem %s0, %s161
        %s163 = smul.u32 7, %s10
      $region28: #{fno3d_forward.12} parent=23 // pred_fallthru
        _
      // Predicated region
      $region29: #{fno3d_forward.12} parent=23 // pred_check
        %p164 = pneg %p56
      $region30: #{fno3d_forward.12} parent=23 // pred_check_branch
        %166 = sbr.rel (%p164) target = $region32
      $region31: #{fno3d_forward.12} parent=23 // pred_region
        %s167 = smul.u32 7, %s10
        %p168 = scmp.lt.s32.totalorder %s167, 13
        %s169 = scalar_select %p168, %s167, 13
        %s170 = smul.addr %s169, 8
        %s171 = scalar_lea.vmem %s1, %s170
        %s172 = smul.u32 7, %s10
      $region32: #{fno3d_forward.12} parent=23 // pred_fallthru
        _
    $region24: #{fno3d_forward.12} parent=5 // pred_fallthru
      _
    %p173 = scmp.le.s32.totalorder 1, %s10
    %p174 = scmp.lt.s32.totalorder %s10, 3
    %p175 = pnand %p173, %p174
    %p176 = pneg %p175
    // Predicated region
    $region33: #{fno3d_forward.12} parent=5 // pred_check
      _
    $region34: #{fno3d_forward.12} parent=5 // pred_check_branch
      %178 = sbr.rel (%p175) target = $region36
    $region35: #{fno3d_forward.12} parent=5 // pred_region
      %s179 = ssub.s32 %s10, 1
      %s180 = smul.u32 7, %s15
      %p181 = scmp.lt.s32.totalorder %s180, 13
      %s182 = scalar_select %p181, %s180, 13
      %s183 = smul.addr %s182, 8
      %s184 = scalar_lea.vmem %s0, %s183
      %p185 = pneg %p36
      %p186 = pneg %p33
      %s187 = smul.u32 7, %s15
      %p188 = scmp.lt.s32.totalorder %s187, 13
      %s189 = scalar_select %p188, %s187, 13
      %s190 = smul.addr %s189, 8
      %s191 = scalar_lea.vmem %s1, %s190
      %p192 = pneg %p62
      %p193 = pneg %p59
      %p194 = pneg %p83
      %p195 = pneg %p80
      %p196 = pneg %p104
      %p197 = pneg %p101
      %p198 = pneg %p130
      %p199 = pneg %p127
      %s200 = smul.u32 7, %s15
      %p201 = scmp.lt.s32.totalorder %s200, 13
      %s202 = scalar_select %p201, %s200, 13
      %s203 = smul.addr %s202, 8
      %s204 = scalar_lea.vmem %s4, %s203
      %s205 = smul.u32 7, %s15
      %p206 = scmp.lt.s32.totalorder %s205, 13
      %s207 = scalar_select %p206, %s205, 13
      %s208 = smul.addr %s207, 8
      %s209 = scalar_lea.vmem %s0, %s208
      %s210 = smul.u32 7, %s15
      %s211 = smul.u32 7, %s15
      %p212 = scmp.lt.s32.totalorder %s211, 13
      %s213 = scalar_select %p212, %s211, 13
      %s214 = smul.addr %s213, 8
      %s215 = scalar_lea.vmem %s1, %s214
      %s216 = smul.u32 7, %s15
      %s217 = smul.u32 7, %s15
      %p218 = scmp.lt.s32.totalorder %s217, 13
      %s219 = scalar_select %p218, %s217, 13
      %s220 = smul.addr %s219, 8
      %s221 = scalar_lea.vmem %s4, %s220
      %s222 = smul.u32 7, %s15
      %v223 = vld [vmem:[%s2] sm:$0xff]
      %v224 = vld [vmem:[%s209] sm:$0xff]
      %v225 = vld [vmem:[%s209 + $0x8] sm:$0xff]
      %v226 = vld [vmem:[%s209 + $0x10] sm:$0xff]
      %v227 = vld [vmem:[%s209 + $0x18] sm:$0xff]
      %v228 = vld [vmem:[%s209 + $0x20] sm:$0xff]
      %v229 = vld [vmem:[%s209 + $0x28] sm:$0xff]
      %v230 = vld [vmem:[%s209 + $0x30] sm:$0xff]
      %vm231 = vcmask 64512
      %v233 = vsel %vm231, %v223, 0
      %235 = vmatprep.subr.mxu0 %v225
      %236 = vmatpush1.msra.mxu0 %v224
      %237 = vmatprep.subr.mxu0 0.0
      %238 = vmatpush1.msra.mxu0 0.0
      %239 = vmatprep.subr.mxu0 0.0
      %240 = vmatpush1.msra.mxu0 0.0
      %241 = vmatprep.subr.mxu0 0.0
      %242 = vmatpush1.msra.mxu0 0.0
      %243 = vmatprep.subr.mxu0 0.0
      %244 = vmatpush1.msra.mxu0 0.0
      %245 = vmatprep.subr.mxu0 0.0
      %246 = vmatpush1.msra.mxu0 0.0
      %247 = vmatprep.subr.mxu0 0.0
      %248 = vmatpush1.msra.mxu0 0.0
      %249 = vmatprep.subr.mxu0 0.0
      %250 = vmatpush1.msra.mxu0 0.0
      %251 = vmatprep.subr.mxu0 0.0
      %252 = vmatpush1.msra.mxu0 0.0
      %253 = vmatprep.subr.mxu0 0.0
      %254 = vmatpush1.msra.mxu0 0.0
      %255 = vmatprep.subr.mxu0 0.0
      %256 = vmatpush1.msra.mxu0 0.0
      %257 = vmatprep.subr.mxu0 0.0
      %258 = vmatpush1.msra.mxu0 0.0
      %259 = vmatprep.subr.mxu0 0.0
      %260 = vmatpush1.msra.mxu0 0.0
      %261 = vmatprep.subr.mxu0 0.0
      %262 = vmatpush1.msra.mxu0 0.0
      %263 = vmatprep.subr.mxu0 0.0
      %264 = vmatpush1.msra.mxu0 0.0
      %265 = vmatprep.subr.mxu0 0.0
      %266 = vmatpush1.msra.mxu0 0.0
      %267 = vmatprep.subr.mxu0 0.0
      %268 = vmatpush1.msra.mxu0 0.0
      %269 = vmatprep.subr.mxu0 0.0
      %270 = vmatpush1.msra.mxu0 0.0
      %271 = vmatprep.subr.mxu0 0.0
      %272 = vmatpush1.msra.mxu0 0.0
      %273 = vmatprep.subr.mxu0 0.0
      %274 = vmatpush1.msra.mxu0 0.0
      %275 = vmatprep.subr.mxu0 0.0
      %276 = vmatpush1.msra.mxu0 0.0
      %277 = vmatprep.subr.mxu0 0.0
      %278 = vmatpush1.msra.mxu0 0.0
      %279 = vmatprep.subr.mxu0 0.0
      %280 = vmatpush1.msra.mxu0 0.0
      %281 = vmatprep.subr.mxu0 0.0
      %282 = vmatpush1.msra.mxu0 0.0
      %283 = vmatprep.subr.mxu0 0.0
      %284 = vmatpush1.msra.mxu0 0.0
      %285 = vmatprep.subr.mxu0 0.0
      %286 = vmatpush1.msra.mxu0 0.0
      %287 = vmatprep.subr.mxu0 0.0
      %288 = vmatpush1.msra.mxu0 0.0
      %289 = vmatprep.subr.mxu0 0.0
      %290 = vmatpush1.msra.mxu0 0.0
      %291 = vmatprep.subr.mxu0 0.0
      %292 = vmatpush1.msra.mxu0 0.0
      %293 = vmatprep.subr.mxu0 0.0
      %294 = vmatpush1.msra.mxu0 0.0
      %295 = vmatprep.subr.mxu0 0.0
      %296 = vmatpush1.msra.mxu0 0.0
      %297 = vmatprep.subr.mxu0 0.0
      %298 = vmatpush1.msra.mxu0 0.0
      %299 = vmatprep.mubr.f32.mxu0 0.0
      %300 = vmatmul.mubr.f32.gmra.mrb[0].mxu0 %v233
      %v301 = vpop.f32.mrb[0].mxu0
      %v302 = vadd.f32 0.0, %v301
      %v303 = vpop.f32.mrb[0].mxu0
      %v304 = vadd.f32 0.0, %v303
      %305 = vdwg.mxu0
      %306 = vmatprep.subr.mxu0 %v227
      %307 = vmatpush1.msra.mxu0 %v226
      %308 = vmatprep.subr.mxu0 0.0
      %309 = vmatpush1.msra.mxu0 0.0
      %310 = vmatprep.subr.mxu0 0.0
      %311 = vmatpush1.msra.mxu0 0.0
      %312 = vmatprep.subr.mxu0 0.0
      %313 = vmatpush1.msra.mxu0 0.0
      %314 = vmatprep.subr.mxu0 0.0
      %315 = vmatpush1.msra.mxu0 0.0
      %316 = vmatprep.subr.mxu0 0.0
      %317 = vmatpush1.msra.mxu0 0.0
      %318 = vmatprep.subr.mxu0 0.0
      %319 = vmatpush1.msra.mxu0 0.0
      %320 = vmatprep.subr.mxu0 0.0
      %321 = vmatpush1.msra.mxu0 0.0
      %322 = vmatprep.subr.mxu0 0.0
      %323 = vmatpush1.msra.mxu0 0.0
      %324 = vmatprep.subr.mxu0 0.0
      %325 = vmatpush1.msra.mxu0 0.0
      %326 = vmatprep.subr.mxu0 0.0
      %327 = vmatpush1.msra.mxu0 0.0
      %328 = vmatprep.subr.mxu0 0.0
      %329 = vmatpush1.msra.mxu0 0.0
      %330 = vmatprep.subr.mxu0 0.0
      %331 = vmatpush1.msra.mxu0 0.0
      %332 = vmatprep.subr.mxu0 0.0
      %333 = vmatpush1.msra.mxu0 0.0
      %334 = vmatprep.subr.mxu0 0.0
      %335 = vmatpush1.msra.mxu0 0.0
      %336 = vmatprep.subr.mxu0 0.0
      %337 = vmatpush1.msra.mxu0 0.0
      %338 = vmatprep.subr.mxu0 0.0
      %339 = vmatpush1.msra.mxu0 0.0
      %340 = vmatprep.subr.mxu0 0.0
      %341 = vmatpush1.msra.mxu0 0.0
      %342 = vmatprep.subr.mxu0 0.0
      %343 = vmatpush1.msra.mxu0 0.0
      %344 = vmatprep.subr.mxu0 0.0
      %345 = vmatpush1.msra.mxu0 0.0
      %346 = vmatprep.subr.mxu0 0.0
      %347 = vmatpush1.msra.mxu0 0.0
      %348 = vmatprep.subr.mxu0 0.0
      %349 = vmatpush1.msra.mxu0 0.0
      %350 = vmatprep.subr.mxu0 0.0
      %351 = vmatpush1.msra.mxu0 0.0
      %352 = vmatprep.subr.mxu0 0.0
      %353 = vmatpush1.msra.mxu0 0.0
      %354 = vmatprep.subr.mxu0 0.0
      %355 = vmatpush1.msra.mxu0 0.0
      %356 = vmatprep.subr.mxu0 0.0
      %357 = vmatpush1.msra.mxu0 0.0
      %358 = vmatprep.subr.mxu0 0.0
      %359 = vmatpush1.msra.mxu0 0.0
      %360 = vmatprep.subr.mxu0 0.0
      %361 = vmatpush1.msra.mxu0 0.0
      %362 = vmatprep.subr.mxu0 0.0
      %363 = vmatpush1.msra.mxu0 0.0
      %364 = vmatprep.subr.mxu0 0.0
      %365 = vmatpush1.msra.mxu0 0.0
      %366 = vmatprep.subr.mxu0 0.0
      %367 = vmatpush1.msra.mxu0 0.0
      %368 = vmatprep.subr.mxu0 0.0
      %369 = vmatpush1.msra.mxu0 0.0
      %370 = vmatprep.mubr.f32.mxu0 0.0
      %371 = vmatmul.mubr.f32.gmra.mrb[0].mxu0 %v233
      %v372 = vpop.f32.mrb[0].mxu0
      %v373 = vadd.f32 0.0, %v372
      %v374 = vpop.f32.mrb[0].mxu0
      %v375 = vadd.f32 0.0, %v374
      %376 = vdwg.mxu0
      %377 = vmatprep.subr.mxu0 %v229
      %378 = vmatpush1.msra.mxu0 %v228
      %379 = vmatprep.subr.mxu0 0.0
      %380 = vmatpush1.msra.mxu0 0.0
      %381 = vmatprep.subr.mxu0 0.0
      %382 = vmatpush1.msra.mxu0 0.0
      %383 = vmatprep.subr.mxu0 0.0
      %384 = vmatpush1.msra.mxu0 0.0
      %385 = vmatprep.subr.mxu0 0.0
      %386 = vmatpush1.msra.mxu0 0.0
      %387 = vmatprep.subr.mxu0 0.0
      %388 = vmatpush1.msra.mxu0 0.0
      %389 = vmatprep.subr.mxu0 0.0
      %390 = vmatpush1.msra.mxu0 0.0
      %391 = vmatprep.subr.mxu0 0.0
      %392 = vmatpush1.msra.mxu0 0.0
      %393 = vmatprep.subr.mxu0 0.0
      %394 = vmatpush1.msra.mxu0 0.0
      %395 = vmatprep.subr.mxu0 0.0
      %396 = vmatpush1.msra.mxu0 0.0
      %397 = vmatprep.subr.mxu0 0.0
      %398 = vmatpush1.msra.mxu0 0.0
      %399 = vmatprep.subr.mxu0 0.0
      %400 = vmatpush1.msra.mxu0 0.0
      %401 = vmatprep.subr.mxu0 0.0
      %402 = vmatpush1.msra.mxu0 0.0
      %403 = vmatprep.subr.mxu0 0.0
      %404 = vmatpush1.msra.mxu0 0.0
      %405 = vmatprep.subr.mxu0 0.0
      %406 = vmatpush1.msra.mxu0 0.0
      %407 = vmatprep.subr.mxu0 0.0
      %408 = vmatpush1.msra.mxu0 0.0
      %409 = vmatprep.subr.mxu0 0.0
      %410 = vmatpush1.msra.mxu0 0.0
      %411 = vmatprep.subr.mxu0 0.0
      %412 = vmatpush1.msra.mxu0 0.0
      %413 = vmatprep.subr.mxu0 0.0
      %414 = vmatpush1.msra.mxu0 0.0
      %415 = vmatprep.subr.mxu0 0.0
      %416 = vmatpush1.msra.mxu0 0.0
      %417 = vmatprep.subr.mxu0 0.0
      %418 = vmatpush1.msra.mxu0 0.0
      %419 = vmatprep.subr.mxu0 0.0
      %420 = vmatpush1.msra.mxu0 0.0
      %421 = vmatprep.subr.mxu0 0.0
      %422 = vmatpush1.msra.mxu0 0.0
      %423 = vmatprep.subr.mxu0 0.0
      %424 = vmatpush1.msra.mxu0 0.0
      %425 = vmatprep.subr.mxu0 0.0
      %426 = vmatpush1.msra.mxu0 0.0
      %427 = vmatprep.subr.mxu0 0.0
      %428 = vmatpush1.msra.mxu0 0.0
      %429 = vmatprep.subr.mxu0 0.0
      %430 = vmatpush1.msra.mxu0 0.0
      %431 = vmatprep.subr.mxu0 0.0
      %432 = vmatpush1.msra.mxu0 0.0
      %433 = vmatprep.subr.mxu0 0.0
      %434 = vmatpush1.msra.mxu0 0.0
      %435 = vmatprep.subr.mxu0 0.0
      %436 = vmatpush1.msra.mxu0 0.0
      %437 = vmatprep.subr.mxu0 0.0
      %438 = vmatpush1.msra.mxu0 0.0
      %439 = vmatprep.subr.mxu0 0.0
      %440 = vmatpush1.msra.mxu0 0.0
      %441 = vmatprep.mubr.f32.mxu0 0.0
      %442 = vmatmul.mubr.f32.gmra.mrb[0].mxu0 %v233
      %v443 = vpop.f32.mrb[0].mxu0
      %v444 = vadd.f32 0.0, %v443
      %v445 = vpop.f32.mrb[0].mxu0
      %v446 = vadd.f32 0.0, %v445
      %447 = vdwg.mxu0
      %448 = vmatprep.subr.mxu0 0.0
      %449 = vmatpush1.msra.mxu0 %v230
      %450 = vmatprep.subr.mxu0 0.0
      %451 = vmatpush1.msra.mxu0 0.0
      %452 = vmatprep.subr.mxu0 0.0
      %453 = vmatpush1.msra.mxu0 0.0
      %454 = vmatprep.subr.mxu0 0.0
      %455 = vmatpush1.msra.mxu0 0.0
      %456 = vmatprep.subr.mxu0 0.0
      %457 = vmatpush1.msra.mxu0 0.0
      %458 = vmatprep.subr.mxu0 0.0
      %459 = vmatpush1.msra.mxu0 0.0
      %460 = vmatprep.subr.mxu0 0.0
      %461 = vmatpush1.msra.mxu0 0.0
      %462 = vmatprep.subr.mxu0 0.0
      %463 = vmatpush1.msra.mxu0 0.0
      %464 = vmatprep.subr.mxu0 0.0
      %465 = vmatpush1.msra.mxu0 0.0
      %466 = vmatprep.subr.mxu0 0.0
      %467 = vmatpush1.msra.mxu0 0.0
      %468 = vmatprep.subr.mxu0 0.0
      %469 = vmatpush1.msra.mxu0 0.0
      %470 = vmatprep.subr.mxu0 0.0
      %471 = vmatpush1.msra.mxu0 0.0
      %472 = vmatprep.subr.mxu0 0.0
      %473 = vmatpush1.msra.mxu0 0.0
      %474 = vmatprep.subr.mxu0 0.0
      %475 = vmatpush1.msra.mxu0 0.0
      %476 = vmatprep.subr.mxu0 0.0
      %477 = vmatpush1.msra.mxu0 0.0
      %478 = vmatprep.subr.mxu0 0.0
      %479 = vmatpush1.msra.mxu0 0.0
      %480 = vmatprep.subr.mxu0 0.0
      %481 = vmatpush1.msra.mxu0 0.0
      %482 = vmatprep.subr.mxu0 0.0
      %483 = vmatpush1.msra.mxu0 0.0
      %484 = vmatprep.subr.mxu0 0.0
      %485 = vmatpush1.msra.mxu0 0.0
      %486 = vmatprep.subr.mxu0 0.0
      %487 = vmatpush1.msra.mxu0 0.0
      %488 = vmatprep.subr.mxu0 0.0
      %489 = vmatpush1.msra.mxu0 0.0
      %490 = vmatprep.subr.mxu0 0.0
      %491 = vmatpush1.msra.mxu0 0.0
      %492 = vmatprep.subr.mxu0 0.0
      %493 = vmatpush1.msra.mxu0 0.0
      %494 = vmatprep.subr.mxu0 0.0
      %495 = vmatpush1.msra.mxu0 0.0
      %496 = vmatprep.subr.mxu0 0.0
      %497 = vmatpush1.msra.mxu0 0.0
      %498 = vmatprep.subr.mxu0 0.0
      %499 = vmatpush1.msra.mxu0 0.0
      %500 = vmatprep.subr.mxu0 0.0
      %501 = vmatpush1.msra.mxu0 0.0
      %502 = vmatprep.subr.mxu0 0.0
      %503 = vmatpush1.msra.mxu0 0.0
      %504 = vmatprep.subr.mxu0 0.0
      %505 = vmatpush1.msra.mxu0 0.0
      %506 = vmatprep.subr.mxu0 0.0
      %507 = vmatpush1.msra.mxu0 0.0
      %508 = vmatprep.subr.mxu0 0.0
      %509 = vmatpush1.msra.mxu0 0.0
      %510 = vmatprep.subr.mxu0 0.0
      %511 = vmatpush1.msra.mxu0 0.0
      %512 = vmatprep.mubr.f32.mxu0 0.0
      %513 = vmatmul.mubr.f32.gmra.mrb[0].mxu0 %v233
      %v514 = vpop.f32.mrb[0].mxu0
      %v515 = vadd.f32 0.0, %v514
      %v516 = vpop.f32.mrb[0].mxu0
      %517 = vdwg.mxu0
      %v518 = vld [vmem:[%s215] sm:$0xff]
      %v519 = vld [vmem:[%s215 + $0x8] sm:$0xff]
      %v520 = vld [vmem:[%s215 + $0x10] sm:$0xff]
      %v521 = vld [vmem:[%s215 + $0x18] sm:$0xff]
      %v522 = vld [vmem:[%s215 + $0x20] sm:$0xff]
      %v523 = vld [vmem:[%s215 + $0x28] sm:$0xff]
      %v524 = vld [vmem:[%s215 + $0x30] sm:$0xff]
      %v525 = vadd.f32 %v518, %v302
      %v526 = vadd.f32 %v519, %v304
      %v527 = vadd.f32 %v520, %v373
      %v528 = vadd.f32 %v521, %v375
      %v529 = vadd.f32 %v522, %v444
      %v530 = vadd.f32 %v523, %v446
      %v531 = vadd.f32 %v524, %v515
      %v532 = vld [vmem:[%s3] sm:$0xff]
      %534 = vset.pattern.permute.xlu0 0
      %535 = vperm.xlu0 %534, %v532
      %v536 = vpop.permute.xlu0 %535
      %v538 = vadd.f32 %v525, %v536
      %v539 = vadd.f32 %v526, %v536
      %v540 = vadd.f32 %v527, %v536
      %v541 = vadd.f32 %v528, %v536
      %v542 = vadd.f32 %v529, %v536
      %v543 = vadd.f32 %v530, %v536
      %v544 = vadd.f32 %v531, %v536
      %v545 = vmul.f32 %v538, 0.5
      %v546 = vmul.f32 %v539, 0.5
      %v547 = vmul.f32 %v540, 0.5
      %v548 = vmul.f32 %v541, 0.5
      %v549 = vmul.f32 %v542, 0.5
      %v550 = vmul.f32 %v543, 0.5
      %v551 = vmul.f32 %v544, 0.5
      %v552 = vmul.f32 %v538, 0.70710677
      %v553 = vmul.f32 %v539, 0.70710677
      %v554 = vmul.f32 %v540, 0.70710677
      %v555 = vmul.f32 %v541, 0.70710677
      %v556 = vmul.f32 %v542, 0.70710677
      %v557 = vmul.f32 %v543, 0.70710677
      %v558 = vmul.f32 %v544, 0.70710677
      %v559 = verf.f32.pop %v552
      %v560 = verf.f32.pop %v553
      %v561 = verf.f32.pop %v554
      %v562 = verf.f32.pop %v555
      %v563 = verf.f32.pop %v556
      %v564 = verf.f32.pop %v557
      %v565 = verf.f32.pop %v558
      %v566 = vadd.f32 %v559, 1.0
      %v567 = vadd.f32 %v560, 1.0
      %v568 = vadd.f32 %v561, 1.0
      %v569 = vadd.f32 %v562, 1.0
      %v570 = vadd.f32 %v563, 1.0
      %v571 = vadd.f32 %v564, 1.0
      %v572 = vadd.f32 %v565, 1.0
      %v573 = vmul.f32 %v545, %v566
      %v574 = vmul.f32 %v546, %v567
      %v575 = vmul.f32 %v547, %v568
      %v576 = vmul.f32 %v548, %v569
      %v577 = vmul.f32 %v549, %v570
      %v578 = vmul.f32 %v550, %v571
      %v579 = vmul.f32 %v551, %v572
      %580 = vst [vmem:[%s221] sm:$0xff] %v573
      %581 = vst [vmem:[%s221 + $0x8] sm:$0xff] %v574
      %582 = vst [vmem:[%s221 + $0x10] sm:$0xff] %v575
      %583 = vst [vmem:[%s221 + $0x18] sm:$0xff] %v576
      %584 = vst [vmem:[%s221 + $0x20] sm:$0xff] %v577
      %585 = vst [vmem:[%s221 + $0x28] sm:$0xff] %v578
      %586 = vst [vmem:[%s221 + $0x30] sm:$0xff] %v579
      %s587 = smul.u32 7, %s15
      %p588 = scmp.lt.s32.totalorder %s587, 13
      %s589 = scalar_select %p588, %s587, 13
      %s590 = smul.addr %s589, 8
      %s591 = scalar_lea.vmem %s4, %s590
      // Predicated region
      $region37: #{fno3d_forward.12} parent=35 // pred_check
        %p592 = pneg %p127
      $region38: #{fno3d_forward.12} parent=35 // pred_check_branch
        %594 = sbr.rel (%p592) target = $region40
      $region39: #{fno3d_forward.12} parent=35 // pred_region
        %s595 = smul.u32 7, %s15
      $region40: #{fno3d_forward.12} parent=35 // pred_fallthru
        _
    $region36: #{fno3d_forward.12} parent=5 // pred_fallthru
      _
    %p596 = scmp.le.s32.totalorder 2, %s10
    // Predicated region
    $region41: #{fno3d_forward.12} parent=5 // pred_check
      %p597 = pneg %p596
    $region42: #{fno3d_forward.12} parent=5 // pred_check_branch
      %599 = sbr.rel (%p597) target = $region44
    $region43: #{fno3d_forward.12} parent=5 // pred_region
      %s600 = ssub.s32 %s10, 2
      // Predicated region
      $region45: #{fno3d_forward.12} parent=43 // pred_check
        %p601 = pneg %p133
      $region46: #{fno3d_forward.12} parent=43 // pred_check_branch
        %603 = sbr.rel (%p601) target = $region48
      $region47: #{fno3d_forward.12} parent=43 // pred_region
        %s604 = smul.u32 7, %s16
        %p605 = scmp.lt.s32.totalorder %s604, 13
        %s606 = scalar_select %p605, %s604, 13
        %s607 = smul.addr %s606, 8
        %s608 = scalar_lea.vmem %s4, %s607
      $region48: #{fno3d_forward.12} parent=43 // pred_fallthru
        _
    $region44: #{fno3d_forward.12} parent=5 // pred_fallthru
      _
  $region6: #{fno3d_forward.12} parent=0 // loop_footer
    %s14 = sadd.s32 1, %s10
  $region7: #{fno3d_forward.12} parent=0 // loop_footer_branch
    %9 = sbr.rel target = $region3
  $region8: #{fno3d_forward.12} parent=0 // loop_exit
    _

// kernel: fno3d_forward.18
$region0: #{fno3d_forward.18}
  #allocation0 [shape = 'u32[]', space=smem, size = 0x4, offset = 0x4, fixed_abs, tag = 'smem constant byte address 0x4 - core index']
  #allocation1 [shape = 'u32[144,128]{1,0:T(1,128)}', space=vmem, size = 0x12000, scoped, tag = 'internal scratch']
  %s0 = inlined_call_operand.vmem [shape: f32[8,1792], index: 0, kind: input, shape index: {}, may-alias: {0,4}]
  %s1 = inlined_call_operand.vmem [shape: f32[8,1792], index: 1, kind: input, shape index: {}]
  %s2 = inlined_call_operand.vmem [shape: f32[8,8], index: 2, kind: input, shape index: {}]
  %s3 = inlined_call_operand.vmem [shape: f32[8,1], index: 3, kind: input, shape index: {}]
  %s4 = inlined_call_operand.vmem [shape: f32[8,1792], index: 4, kind: output, shape index: {}, may-alias: {0,4}]
  %s5 = sld [smem:[#allocation0]]
  $region49: #{fno3d_forward.18} parent=0
    _
  %s7 = ssub.s32 1, %s5
  %s8 = scalar_select 0, %s7, %s5
  loop: start=0, step=1, limit=4
  $region2: #{fno3d_forward.18} parent=0 // loop_pre_header
    _
  $region3: #{fno3d_forward.18} parent=0 // loop_header
    %s10 = sphi 0, %s14
    %p11 = scmp.ge.s32.totalorder %s10, 4
    %s20 = sphi 0, %s22
    %s23 = sphi 0, %s20
    %s24 = sphi 0, %s23
    %s40 = sphi 0, %s24
    %s46 = sphi 0, %s48
    %s49 = sphi 0, %s46
    %s50 = sphi 0, %s49
    %s66 = sphi 0, %s50
    %s70 = sphi 0, %s70
    %s72 = sphi 0, %s70
    %s73 = sphi 0, %s72
    %s87 = sphi 0, %s73
    %s91 = sphi 0, %s91
    %s93 = sphi 0, %s91
    %s94 = sphi 0, %s93
    %s108 = sphi 0, %s94
    %s114 = sphi 0, %s116
    %s117 = sphi 0, %s114
    %s118 = sphi 0, %s117
    %s134 = sphi 0, %s118
  $region4: #{fno3d_forward.18} parent=0 // loop_header_branch
    %13 = sbr.rel (%p11) target = $region8
  $region5: #{fno3d_forward.18} parent=0 // loop_body
    %s15 = ssub.s32 %s10, 1
    %s16 = ssub.s32 %s10, 2
    %s17 = sadd.s32 %s10, 1
    %s18 = ssub.s32 %s10, %s17
    %p19 = scmp.eq.s32.totalorder %s18, 0
    %s21 = sadd.s32 %s20, 1
    %s22 = scalar_select %p19, %s20, %s21
    %p25 = pneg %p19
    %p26 = scmp.eq.s32.totalorder %s10, 1
    %p27 = por %p25, %p26
    %p28 = scmp.ne.s32.totalorder %s20, %s23
    %p29 = scmp.eq.s32.totalorder %s10, 0
    %p30 = por %p28, %p29
    %p31 = scmp.ne.s32.totalorder %s20, %s23
    %p32 = scmp.eq.s32.totalorder %s15, 1
    %p33 = por %p31, %p32
    %p34 = scmp.ne.s32.totalorder %s23, %s24
    %p35 = scmp.eq.s32.totalorder %s15, 0
    %p36 = por %p34, %p35
    %p37 = scmp.ne.s32.totalorder %s23, %s24
    %p38 = scmp.eq.s32.totalorder %s16, 1
    %p39 = por %p37, %p38
    %p41 = scmp.ne.s32.totalorder %s24, %s40
    %p42 = scmp.eq.s32.totalorder %s16, 0
    %p43 = por %p41, %p42
    %s44 = ssub.s32 %s10, %s17
    %p45 = scmp.eq.s32.totalorder %s44, 0
    %s47 = sadd.s32 %s46, 1
    %s48 = scalar_select %p45, %s46, %s47
    %p51 = pneg %p45
    %p52 = scmp.eq.s32.totalorder %s10, 1
    %p53 = por %p51, %p52
    %p54 = scmp.ne.s32.totalorder %s46, %s49
    %p55 = scmp.eq.s32.totalorder %s10, 0
    %p56 = por %p54, %p55
    %p57 = scmp.ne.s32.totalorder %s46, %s49
    %p58 = scmp.eq.s32.totalorder %s15, 1
    %p59 = por %p57, %p58
    %p60 = scmp.ne.s32.totalorder %s49, %s50
    %p61 = scmp.eq.s32.totalorder %s15, 0
    %p62 = por %p60, %p61
    %p63 = scmp.ne.s32.totalorder %s49, %s50
    %p64 = scmp.eq.s32.totalorder %s16, 1
    %p65 = por %p63, %p64
    %p67 = scmp.ne.s32.totalorder %s50, %s66
    %p68 = scmp.eq.s32.totalorder %s16, 0
    %p69 = por %p67, %p68
    %s71 = sadd.s32 %s70, 1
    %p74 = scmp.eq.s32.totalorder %s10, 1
    %p75 = scmp.ne.s32.totalorder %s70, %s72
    %p76 = scmp.eq.s32.totalorder %s10, 0
    %p77 = por %p75, %p76
    %p78 = scmp.ne.s32.totalorder %s70, %s72
    %p79 = scmp.eq.s32.totalorder %s15, 1
    %p80 = por %p78, %p79
    %p81 = scmp.ne.s32.totalorder %s72, %s73
    %p82 = scmp.eq.s32.totalorder %s15, 0
    %p83 = por %p81, %p82
    %p84 = scmp.ne.s32.totalorder %s72, %s73
    %p85 = scmp.eq.s32.totalorder %s16, 1
    %p86 = por %p84, %p85
    %p88 = scmp.ne.s32.totalorder %s73, %s87
    %p89 = scmp.eq.s32.totalorder %s16, 0
    %p90 = por %p88, %p89
    %s92 = sadd.s32 %s91, 1
    %p95 = scmp.eq.s32.totalorder %s10, 1
    %p96 = scmp.ne.s32.totalorder %s91, %s93
    %p97 = scmp.eq.s32.totalorder %s10, 0
    %p98 = por %p96, %p97
    %p99 = scmp.ne.s32.totalorder %s91, %s93
    %p100 = scmp.eq.s32.totalorder %s15, 1
    %p101 = por %p99, %p100
    %p102 = scmp.ne.s32.totalorder %s93, %s94
    %p103 = scmp.eq.s32.totalorder %s15, 0
    %p104 = por %p102, %p103
    %p105 = scmp.ne.s32.totalorder %s93, %s94
    %p106 = scmp.eq.s32.totalorder %s16, 1
    %p107 = por %p105, %p106
    %p109 = scmp.ne.s32.totalorder %s94, %s108
    %p110 = scmp.eq.s32.totalorder %s16, 0
    %p111 = por %p109, %p110
    %s112 = ssub.s32 %s10, %s17
    %p113 = scmp.eq.s32.totalorder %s112, 0
    %s115 = sadd.s32 %s114, 1
    %s116 = scalar_select %p113, %s114, %s115
    %p119 = pneg %p113
    %p120 = scmp.eq.s32.totalorder %s10, 1
    %p121 = por %p119, %p120
    %p122 = scmp.ne.s32.totalorder %s114, %s117
    %p123 = scmp.eq.s32.totalorder %s10, 0
    %p124 = por %p122, %p123
    %p125 = scmp.ne.s32.totalorder %s114, %s117
    %p126 = scmp.eq.s32.totalorder %s15, 1
    %p127 = por %p125, %p126
    %p128 = scmp.ne.s32.totalorder %s117, %s118
    %p129 = scmp.eq.s32.totalorder %s15, 0
    %p130 = por %p128, %p129
    %p131 = scmp.ne.s32.totalorder %s117, %s118
    %p132 = scmp.eq.s32.totalorder %s16, 1
    %p133 = por %p131, %p132
    %p135 = scmp.ne.s32.totalorder %s118, %s134
    %p136 = scmp.eq.s32.totalorder %s16, 0
    %p137 = por %p135, %p136
    %p138 = scmp.le.s32.totalorder 1, %s10
    %p139 = scmp.lt.s32.totalorder %s10, 3
    %p140 = pnand %p138, %p139
    %p141 = pneg %p140
    // Predicated region
    $region9: #{fno3d_forward.18} parent=5 // pred_check
      _
    $region10: #{fno3d_forward.18} parent=5 // pred_check_branch
      %143 = sbr.rel (%p140) target = $region12
    $region11: #{fno3d_forward.18} parent=5 // pred_region
      %s144 = ssub.s32 %s10, 1
      // Predicated region
      $region13: #{fno3d_forward.18} parent=11 // pred_check
        %p145 = pneg %p83
      $region14: #{fno3d_forward.18} parent=11 // pred_check_branch
        %147 = sbr.rel (%p145) target = $region16
      $region15: #{fno3d_forward.18} parent=11 // pred_region
        _
      $region16: #{fno3d_forward.18} parent=11 // pred_fallthru
        _
      // Predicated region
      $region17: #{fno3d_forward.18} parent=11 // pred_check
        %p148 = pneg %p104
      $region18: #{fno3d_forward.18} parent=11 // pred_check_branch
        %150 = sbr.rel (%p148) target = $region20
      $region19: #{fno3d_forward.18} parent=11 // pred_region
        _
      $region20: #{fno3d_forward.18} parent=11 // pred_fallthru
        _
    $region12: #{fno3d_forward.18} parent=5 // pred_fallthru
      _
    %p151 = scmp.lt.s32.totalorder %s10, 2
    // Predicated region
    $region21: #{fno3d_forward.18} parent=5 // pred_check
      %p152 = pneg %p151
    $region22: #{fno3d_forward.18} parent=5 // pred_check_branch
      %154 = sbr.rel (%p152) target = $region24
    $region23: #{fno3d_forward.18} parent=5 // pred_region
      // Predicated region
      $region25: #{fno3d_forward.18} parent=23 // pred_check
        %p155 = pneg %p30
      $region26: #{fno3d_forward.18} parent=23 // pred_check_branch
        %157 = sbr.rel (%p155) target = $region28
      $region27: #{fno3d_forward.18} parent=23 // pred_region
        %s158 = smul.u32 7, %s10
        %p159 = scmp.lt.s32.totalorder %s158, 13
        %s160 = scalar_select %p159, %s158, 13
        %s161 = smul.addr %s160, 8
        %s162 = scalar_lea.vmem %s0, %s161
        %s163 = smul.u32 7, %s10
      $region28: #{fno3d_forward.18} parent=23 // pred_fallthru
        _
      // Predicated region
      $region29: #{fno3d_forward.18} parent=23 // pred_check
        %p164 = pneg %p56
      $region30: #{fno3d_forward.18} parent=23 // pred_check_branch
        %166 = sbr.rel (%p164) target = $region32
      $region31: #{fno3d_forward.18} parent=23 // pred_region
        %s167 = smul.u32 7, %s10
        %p168 = scmp.lt.s32.totalorder %s167, 13
        %s169 = scalar_select %p168, %s167, 13
        %s170 = smul.addr %s169, 8
        %s171 = scalar_lea.vmem %s1, %s170
        %s172 = smul.u32 7, %s10
      $region32: #{fno3d_forward.18} parent=23 // pred_fallthru
        _
    $region24: #{fno3d_forward.18} parent=5 // pred_fallthru
      _
    %p173 = scmp.le.s32.totalorder 1, %s10
    %p174 = scmp.lt.s32.totalorder %s10, 3
    %p175 = pnand %p173, %p174
    %p176 = pneg %p175
    // Predicated region
    $region33: #{fno3d_forward.18} parent=5 // pred_check
      _
    $region34: #{fno3d_forward.18} parent=5 // pred_check_branch
      %178 = sbr.rel (%p175) target = $region36
    $region35: #{fno3d_forward.18} parent=5 // pred_region
      %s179 = ssub.s32 %s10, 1
      %s180 = smul.u32 7, %s15
      %p181 = scmp.lt.s32.totalorder %s180, 13
      %s182 = scalar_select %p181, %s180, 13
      %s183 = smul.addr %s182, 8
      %s184 = scalar_lea.vmem %s0, %s183
      %p185 = pneg %p36
      %p186 = pneg %p33
      %s187 = smul.u32 7, %s15
      %p188 = scmp.lt.s32.totalorder %s187, 13
      %s189 = scalar_select %p188, %s187, 13
      %s190 = smul.addr %s189, 8
      %s191 = scalar_lea.vmem %s1, %s190
      %p192 = pneg %p62
      %p193 = pneg %p59
      %p194 = pneg %p83
      %p195 = pneg %p80
      %p196 = pneg %p104
      %p197 = pneg %p101
      %p198 = pneg %p130
      %p199 = pneg %p127
      %s200 = smul.u32 7, %s15
      %p201 = scmp.lt.s32.totalorder %s200, 13
      %s202 = scalar_select %p201, %s200, 13
      %s203 = smul.addr %s202, 8
      %s204 = scalar_lea.vmem %s4, %s203
      %s205 = smul.u32 7, %s15
      %p206 = scmp.lt.s32.totalorder %s205, 13
      %s207 = scalar_select %p206, %s205, 13
      %s208 = smul.addr %s207, 8
      %s209 = scalar_lea.vmem %s0, %s208
      %s210 = smul.u32 7, %s15
      %s211 = smul.u32 7, %s15
      %p212 = scmp.lt.s32.totalorder %s211, 13
      %s213 = scalar_select %p212, %s211, 13
      %s214 = smul.addr %s213, 8
      %s215 = scalar_lea.vmem %s1, %s214
      %s216 = smul.u32 7, %s15
      %s217 = smul.u32 7, %s15
      %p218 = scmp.lt.s32.totalorder %s217, 13
      %s219 = scalar_select %p218, %s217, 13
      %s220 = smul.addr %s219, 8
      %s221 = scalar_lea.vmem %s4, %s220
      %s222 = smul.u32 7, %s15
      %v223 = vld [vmem:[%s2] sm:$0xff]
      %v224 = vld [vmem:[%s209] sm:$0xff]
      %v225 = vld [vmem:[%s209 + $0x8] sm:$0xff]
      %v226 = vld [vmem:[%s209 + $0x10] sm:$0xff]
      %v227 = vld [vmem:[%s209 + $0x18] sm:$0xff]
      %v228 = vld [vmem:[%s209 + $0x20] sm:$0xff]
      %v229 = vld [vmem:[%s209 + $0x28] sm:$0xff]
      %v230 = vld [vmem:[%s209 + $0x30] sm:$0xff]
      %vm231 = vcmask 64512
      %v233 = vsel %vm231, %v223, 0
      %235 = vmatprep.subr.mxu0 %v225
      %236 = vmatpush1.msra.mxu0 %v224
      %237 = vmatprep.subr.mxu0 0.0
      %238 = vmatpush1.msra.mxu0 0.0
      %239 = vmatprep.subr.mxu0 0.0
      %240 = vmatpush1.msra.mxu0 0.0
      %241 = vmatprep.subr.mxu0 0.0
      %242 = vmatpush1.msra.mxu0 0.0
      %243 = vmatprep.subr.mxu0 0.0
      %244 = vmatpush1.msra.mxu0 0.0
      %245 = vmatprep.subr.mxu0 0.0
      %246 = vmatpush1.msra.mxu0 0.0
      %247 = vmatprep.subr.mxu0 0.0
      %248 = vmatpush1.msra.mxu0 0.0
      %249 = vmatprep.subr.mxu0 0.0
      %250 = vmatpush1.msra.mxu0 0.0
      %251 = vmatprep.subr.mxu0 0.0
      %252 = vmatpush1.msra.mxu0 0.0
      %253 = vmatprep.subr.mxu0 0.0
      %254 = vmatpush1.msra.mxu0 0.0
      %255 = vmatprep.subr.mxu0 0.0
      %256 = vmatpush1.msra.mxu0 0.0
      %257 = vmatprep.subr.mxu0 0.0
      %258 = vmatpush1.msra.mxu0 0.0
      %259 = vmatprep.subr.mxu0 0.0
      %260 = vmatpush1.msra.mxu0 0.0
      %261 = vmatprep.subr.mxu0 0.0
      %262 = vmatpush1.msra.mxu0 0.0
      %263 = vmatprep.subr.mxu0 0.0
      %264 = vmatpush1.msra.mxu0 0.0
      %265 = vmatprep.subr.mxu0 0.0
      %266 = vmatpush1.msra.mxu0 0.0
      %267 = vmatprep.subr.mxu0 0.0
      %268 = vmatpush1.msra.mxu0 0.0
      %269 = vmatprep.subr.mxu0 0.0
      %270 = vmatpush1.msra.mxu0 0.0
      %271 = vmatprep.subr.mxu0 0.0
      %272 = vmatpush1.msra.mxu0 0.0
      %273 = vmatprep.subr.mxu0 0.0
      %274 = vmatpush1.msra.mxu0 0.0
      %275 = vmatprep.subr.mxu0 0.0
      %276 = vmatpush1.msra.mxu0 0.0
      %277 = vmatprep.subr.mxu0 0.0
      %278 = vmatpush1.msra.mxu0 0.0
      %279 = vmatprep.subr.mxu0 0.0
      %280 = vmatpush1.msra.mxu0 0.0
      %281 = vmatprep.subr.mxu0 0.0
      %282 = vmatpush1.msra.mxu0 0.0
      %283 = vmatprep.subr.mxu0 0.0
      %284 = vmatpush1.msra.mxu0 0.0
      %285 = vmatprep.subr.mxu0 0.0
      %286 = vmatpush1.msra.mxu0 0.0
      %287 = vmatprep.subr.mxu0 0.0
      %288 = vmatpush1.msra.mxu0 0.0
      %289 = vmatprep.subr.mxu0 0.0
      %290 = vmatpush1.msra.mxu0 0.0
      %291 = vmatprep.subr.mxu0 0.0
      %292 = vmatpush1.msra.mxu0 0.0
      %293 = vmatprep.subr.mxu0 0.0
      %294 = vmatpush1.msra.mxu0 0.0
      %295 = vmatprep.subr.mxu0 0.0
      %296 = vmatpush1.msra.mxu0 0.0
      %297 = vmatprep.subr.mxu0 0.0
      %298 = vmatpush1.msra.mxu0 0.0
      %299 = vmatprep.mubr.f32.mxu0 0.0
      %300 = vmatmul.mubr.f32.gmra.mrb[0].mxu0 %v233
      %v301 = vpop.f32.mrb[0].mxu0
      %v302 = vadd.f32 0.0, %v301
      %v303 = vpop.f32.mrb[0].mxu0
      %v304 = vadd.f32 0.0, %v303
      %305 = vdwg.mxu0
      %306 = vmatprep.subr.mxu0 %v227
      %307 = vmatpush1.msra.mxu0 %v226
      %308 = vmatprep.subr.mxu0 0.0
      %309 = vmatpush1.msra.mxu0 0.0
      %310 = vmatprep.subr.mxu0 0.0
      %311 = vmatpush1.msra.mxu0 0.0
      %312 = vmatprep.subr.mxu0 0.0
      %313 = vmatpush1.msra.mxu0 0.0
      %314 = vmatprep.subr.mxu0 0.0
      %315 = vmatpush1.msra.mxu0 0.0
      %316 = vmatprep.subr.mxu0 0.0
      %317 = vmatpush1.msra.mxu0 0.0
      %318 = vmatprep.subr.mxu0 0.0
      %319 = vmatpush1.msra.mxu0 0.0
      %320 = vmatprep.subr.mxu0 0.0
      %321 = vmatpush1.msra.mxu0 0.0
      %322 = vmatprep.subr.mxu0 0.0
      %323 = vmatpush1.msra.mxu0 0.0
      %324 = vmatprep.subr.mxu0 0.0
      %325 = vmatpush1.msra.mxu0 0.0
      %326 = vmatprep.subr.mxu0 0.0
      %327 = vmatpush1.msra.mxu0 0.0
      %328 = vmatprep.subr.mxu0 0.0
      %329 = vmatpush1.msra.mxu0 0.0
      %330 = vmatprep.subr.mxu0 0.0
      %331 = vmatpush1.msra.mxu0 0.0
      %332 = vmatprep.subr.mxu0 0.0
      %333 = vmatpush1.msra.mxu0 0.0
      %334 = vmatprep.subr.mxu0 0.0
      %335 = vmatpush1.msra.mxu0 0.0
      %336 = vmatprep.subr.mxu0 0.0
      %337 = vmatpush1.msra.mxu0 0.0
      %338 = vmatprep.subr.mxu0 0.0
      %339 = vmatpush1.msra.mxu0 0.0
      %340 = vmatprep.subr.mxu0 0.0
      %341 = vmatpush1.msra.mxu0 0.0
      %342 = vmatprep.subr.mxu0 0.0
      %343 = vmatpush1.msra.mxu0 0.0
      %344 = vmatprep.subr.mxu0 0.0
      %345 = vmatpush1.msra.mxu0 0.0
      %346 = vmatprep.subr.mxu0 0.0
      %347 = vmatpush1.msra.mxu0 0.0
      %348 = vmatprep.subr.mxu0 0.0
      %349 = vmatpush1.msra.mxu0 0.0
      %350 = vmatprep.subr.mxu0 0.0
      %351 = vmatpush1.msra.mxu0 0.0
      %352 = vmatprep.subr.mxu0 0.0
      %353 = vmatpush1.msra.mxu0 0.0
      %354 = vmatprep.subr.mxu0 0.0
      %355 = vmatpush1.msra.mxu0 0.0
      %356 = vmatprep.subr.mxu0 0.0
      %357 = vmatpush1.msra.mxu0 0.0
      %358 = vmatprep.subr.mxu0 0.0
      %359 = vmatpush1.msra.mxu0 0.0
      %360 = vmatprep.subr.mxu0 0.0
      %361 = vmatpush1.msra.mxu0 0.0
      %362 = vmatprep.subr.mxu0 0.0
      %363 = vmatpush1.msra.mxu0 0.0
      %364 = vmatprep.subr.mxu0 0.0
      %365 = vmatpush1.msra.mxu0 0.0
      %366 = vmatprep.subr.mxu0 0.0
      %367 = vmatpush1.msra.mxu0 0.0
      %368 = vmatprep.subr.mxu0 0.0
      %369 = vmatpush1.msra.mxu0 0.0
      %370 = vmatprep.mubr.f32.mxu0 0.0
      %371 = vmatmul.mubr.f32.gmra.mrb[0].mxu0 %v233
      %v372 = vpop.f32.mrb[0].mxu0
      %v373 = vadd.f32 0.0, %v372
      %v374 = vpop.f32.mrb[0].mxu0
      %v375 = vadd.f32 0.0, %v374
      %376 = vdwg.mxu0
      %377 = vmatprep.subr.mxu0 %v229
      %378 = vmatpush1.msra.mxu0 %v228
      %379 = vmatprep.subr.mxu0 0.0
      %380 = vmatpush1.msra.mxu0 0.0
      %381 = vmatprep.subr.mxu0 0.0
      %382 = vmatpush1.msra.mxu0 0.0
      %383 = vmatprep.subr.mxu0 0.0
      %384 = vmatpush1.msra.mxu0 0.0
      %385 = vmatprep.subr.mxu0 0.0
      %386 = vmatpush1.msra.mxu0 0.0
      %387 = vmatprep.subr.mxu0 0.0
      %388 = vmatpush1.msra.mxu0 0.0
      %389 = vmatprep.subr.mxu0 0.0
      %390 = vmatpush1.msra.mxu0 0.0
      %391 = vmatprep.subr.mxu0 0.0
      %392 = vmatpush1.msra.mxu0 0.0
      %393 = vmatprep.subr.mxu0 0.0
      %394 = vmatpush1.msra.mxu0 0.0
      %395 = vmatprep.subr.mxu0 0.0
      %396 = vmatpush1.msra.mxu0 0.0
      %397 = vmatprep.subr.mxu0 0.0
      %398 = vmatpush1.msra.mxu0 0.0
      %399 = vmatprep.subr.mxu0 0.0
      %400 = vmatpush1.msra.mxu0 0.0
      %401 = vmatprep.subr.mxu0 0.0
      %402 = vmatpush1.msra.mxu0 0.0
      %403 = vmatprep.subr.mxu0 0.0
      %404 = vmatpush1.msra.mxu0 0.0
      %405 = vmatprep.subr.mxu0 0.0
      %406 = vmatpush1.msra.mxu0 0.0
      %407 = vmatprep.subr.mxu0 0.0
      %408 = vmatpush1.msra.mxu0 0.0
      %409 = vmatprep.subr.mxu0 0.0
      %410 = vmatpush1.msra.mxu0 0.0
      %411 = vmatprep.subr.mxu0 0.0
      %412 = vmatpush1.msra.mxu0 0.0
      %413 = vmatprep.subr.mxu0 0.0
      %414 = vmatpush1.msra.mxu0 0.0
      %415 = vmatprep.subr.mxu0 0.0
      %416 = vmatpush1.msra.mxu0 0.0
      %417 = vmatprep.subr.mxu0 0.0
      %418 = vmatpush1.msra.mxu0 0.0
      %419 = vmatprep.subr.mxu0 0.0
      %420 = vmatpush1.msra.mxu0 0.0
      %421 = vmatprep.subr.mxu0 0.0
      %422 = vmatpush1.msra.mxu0 0.0
      %423 = vmatprep.subr.mxu0 0.0
      %424 = vmatpush1.msra.mxu0 0.0
      %425 = vmatprep.subr.mxu0 0.0
      %426 = vmatpush1.msra.mxu0 0.0
      %427 = vmatprep.subr.mxu0 0.0
      %428 = vmatpush1.msra.mxu0 0.0
      %429 = vmatprep.subr.mxu0 0.0
      %430 = vmatpush1.msra.mxu0 0.0
      %431 = vmatprep.subr.mxu0 0.0
      %432 = vmatpush1.msra.mxu0 0.0
      %433 = vmatprep.subr.mxu0 0.0
      %434 = vmatpush1.msra.mxu0 0.0
      %435 = vmatprep.subr.mxu0 0.0
      %436 = vmatpush1.msra.mxu0 0.0
      %437 = vmatprep.subr.mxu0 0.0
      %438 = vmatpush1.msra.mxu0 0.0
      %439 = vmatprep.subr.mxu0 0.0
      %440 = vmatpush1.msra.mxu0 0.0
      %441 = vmatprep.mubr.f32.mxu0 0.0
      %442 = vmatmul.mubr.f32.gmra.mrb[0].mxu0 %v233
      %v443 = vpop.f32.mrb[0].mxu0
      %v444 = vadd.f32 0.0, %v443
      %v445 = vpop.f32.mrb[0].mxu0
      %v446 = vadd.f32 0.0, %v445
      %447 = vdwg.mxu0
      %448 = vmatprep.subr.mxu0 0.0
      %449 = vmatpush1.msra.mxu0 %v230
      %450 = vmatprep.subr.mxu0 0.0
      %451 = vmatpush1.msra.mxu0 0.0
      %452 = vmatprep.subr.mxu0 0.0
      %453 = vmatpush1.msra.mxu0 0.0
      %454 = vmatprep.subr.mxu0 0.0
      %455 = vmatpush1.msra.mxu0 0.0
      %456 = vmatprep.subr.mxu0 0.0
      %457 = vmatpush1.msra.mxu0 0.0
      %458 = vmatprep.subr.mxu0 0.0
      %459 = vmatpush1.msra.mxu0 0.0
      %460 = vmatprep.subr.mxu0 0.0
      %461 = vmatpush1.msra.mxu0 0.0
      %462 = vmatprep.subr.mxu0 0.0
      %463 = vmatpush1.msra.mxu0 0.0
      %464 = vmatprep.subr.mxu0 0.0
      %465 = vmatpush1.msra.mxu0 0.0
      %466 = vmatprep.subr.mxu0 0.0
      %467 = vmatpush1.msra.mxu0 0.0
      %468 = vmatprep.subr.mxu0 0.0
      %469 = vmatpush1.msra.mxu0 0.0
      %470 = vmatprep.subr.mxu0 0.0
      %471 = vmatpush1.msra.mxu0 0.0
      %472 = vmatprep.subr.mxu0 0.0
      %473 = vmatpush1.msra.mxu0 0.0
      %474 = vmatprep.subr.mxu0 0.0
      %475 = vmatpush1.msra.mxu0 0.0
      %476 = vmatprep.subr.mxu0 0.0
      %477 = vmatpush1.msra.mxu0 0.0
      %478 = vmatprep.subr.mxu0 0.0
      %479 = vmatpush1.msra.mxu0 0.0
      %480 = vmatprep.subr.mxu0 0.0
      %481 = vmatpush1.msra.mxu0 0.0
      %482 = vmatprep.subr.mxu0 0.0
      %483 = vmatpush1.msra.mxu0 0.0
      %484 = vmatprep.subr.mxu0 0.0
      %485 = vmatpush1.msra.mxu0 0.0
      %486 = vmatprep.subr.mxu0 0.0
      %487 = vmatpush1.msra.mxu0 0.0
      %488 = vmatprep.subr.mxu0 0.0
      %489 = vmatpush1.msra.mxu0 0.0
      %490 = vmatprep.subr.mxu0 0.0
      %491 = vmatpush1.msra.mxu0 0.0
      %492 = vmatprep.subr.mxu0 0.0
      %493 = vmatpush1.msra.mxu0 0.0
      %494 = vmatprep.subr.mxu0 0.0
      %495 = vmatpush1.msra.mxu0 0.0
      %496 = vmatprep.subr.mxu0 0.0
      %497 = vmatpush1.msra.mxu0 0.0
      %498 = vmatprep.subr.mxu0 0.0
      %499 = vmatpush1.msra.mxu0 0.0
      %500 = vmatprep.subr.mxu0 0.0
      %501 = vmatpush1.msra.mxu0 0.0
      %502 = vmatprep.subr.mxu0 0.0
      %503 = vmatpush1.msra.mxu0 0.0
      %504 = vmatprep.subr.mxu0 0.0
      %505 = vmatpush1.msra.mxu0 0.0
      %506 = vmatprep.subr.mxu0 0.0
      %507 = vmatpush1.msra.mxu0 0.0
      %508 = vmatprep.subr.mxu0 0.0
      %509 = vmatpush1.msra.mxu0 0.0
      %510 = vmatprep.subr.mxu0 0.0
      %511 = vmatpush1.msra.mxu0 0.0
      %512 = vmatprep.mubr.f32.mxu0 0.0
      %513 = vmatmul.mubr.f32.gmra.mrb[0].mxu0 %v233
      %v514 = vpop.f32.mrb[0].mxu0
      %v515 = vadd.f32 0.0, %v514
      %v516 = vpop.f32.mrb[0].mxu0
      %517 = vdwg.mxu0
      %v518 = vld [vmem:[%s215] sm:$0xff]
      %v519 = vld [vmem:[%s215 + $0x8] sm:$0xff]
      %v520 = vld [vmem:[%s215 + $0x10] sm:$0xff]
      %v521 = vld [vmem:[%s215 + $0x18] sm:$0xff]
      %v522 = vld [vmem:[%s215 + $0x20] sm:$0xff]
      %v523 = vld [vmem:[%s215 + $0x28] sm:$0xff]
      %v524 = vld [vmem:[%s215 + $0x30] sm:$0xff]
      %v525 = vadd.f32 %v518, %v302
      %v526 = vadd.f32 %v519, %v304
      %v527 = vadd.f32 %v520, %v373
      %v528 = vadd.f32 %v521, %v375
      %v529 = vadd.f32 %v522, %v444
      %v530 = vadd.f32 %v523, %v446
      %v531 = vadd.f32 %v524, %v515
      %v532 = vld [vmem:[%s3] sm:$0xff]
      %534 = vset.pattern.permute.xlu0 0
      %535 = vperm.xlu0 %534, %v532
      %v536 = vpop.permute.xlu0 %535
      %v538 = vadd.f32 %v525, %v536
      %v539 = vadd.f32 %v526, %v536
      %v540 = vadd.f32 %v527, %v536
      %v541 = vadd.f32 %v528, %v536
      %v542 = vadd.f32 %v529, %v536
      %v543 = vadd.f32 %v530, %v536
      %v544 = vadd.f32 %v531, %v536
      %545 = vst [vmem:[%s221] sm:$0xff] %v538
      %546 = vst [vmem:[%s221 + $0x8] sm:$0xff] %v539
      %547 = vst [vmem:[%s221 + $0x10] sm:$0xff] %v540
      %548 = vst [vmem:[%s221 + $0x18] sm:$0xff] %v541
      %549 = vst [vmem:[%s221 + $0x20] sm:$0xff] %v542
      %550 = vst [vmem:[%s221 + $0x28] sm:$0xff] %v543
      %551 = vst [vmem:[%s221 + $0x30] sm:$0xff] %v544
      %s552 = smul.u32 7, %s15
      %p553 = scmp.lt.s32.totalorder %s552, 13
      %s554 = scalar_select %p553, %s552, 13
      %s555 = smul.addr %s554, 8
      %s556 = scalar_lea.vmem %s4, %s555
      // Predicated region
      $region37: #{fno3d_forward.18} parent=35 // pred_check
        %p557 = pneg %p127
      $region38: #{fno3d_forward.18} parent=35 // pred_check_branch
        %559 = sbr.rel (%p557) target = $region40
      $region39: #{fno3d_forward.18} parent=35 // pred_region
        %s560 = smul.u32 7, %s15
      $region40: #{fno3d_forward.18} parent=35 // pred_fallthru
        _
    $region36: #{fno3d_forward.18} parent=5 // pred_fallthru
      _
    %p561 = scmp.le.s32.totalorder 2, %s10
    // Predicated region
    $region41: #{fno3d_forward.18} parent=5 // pred_check
      %p562 = pneg %p561
    $region42: #{fno3d_forward.18} parent=5 // pred_check_branch
      %564 = sbr.rel (%p562) target = $region44
    $region43: #{fno3d_forward.18} parent=5 // pred_region
      %s565 = ssub.s32 %s10, 2
      // Predicated region
      $region45: #{fno3d_forward.18} parent=43 // pred_check
        %p566 = pneg %p133
      $region46: #{fno3d_forward.18} parent=43 // pred_check_branch
        %568 = sbr.rel (%p566) target = $region48
      $region47: #{fno3d_forward.18} parent=43 // pred_region
        %s569 = smul.u32 7, %s16
        %p570 = scmp.lt.s32.totalorder %s569, 13
        %s571 = scalar_select %p570, %s569, 13
        %s572 = smul.addr %s571, 8
        %s573 = scalar_lea.vmem %s4, %s572
      $region48: #{fno3d_forward.18} parent=43 // pred_fallthru
        _
    $region44: #{fno3d_forward.18} parent=5 // pred_fallthru
      _
  $region6: #{fno3d_forward.18} parent=0 // loop_footer
    %s14 = sadd.s32 1, %s10
  $region7: #{fno3d_forward.18} parent=0 // loop_footer_branch
    %9 = sbr.rel target = $region3
  $region8: #{fno3d_forward.18} parent=0 // loop_exit
    _

// kernel: fno3d_forward.19
$region0: #{fno3d_forward.19}
  #allocation0 [shape = 'u32[]', space=smem, size = 0x4, offset = 0x4, fixed_abs, tag = 'smem constant byte address 0x4 - core index']
  #allocation1 [shape = 'u32[144,128]{1,0:T(1,128)}', space=vmem, size = 0x12000, scoped, tag = 'internal scratch']
  %s0 = inlined_call_operand.vmem [shape: f32[8,1024], index: 0, kind: input, shape index: {}]
  %s1 = inlined_call_operand.vmem [shape: f32[128,8], index: 1, kind: input, shape index: {}]
  %s2 = inlined_call_operand.vmem [shape: f32[128,1], index: 2, kind: input, shape index: {}]
  %s3 = inlined_call_operand.vmem [shape: f32[18,128], index: 3, kind: input, shape index: {}]
  %s4 = inlined_call_operand.vmem [shape: f32[18,1], index: 4, kind: input, shape index: {}]
  %s5 = inlined_call_operand.vmem [shape: f32[18,1024], index: 5, kind: output, shape index: {}]
  %s6 = sld [smem:[#allocation0]]
  $region72: #{fno3d_forward.19} parent=0
    _
  %s8 = ssub.s32 1, %s6
  %s9 = scalar_select 0, %s8, %s6
  $region1: #{fno3d_forward.19} parent=0
    #allocation2 [shape = 'u8[98304]{0}', space=vmem, size = 0x18000, scoped, tag = 'output window, operand 0']
    loop: start=0, step=1, limit=4
    $region2: #{fno3d_forward.19} parent=1 // loop_pre_header
      _
    $region3: #{fno3d_forward.19} parent=1 // loop_header
      %s11 = sphi 0, %s15
      %p12 = scmp.ge.s32.totalorder %s11, 4
      %s21 = sphi 0, %s23
      %s24 = sphi 0, %s21
      %s25 = sphi 0, %s24
      %s41 = sphi 0, %s25
      %s45 = sphi 0, %s45
      %s47 = sphi 0, %s45
      %s48 = sphi 0, %s47
      %s62 = sphi 0, %s48
      %s66 = sphi 0, %s66
      %s68 = sphi 0, %s66
      %s69 = sphi 0, %s68
      %s83 = sphi 0, %s69
      %s87 = sphi 0, %s87
      %s89 = sphi 0, %s87
      %s90 = sphi 0, %s89
      %s104 = sphi 0, %s90
      %s108 = sphi 0, %s108
      %s110 = sphi 0, %s108
      %s111 = sphi 0, %s110
      %s125 = sphi 0, %s111
      %s131 = sphi 0, %s133
      %s134 = sphi 0, %s131
      %s135 = sphi 0, %s134
      %s151 = sphi 0, %s135
    $region4: #{fno3d_forward.19} parent=1 // loop_header_branch
      %14 = sbr.rel (%p12) target = $region8
    $region5: #{fno3d_forward.19} parent=1 // loop_body
      %s16 = ssub.s32 %s11, 1
      %s17 = ssub.s32 %s11, 2
      %s18 = sadd.s32 %s11, 1
      %s19 = ssub.s32 %s11, %s18
      %p20 = scmp.eq.s32.totalorder %s19, 0
      %s22 = sadd.s32 %s21, 1
      %s23 = scalar_select %p20, %s21, %s22
      %p26 = pneg %p20
      %p27 = scmp.eq.s32.totalorder %s11, 1
      %p28 = por %p26, %p27
      %p29 = scmp.ne.s32.totalorder %s21, %s24
      %p30 = scmp.eq.s32.totalorder %s11, 0
      %p31 = por %p29, %p30
      %p32 = scmp.ne.s32.totalorder %s21, %s24
      %p33 = scmp.eq.s32.totalorder %s16, 1
      %p34 = por %p32, %p33
      %p35 = scmp.ne.s32.totalorder %s24, %s25
      %p36 = scmp.eq.s32.totalorder %s16, 0
      %p37 = por %p35, %p36
      %p38 = scmp.ne.s32.totalorder %s24, %s25
      %p39 = scmp.eq.s32.totalorder %s17, 1
      %p40 = por %p38, %p39
      %p42 = scmp.ne.s32.totalorder %s25, %s41
      %p43 = scmp.eq.s32.totalorder %s17, 0
      %p44 = por %p42, %p43
      %s46 = sadd.s32 %s45, 1
      %p49 = scmp.eq.s32.totalorder %s11, 1
      %p50 = scmp.ne.s32.totalorder %s45, %s47
      %p51 = scmp.eq.s32.totalorder %s11, 0
      %p52 = por %p50, %p51
      %p53 = scmp.ne.s32.totalorder %s45, %s47
      %p54 = scmp.eq.s32.totalorder %s16, 1
      %p55 = por %p53, %p54
      %p56 = scmp.ne.s32.totalorder %s47, %s48
      %p57 = scmp.eq.s32.totalorder %s16, 0
      %p58 = por %p56, %p57
      %p59 = scmp.ne.s32.totalorder %s47, %s48
      %p60 = scmp.eq.s32.totalorder %s17, 1
      %p61 = por %p59, %p60
      %p63 = scmp.ne.s32.totalorder %s48, %s62
      %p64 = scmp.eq.s32.totalorder %s17, 0
      %p65 = por %p63, %p64
      %s67 = sadd.s32 %s66, 1
      %p70 = scmp.eq.s32.totalorder %s11, 1
      %p71 = scmp.ne.s32.totalorder %s66, %s68
      %p72 = scmp.eq.s32.totalorder %s11, 0
      %p73 = por %p71, %p72
      %p74 = scmp.ne.s32.totalorder %s66, %s68
      %p75 = scmp.eq.s32.totalorder %s16, 1
      %p76 = por %p74, %p75
      %p77 = scmp.ne.s32.totalorder %s68, %s69
      %p78 = scmp.eq.s32.totalorder %s16, 0
      %p79 = por %p77, %p78
      %p80 = scmp.ne.s32.totalorder %s68, %s69
      %p81 = scmp.eq.s32.totalorder %s17, 1
      %p82 = por %p80, %p81
      %p84 = scmp.ne.s32.totalorder %s69, %s83
      %p85 = scmp.eq.s32.totalorder %s17, 0
      %p86 = por %p84, %p85
      %s88 = sadd.s32 %s87, 1
      %p91 = scmp.eq.s32.totalorder %s11, 1
      %p92 = scmp.ne.s32.totalorder %s87, %s89
      %p93 = scmp.eq.s32.totalorder %s11, 0
      %p94 = por %p92, %p93
      %p95 = scmp.ne.s32.totalorder %s87, %s89
      %p96 = scmp.eq.s32.totalorder %s16, 1
      %p97 = por %p95, %p96
      %p98 = scmp.ne.s32.totalorder %s89, %s90
      %p99 = scmp.eq.s32.totalorder %s16, 0
      %p100 = por %p98, %p99
      %p101 = scmp.ne.s32.totalorder %s89, %s90
      %p102 = scmp.eq.s32.totalorder %s17, 1
      %p103 = por %p101, %p102
      %p105 = scmp.ne.s32.totalorder %s90, %s104
      %p106 = scmp.eq.s32.totalorder %s17, 0
      %p107 = por %p105, %p106
      %s109 = sadd.s32 %s108, 1
      %p112 = scmp.eq.s32.totalorder %s11, 1
      %p113 = scmp.ne.s32.totalorder %s108, %s110
      %p114 = scmp.eq.s32.totalorder %s11, 0
      %p115 = por %p113, %p114
      %p116 = scmp.ne.s32.totalorder %s108, %s110
      %p117 = scmp.eq.s32.totalorder %s16, 1
      %p118 = por %p116, %p117
      %p119 = scmp.ne.s32.totalorder %s110, %s111
      %p120 = scmp.eq.s32.totalorder %s16, 0
      %p121 = por %p119, %p120
      %p122 = scmp.ne.s32.totalorder %s110, %s111
      %p123 = scmp.eq.s32.totalorder %s17, 1
      %p124 = por %p122, %p123
      %p126 = scmp.ne.s32.totalorder %s111, %s125
      %p127 = scmp.eq.s32.totalorder %s17, 0
      %p128 = por %p126, %p127
      %s129 = ssub.s32 %s11, %s18
      %p130 = scmp.eq.s32.totalorder %s129, 0
      %s132 = sadd.s32 %s131, 1
      %s133 = scalar_select %p130, %s131, %s132
      %p136 = pneg %p130
      %p137 = scmp.eq.s32.totalorder %s11, 1
      %p138 = por %p136, %p137
      %p139 = scmp.ne.s32.totalorder %s131, %s134
      %p140 = scmp.eq.s32.totalorder %s11, 0
      %p141 = por %p139, %p140
      %p142 = scmp.ne.s32.totalorder %s131, %s134
      %p143 = scmp.eq.s32.totalorder %s16, 1
      %p144 = por %p142, %p143
      %p145 = scmp.ne.s32.totalorder %s134, %s135
      %p146 = scmp.eq.s32.totalorder %s16, 0
      %p147 = por %p145, %p146
      %p148 = scmp.ne.s32.totalorder %s134, %s135
      %p149 = scmp.eq.s32.totalorder %s17, 1
      %p150 = por %p148, %p149
      %p152 = scmp.ne.s32.totalorder %s135, %s151
      %p153 = scmp.eq.s32.totalorder %s17, 0
      %p154 = por %p152, %p153
      %p155 = scmp.le.s32.totalorder 1, %s11
      %p156 = scmp.lt.s32.totalorder %s11, 3
      %p157 = pnand %p155, %p156
      %p158 = pneg %p157
      // Predicated region
      $region9: #{fno3d_forward.19} parent=5 // pred_check
        _
      $region10: #{fno3d_forward.19} parent=5 // pred_check_branch
        %160 = sbr.rel (%p157) target = $region12
      $region11: #{fno3d_forward.19} parent=5 // pred_region
        %s161 = ssub.s32 %s11, 1
        // Predicated region
        $region13: #{fno3d_forward.19} parent=11 // pred_check
          %p162 = pneg %p58
        $region14: #{fno3d_forward.19} parent=11 // pred_check_branch
          %164 = sbr.rel (%p162) target = $region16
        $region15: #{fno3d_forward.19} parent=11 // pred_region
          _
        $region16: #{fno3d_forward.19} parent=11 // pred_fallthru
          _
        // Predicated region
        $region17: #{fno3d_forward.19} parent=11 // pred_check
          %p165 = pneg %p79
        $region18: #{fno3d_forward.19} parent=11 // pred_check_branch
          %167 = sbr.rel (%p165) target = $region20
        $region19: #{fno3d_forward.19} parent=11 // pred_region
          _
        $region20: #{fno3d_forward.19} parent=11 // pred_fallthru
          _
        // Predicated region
        $region21: #{fno3d_forward.19} parent=11 // pred_check
          %p168 = pneg %p100
        $region22: #{fno3d_forward.19} parent=11 // pred_check_branch
          %170 = sbr.rel (%p168) target = $region24
        $region23: #{fno3d_forward.19} parent=11 // pred_region
          _
        $region24: #{fno3d_forward.19} parent=11 // pred_fallthru
          _
        // Predicated region
        $region25: #{fno3d_forward.19} parent=11 // pred_check
          %p171 = pneg %p121
        $region26: #{fno3d_forward.19} parent=11 // pred_check_branch
          %173 = sbr.rel (%p171) target = $region28
        $region27: #{fno3d_forward.19} parent=11 // pred_region
          _
        $region28: #{fno3d_forward.19} parent=11 // pred_fallthru
          _
      $region12: #{fno3d_forward.19} parent=5 // pred_fallthru
        _
      %p174 = scmp.lt.s32.totalorder %s11, 2
      // Predicated region
      $region29: #{fno3d_forward.19} parent=5 // pred_check
        %p175 = pneg %p174
      $region30: #{fno3d_forward.19} parent=5 // pred_check_branch
        %177 = sbr.rel (%p175) target = $region32
      $region31: #{fno3d_forward.19} parent=5 // pred_region
        // Predicated region
        $region33: #{fno3d_forward.19} parent=31 // pred_check
          %p178 = pneg %p31
        $region34: #{fno3d_forward.19} parent=31 // pred_check_branch
          %180 = sbr.rel (%p178) target = $region36
        $region35: #{fno3d_forward.19} parent=31 // pred_region
          %s181 = smul.u32 4, %s11
          %p182 = scmp.lt.s32.totalorder %s181, 7
          %s183 = scalar_select %p182, %s181, 7
          %s184 = smul.addr %s183, 8
          %s185 = scalar_lea.vmem %s0, %s184
          %s186 = smul.u32 4, %s11
        $region36: #{fno3d_forward.19} parent=31 // pred_fallthru
          _
      $region32: #{fno3d_forward.19} parent=5 // pred_fallthru
        _
      %p187 = scmp.le.s32.totalorder 1, %s11
      %p188 = scmp.lt.s32.totalorder %s11, 3
      %p189 = pnand %p187, %p188
      %p190 = pneg %p189
      // Predicated region
      $region37: #{fno3d_forward.19} parent=5 // pred_check
        _
      $region38: #{fno3d_forward.19} parent=5 // pred_check_branch
        %192 = sbr.rel (%p189) target = $region40
      $region39: #{fno3d_forward.19} parent=5 // pred_region
        %s193 = ssub.s32 %s11, 1
        %s194 = smul.u32 4, %s16
        %p195 = scmp.lt.s32.totalorder %s194, 7
        %s196 = scalar_select %p195, %s194, 7
        %s197 = smul.addr %s196, 8
        %s198 = scalar_lea.vmem %s0, %s197
        %p199 = pneg %p37
        %p200 = pneg %p34
        %p201 = pneg %p58
        %p202 = pneg %p55
        %p203 = pneg %p79
        %p204 = pneg %p76
        %p205 = pneg %p100
        %p206 = pneg %p97
        %p207 = pneg %p121
        %p208 = pneg %p118
        %p209 = pneg %p147
        %p210 = pneg %p144
        %s211 = sand.u32 %s134, 1
        %s212 = sand.u32 %s134, 1
        %s213 = smul.addr %s212, 96
        %s214 = scalar_lea.vmem [#allocation2], %s213
        %s215 = smul.u32 4, %s16
        %p216 = scmp.lt.s32.totalorder %s215, 7
        %s217 = scalar_select %p216, %s215, 7
        %s218 = smul.addr %s217, 8
        %s219 = scalar_lea.vmem %s0, %s218
        %s220 = smul.u32 4, %s16
        %s221 = smul.u32 4, %s16
        %v222 = vld [vmem:[%s1] sm:$0xff]
        %v223 = vld [vmem:[%s1 + $0x8] sm:$0xff]
        %v224 = vld [vmem:[%s1 + $0x10] sm:$0xff]
        %v225 = vld [vmem:[%s1 + $0x18] sm:$0xff]
        %v226 = vld [vmem:[%s1 + $0x20] sm:$0xff]
        %v227 = vld [vmem:[%s1 + $0x28] sm:$0xff]
        %v228 = vld [vmem:[%s1 + $0x30] sm:$0xff]
        %v229 = vld [vmem:[%s1 + $0x38] sm:$0xff]
        %v230 = vld [vmem:[%s1 + $0x40] sm:$0xff]
        %v231 = vld [vmem:[%s1 + $0x48] sm:$0xff]
        %v232 = vld [vmem:[%s1 + $0x50] sm:$0xff]
        %v233 = vld [vmem:[%s1 + $0x58] sm:$0xff]
        %v234 = vld [vmem:[%s1 + $0x60] sm:$0xff]
        %v235 = vld [vmem:[%s1 + $0x68] sm:$0xff]
        %v236 = vld [vmem:[%s1 + $0x70] sm:$0xff]
        %v237 = vld [vmem:[%s1 + $0x78] sm:$0xff]
        %v238 = vld [vmem:[%s219] sm:$0xff]
        %v239 = vld [vmem:[%s219 + $0x8] sm:$0xff]
        %v240 = vld [vmem:[%s219 + $0x10] sm:$0xff]
        %v241 = vld [vmem:[%s219 + $0x18] sm:$0xff]
        %v242 = vld [vmem:[%s2] sm:$0xff]
        %v243 = vld [vmem:[%s2 + $0x8] sm:$0xff]
        %v244 = vld [vmem:[%s2 + $0x10] sm:$0xff]
        %v245 = vld [vmem:[%s2 + $0x18] sm:$0xff]
        %v246 = vld [vmem:[%s2 + $0x20] sm:$0xff]
        %v247 = vld [vmem:[%s2 + $0x28] sm:$0xff]
        %v248 = vld [vmem:[%s2 + $0x30] sm:$0xff]
        %v249 = vld [vmem:[%s2 + $0x38] sm:$0xff]
        %v250 = vld [vmem:[%s2 + $0x40] sm:$0xff]
        %v251 = vld [vmem:[%s2 + $0x48] sm:$0xff]
        %v252 = vld [vmem:[%s2 + $0x50] sm:$0xff]
        %v253 = vld [vmem:[%s2 + $0x58] sm:$0xff]
        %v254 = vld [vmem:[%s2 + $0x60] sm:$0xff]
        %v255 = vld [vmem:[%s2 + $0x68] sm:$0xff]
        %v256 = vld [vmem:[%s2 + $0x70] sm:$0xff]
        %v257 = vld [vmem:[%s2 + $0x78] sm:$0xff]
        %259 = vset.pattern.permute.xlu0 0
        %260 = vperm.xlu0 %259, %v242
        %v261 = vpop.permute.xlu0 %260
        %264 = vset.pattern.permute.xlu0 0
        %265 = vperm.xlu0 %264, %v243
        %v266 = vpop.permute.xlu0 %265
        %269 = vset.pattern.permute.xlu0 0
        %270 = vperm.xlu0 %269, %v244
        %v271 = vpop.permute.xlu0 %270
        %274 = vset.pattern.permute.xlu0 0
        %275 = vperm.xlu0 %274, %v245
        %v276 = vpop.permute.xlu0 %275
        %279 = vset.pattern.permute.xlu0 0
        %280 = vperm.xlu0 %279, %v246
        %v281 = vpop.permute.xlu0 %280
        %284 = vset.pattern.permute.xlu0 0
        %285 = vperm.xlu0 %284, %v247
        %v286 = vpop.permute.xlu0 %285
        %289 = vset.pattern.permute.xlu0 0
        %290 = vperm.xlu0 %289, %v248
        %v291 = vpop.permute.xlu0 %290
        %294 = vset.pattern.permute.xlu0 0
        %295 = vperm.xlu0 %294, %v249
        %v296 = vpop.permute.xlu0 %295
        %299 = vset.pattern.permute.xlu0 0
        %300 = vperm.xlu0 %299, %v250
        %v301 = vpop.permute.xlu0 %300
        %304 = vset.pattern.permute.xlu0 0
        %305 = vperm.xlu0 %304, %v251
        %v306 = vpop.permute.xlu0 %305
        %309 = vset.pattern.permute.xlu0 0
        %310 = vperm.xlu0 %309, %v252
        %v311 = vpop.permute.xlu0 %310
        %314 = vset.pattern.permute.xlu0 0
        %315 = vperm.xlu0 %314, %v253
        %v316 = vpop.permute.xlu0 %315
        %319 = vset.pattern.permute.xlu0 0
        %320 = vperm.xlu0 %319, %v254
        %v321 = vpop.permute.xlu0 %320
        %324 = vset.pattern.permute.xlu0 0
        %325 = vperm.xlu0 %324, %v255
        %v326 = vpop.permute.xlu0 %325
        %329 = vset.pattern.permute.xlu0 0
        %330 = vperm.xlu0 %329, %v256
        %v331 = vpop.permute.xlu0 %330
        %334 = vset.pattern.permute.xlu0 0
        %335 = vperm.xlu0 %334, %v257
        %v336 = vpop.permute.xlu0 %335
        %vm338 = vcmask 64512
        %v340 = vsel %vm338, %v222, 0
        %v343 = vsel %vm338, %v223, 0
        %v346 = vsel %vm338, %v224, 0
        %v349 = vsel %vm338, %v225, 0
        %v352 = vsel %vm338, %v226, 0
        %v355 = vsel %vm338, %v227, 0
        %v358 = vsel %vm338, %v228, 0
        %v361 = vsel %vm338, %v229, 0
        %v364 = vsel %vm338, %v230, 0
        %v367 = vsel %vm338, %v231, 0
        %v370 = vsel %vm338, %v232, 0
        %v373 = vsel %vm338, %v233, 0
        %v376 = vsel %vm338, %v234, 0
        %v379 = vsel %vm338, %v235, 0
        %v382 = vsel %vm338, %v236, 0
        %v385 = vsel %vm338, %v237, 0
        %387 = vmatprep.subr.mxu0 %v239
        %388 = vmatpush1.msra.mxu0 %v238
        %389 = vmatprep.subr.mxu0 0.0
        %390 = vmatpush1.msra.mxu0 0.0
        %391 = vmatprep.subr.mxu0 0.0
        %392 = vmatpush1.msra.mxu0 0.0
        %393 = vmatprep.subr.mxu0 0.0
        %394 = vmatpush1.msra.mxu0 0.0
        %395 = vmatprep.subr.mxu0 0.0
        %396 = vmatpush1.msra.mxu0 0.0
        %397 = vmatprep.subr.mxu0 0.0
        %398 = vmatpush1.msra.mxu0 0.0
        %399 = vmatprep.subr.mxu0 0.0
        %400 = vmatpush1.msra.mxu0 0.0
        %401 = vmatprep.subr.mxu0 0.0
        %402 = vmatpush1.msra.mxu0 0.0
        %403 = vmatprep.subr.mxu0 0.0
        %404 = vmatpush1.msra.mxu0 0.0
        %405 = vmatprep.subr.mxu0 0.0
        %406 = vmatpush1.msra.mxu0 0.0
        %407 = vmatprep.subr.mxu0 0.0
        %408 = vmatpush1.msra.mxu0 0.0
        %409 = vmatprep.subr.mxu0 0.0
        %410 = vmatpush1.msra.mxu0 0.0
        %411 = vmatprep.subr.mxu0 0.0
        %412 = vmatpush1.msra.mxu0 0.0
        %413 = vmatprep.subr.mxu0 0.0
        %414 = vmatpush1.msra.mxu0 0.0
        %415 = vmatprep.subr.mxu0 0.0
        %416 = vmatpush1.msra.mxu0 0.0
        %417 = vmatprep.subr.mxu0 0.0
        %418 = vmatpush1.msra.mxu0 0.0
        %419 = vmatprep.subr.mxu0 0.0
        %420 = vmatpush1.msra.mxu0 0.0
        %421 = vmatprep.subr.mxu0 0.0
        %422 = vmatpush1.msra.mxu0 0.0
        %423 = vmatprep.subr.mxu0 0.0
        %424 = vmatpush1.msra.mxu0 0.0
        %425 = vmatprep.subr.mxu0 0.0
        %426 = vmatpush1.msra.mxu0 0.0
        %427 = vmatprep.subr.mxu0 0.0
        %428 = vmatpush1.msra.mxu0 0.0
        %429 = vmatprep.subr.mxu0 0.0
        %430 = vmatpush1.msra.mxu0 0.0
        %431 = vmatprep.subr.mxu0 0.0
        %432 = vmatpush1.msra.mxu0 0.0
        %433 = vmatprep.subr.mxu0 0.0
        %434 = vmatpush1.msra.mxu0 0.0
        %435 = vmatprep.subr.mxu0 0.0
        %436 = vmatpush1.msra.mxu0 0.0
        %437 = vmatprep.subr.mxu0 0.0
        %438 = vmatpush1.msra.mxu0 0.0
        %439 = vmatprep.subr.mxu0 0.0
        %440 = vmatpush1.msra.mxu0 0.0
        %441 = vmatprep.subr.mxu0 0.0
        %442 = vmatpush1.msra.mxu0 0.0
        %443 = vmatprep.subr.mxu0 0.0
        %444 = vmatpush1.msra.mxu0 0.0
        %445 = vmatprep.subr.mxu0 0.0
        %446 = vmatpush1.msra.mxu0 0.0
        %447 = vmatprep.subr.mxu0 0.0
        %448 = vmatpush1.msra.mxu0 0.0
        %449 = vmatprep.subr.mxu0 0.0
        %450 = vmatpush1.msra.mxu0 0.0
        %451 = vmatprep.mubr.f32.mxu0 0.0
        %452 = vmatmul.mubr.f32.gmra.mrb[0].mxu0 %v340
        %v453 = vpop.f32.mrb[0].mxu0
        %v454 = vadd.f32 %v261, %v453
        %v455 = vpop.f32.mrb[0].mxu0
        %v456 = vadd.f32 %v261, %v455
        %457 = vmatprep.mubr.f32.mxu0 0.0
        %458 = vmatmul.mubr.f32.gmra.mrb[0].mxu0 %v343
        %v459 = vpop.f32.mrb[0].mxu0
        %v460 = vadd.f32 %v266, %v459
        %v461 = vpop.f32.mrb[0].mxu0
        %v462 = vadd.f32 %v266, %v461
        %463 = vmatprep.mubr.f32.mxu0 0.0
        %464 = vmatmul.mubr.f32.gmra.mrb[0].mxu0 %v346
        %v465 = vpop.f32.mrb[0].mxu0
        %v466 = vadd.f32 %v271, %v465
        %v467 = vpop.f32.mrb[0].mxu0
        %v468 = vadd.f32 %v271, %v467
        %469 = vmatprep.mubr.f32.mxu0 0.0
        %470 = vmatmul.mubr.f32.gmra.mrb[0].mxu0 %v349
        %v471 = vpop.f32.mrb[0].mxu0
        %v472 = vadd.f32 %v276, %v471
        %v473 = vpop.f32.mrb[0].mxu0
        %v474 = vadd.f32 %v276, %v473
        %475 = vmatprep.mubr.f32.mxu0 0.0
        %476 = vmatmul.mubr.f32.gmra.mrb[0].mxu0 %v352
        %v477 = vpop.f32.mrb[0].mxu0
        %v478 = vadd.f32 %v281, %v477
        %v479 = vpop.f32.mrb[0].mxu0
        %v480 = vadd.f32 %v281, %v479
        %481 = vmatprep.mubr.f32.mxu0 0.0
        %482 = vmatmul.mubr.f32.gmra.mrb[0].mxu0 %v355
        %v483 = vpop.f32.mrb[0].mxu0
        %v484 = vadd.f32 %v286, %v483
        %v485 = vpop.f32.mrb[0].mxu0
        %v486 = vadd.f32 %v286, %v485
        %487 = vmatprep.mubr.f32.mxu0 0.0
        %488 = vmatmul.mubr.f32.gmra.mrb[0].mxu0 %v358
        %v489 = vpop.f32.mrb[0].mxu0
        %v490 = vadd.f32 %v291, %v489
        %v491 = vpop.f32.mrb[0].mxu0
        %v492 = vadd.f32 %v291, %v491
        %493 = vmatprep.mubr.f32.mxu0 0.0
        %494 = vmatmul.mubr.f32.gmra.mrb[0].mxu0 %v361
        %v495 = vpop.f32.mrb[0].mxu0
        %v496 = vadd.f32 %v296, %v495
        %v497 = vpop.f32.mrb[0].mxu0
        %v498 = vadd.f32 %v296, %v497
        %499 = vmatprep.mubr.f32.mxu0 0.0
        %500 = vmatmul.mubr.f32.gmra.mrb[0].mxu0 %v364
        %v501 = vpop.f32.mrb[0].mxu0
        %v502 = vadd.f32 %v301, %v501
        %v503 = vpop.f32.mrb[0].mxu0
        %v504 = vadd.f32 %v301, %v503
        %505 = vmatprep.mubr.f32.mxu0 0.0
        %506 = vmatmul.mubr.f32.gmra.mrb[0].mxu0 %v367
        %v507 = vpop.f32.mrb[0].mxu0
        %v508 = vadd.f32 %v306, %v507
        %v509 = vpop.f32.mrb[0].mxu0
        %v510 = vadd.f32 %v306, %v509
        %511 = vmatprep.mubr.f32.mxu0 0.0
        %512 = vmatmul.mubr.f32.gmra.mrb[0].mxu0 %v370
        %v513 = vpop.f32.mrb[0].mxu0
        %v514 = vadd.f32 %v311, %v513
        %v515 = vpop.f32.mrb[0].mxu0
        %v516 = vadd.f32 %v311, %v515
        %517 = vmatprep.mubr.f32.mxu0 0.0
        %518 = vmatmul.mubr.f32.gmra.mrb[0].mxu0 %v373
        %v519 = vpop.f32.mrb[0].mxu0
        %v520 = vadd.f32 %v316, %v519
        %v521 = vpop.f32.mrb[0].mxu0
        %v522 = vadd.f32 %v316, %v521
        %523 = vmatprep.mubr.f32.mxu0 0.0
        %524 = vmatmul.mubr.f32.gmra.mrb[0].mxu0 %v376
        %v525 = vpop.f32.mrb[0].mxu0
        %v526 = vadd.f32 %v321, %v525
        %v527 = vpop.f32.mrb[0].mxu0
        %v528 = vadd.f32 %v321, %v527
        %529 = vmatprep.mubr.f32.mxu0 0.0
        %530 = vmatmul.mubr.f32.gmra.mrb[0].mxu0 %v379
        %v531 = vpop.f32.mrb[0].mxu0
        %v532 = vadd.f32 %v326, %v531
        %v533 = vpop.f32.mrb[0].mxu0
        %v534 = vadd.f32 %v326, %v533
        %535 = vmatprep.mubr.f32.mxu0 0.0
        %536 = vmatmul.mubr.f32.gmra.mrb[0].mxu0 %v382
        %v537 = vpop.f32.mrb[0].mxu0
        %v538 = vadd.f32 %v331, %v537
        %v539 = vpop.f32.mrb[0].mxu0
        %v540 = vadd.f32 %v331, %v539
        %541 = vmatprep.mubr.f32.mxu0 0.0
        %542 = vmatmul.mubr.f32.gmra.mrb[0].mxu0 %v385
        %v543 = vpop.f32.mrb[0].mxu0
        %v544 = vadd.f32 %v336, %v543
        %v545 = vpop.f32.mrb[0].mxu0
        %v546 = vadd.f32 %v336, %v545
        %547 = vdwg.mxu0
        %548 = vmatprep.subr.mxu0 %v241
        %549 = vmatpush1.msra.mxu0 %v240
        %550 = vmatprep.subr.mxu0 0.0
        %551 = vmatpush1.msra.mxu0 0.0
        %552 = vmatprep.subr.mxu0 0.0
        %553 = vmatpush1.msra.mxu0 0.0
        %554 = vmatprep.subr.mxu0 0.0
        %555 = vmatpush1.msra.mxu0 0.0
        %556 = vmatprep.subr.mxu0 0.0
        %557 = vmatpush1.msra.mxu0 0.0
        %558 = vmatprep.subr.mxu0 0.0
        %559 = vmatpush1.msra.mxu0 0.0
        %560 = vmatprep.subr.mxu0 0.0
        %561 = vmatpush1.msra.mxu0 0.0
        %562 = vmatprep.subr.mxu0 0.0
        %563 = vmatpush1.msra.mxu0 0.0
        %564 = vmatprep.subr.mxu0 0.0
        %565 = vmatpush1.msra.mxu0 0.0
        %566 = vmatprep.subr.mxu0 0.0
        %567 = vmatpush1.msra.mxu0 0.0
        %568 = vmatprep.subr.mxu0 0.0
        %569 = vmatpush1.msra.mxu0 0.0
        %570 = vmatprep.subr.mxu0 0.0
        %571 = vmatpush1.msra.mxu0 0.0
        %572 = vmatprep.subr.mxu0 0.0
        %573 = vmatpush1.msra.mxu0 0.0
        %574 = vmatprep.subr.mxu0 0.0
        %575 = vmatpush1.msra.mxu0 0.0
        %576 = vmatprep.subr.mxu0 0.0
        %577 = vmatpush1.msra.mxu0 0.0
        %578 = vmatprep.subr.mxu0 0.0
        %579 = vmatpush1.msra.mxu0 0.0
        %580 = vmatprep.subr.mxu0 0.0
        %581 = vmatpush1.msra.mxu0 0.0
        %582 = vmatprep.subr.mxu0 0.0
        %583 = vmatpush1.msra.mxu0 0.0
        %584 = vmatprep.subr.mxu0 0.0
        %585 = vmatpush1.msra.mxu0 0.0
        %586 = vmatprep.subr.mxu0 0.0
        %587 = vmatpush1.msra.mxu0 0.0
        %588 = vmatprep.subr.mxu0 0.0
        %589 = vmatpush1.msra.mxu0 0.0
        %590 = vmatprep.subr.mxu0 0.0
        %591 = vmatpush1.msra.mxu0 0.0
        %592 = vmatprep.subr.mxu0 0.0
        %593 = vmatpush1.msra.mxu0 0.0
        %594 = vmatprep.subr.mxu0 0.0
        %595 = vmatpush1.msra.mxu0 0.0
        %596 = vmatprep.subr.mxu0 0.0
        %597 = vmatpush1.msra.mxu0 0.0
        %598 = vmatprep.subr.mxu0 0.0
        %599 = vmatpush1.msra.mxu0 0.0
        %600 = vmatprep.subr.mxu0 0.0
        %601 = vmatpush1.msra.mxu0 0.0
        %602 = vmatprep.subr.mxu0 0.0
        %603 = vmatpush1.msra.mxu0 0.0
        %604 = vmatprep.subr.mxu0 0.0
        %605 = vmatpush1.msra.mxu0 0.0
        %606 = vmatprep.subr.mxu0 0.0
        %607 = vmatpush1.msra.mxu0 0.0
        %608 = vmatprep.subr.mxu0 0.0
        %609 = vmatpush1.msra.mxu0 0.0
        %610 = vmatprep.subr.mxu0 0.0
        %611 = vmatpush1.msra.mxu0 0.0
        %612 = vmatprep.mubr.f32.mxu0 0.0
        %613 = vmatmul.mubr.f32.gmra.mrb[0].mxu0 %v340
        %v614 = vpop.f32.mrb[0].mxu0
        %v615 = vadd.f32 %v261, %v614
        %v616 = vpop.f32.mrb[0].mxu0
        %v617 = vadd.f32 %v261, %v616
        %618 = vmatprep.mubr.f32.mxu0 0.0
        %619 = vmatmul.mubr.f32.gmra.mrb[0].mxu0 %v343
        %v620 = vpop.f32.mrb[0].mxu0
        %v621 = vadd.f32 %v266, %v620
        %v622 = vpop.f32.mrb[0].mxu0
        %v623 = vadd.f32 %v266, %v622
        %624 = vmatprep.mubr.f32.mxu0 0.0
        %625 = vmatmul.mubr.f32.gmra.mrb[0].mxu0 %v346
        %v626 = vpop.f32.mrb[0].mxu0
        %v627 = vadd.f32 %v271, %v626
        %v628 = vpop.f32.mrb[0].mxu0
        %v629 = vadd.f32 %v271, %v628
        %630 = vmatprep.mubr.f32.mxu0 0.0
        %631 = vmatmul.mubr.f32.gmra.mrb[0].mxu0 %v349
        %v632 = vpop.f32.mrb[0].mxu0
        %v633 = vadd.f32 %v276, %v632
        %v634 = vpop.f32.mrb[0].mxu0
        %v635 = vadd.f32 %v276, %v634
        %636 = vmatprep.mubr.f32.mxu0 0.0
        %637 = vmatmul.mubr.f32.gmra.mrb[0].mxu0 %v352
        %v638 = vpop.f32.mrb[0].mxu0
        %v639 = vadd.f32 %v281, %v638
        %v640 = vpop.f32.mrb[0].mxu0
        %v641 = vadd.f32 %v281, %v640
        %642 = vmatprep.mubr.f32.mxu0 0.0
        %643 = vmatmul.mubr.f32.gmra.mrb[0].mxu0 %v355
        %v644 = vpop.f32.mrb[0].mxu0
        %v645 = vadd.f32 %v286, %v644
        %v646 = vpop.f32.mrb[0].mxu0
        %v647 = vadd.f32 %v286, %v646
        %648 = vmatprep.mubr.f32.mxu0 0.0
        %649 = vmatmul.mubr.f32.gmra.mrb[0].mxu0 %v358
        %v650 = vpop.f32.mrb[0].mxu0
        %v651 = vadd.f32 %v291, %v650
        %v652 = vpop.f32.mrb[0].mxu0
        %v653 = vadd.f32 %v291, %v652
        %654 = vmatprep.mubr.f32.mxu0 0.0
        %655 = vmatmul.mubr.f32.gmra.mrb[0].mxu0 %v361
        %v656 = vpop.f32.mrb[0].mxu0
        %v657 = vadd.f32 %v296, %v656
        %v658 = vpop.f32.mrb[0].mxu0
        %v659 = vadd.f32 %v296, %v658
        %660 = vmatprep.mubr.f32.mxu0 0.0
        %661 = vmatmul.mubr.f32.gmra.mrb[0].mxu0 %v364
        %v662 = vpop.f32.mrb[0].mxu0
        %v663 = vadd.f32 %v301, %v662
        %v664 = vpop.f32.mrb[0].mxu0
        %v665 = vadd.f32 %v301, %v664
        %666 = vmatprep.mubr.f32.mxu0 0.0
        %667 = vmatmul.mubr.f32.gmra.mrb[0].mxu0 %v367
        %v668 = vpop.f32.mrb[0].mxu0
        %v669 = vadd.f32 %v306, %v668
        %v670 = vpop.f32.mrb[0].mxu0
        %v671 = vadd.f32 %v306, %v670
        %672 = vmatprep.mubr.f32.mxu0 0.0
        %673 = vmatmul.mubr.f32.gmra.mrb[0].mxu0 %v370
        %v674 = vpop.f32.mrb[0].mxu0
        %v675 = vadd.f32 %v311, %v674
        %v676 = vpop.f32.mrb[0].mxu0
        %v677 = vadd.f32 %v311, %v676
        %678 = vmatprep.mubr.f32.mxu0 0.0
        %679 = vmatmul.mubr.f32.gmra.mrb[0].mxu0 %v373
        %v680 = vpop.f32.mrb[0].mxu0
        %v681 = vadd.f32 %v316, %v680
        %v682 = vpop.f32.mrb[0].mxu0
        %v683 = vadd.f32 %v316, %v682
        %684 = vmatprep.mubr.f32.mxu0 0.0
        %685 = vmatmul.mubr.f32.gmra.mrb[0].mxu0 %v376
        %v686 = vpop.f32.mrb[0].mxu0
        %v687 = vadd.f32 %v321, %v686
        %v688 = vpop.f32.mrb[0].mxu0
        %v689 = vadd.f32 %v321, %v688
        %690 = vmatprep.mubr.f32.mxu0 0.0
        %691 = vmatmul.mubr.f32.gmra.mrb[0].mxu0 %v379
        %v692 = vpop.f32.mrb[0].mxu0
        %v693 = vadd.f32 %v326, %v692
        %v694 = vpop.f32.mrb[0].mxu0
        %v695 = vadd.f32 %v326, %v694
        %696 = vmatprep.mubr.f32.mxu0 0.0
        %697 = vmatmul.mubr.f32.gmra.mrb[0].mxu0 %v382
        %v698 = vpop.f32.mrb[0].mxu0
        %v699 = vadd.f32 %v331, %v698
        %v700 = vpop.f32.mrb[0].mxu0
        %v701 = vadd.f32 %v331, %v700
        %702 = vmatprep.mubr.f32.mxu0 0.0
        %703 = vmatmul.mubr.f32.gmra.mrb[0].mxu0 %v385
        %v704 = vpop.f32.mrb[0].mxu0
        %v705 = vadd.f32 %v336, %v704
        %v706 = vpop.f32.mrb[0].mxu0
        %v707 = vadd.f32 %v336, %v706
        %708 = vdwg.mxu0
        %v709 = vmul.f32 %v454, 0.5
        %v710 = vmul.f32 %v456, 0.5
        %v711 = vmul.f32 %v615, 0.5
        %v712 = vmul.f32 %v617, 0.5
        %v713 = vmul.f32 %v460, 0.5
        %v714 = vmul.f32 %v462, 0.5
        %v715 = vmul.f32 %v621, 0.5
        %v716 = vmul.f32 %v623, 0.5
        %v717 = vmul.f32 %v466, 0.5
        %v718 = vmul.f32 %v468, 0.5
        %v719 = vmul.f32 %v627, 0.5
        %v720 = vmul.f32 %v629, 0.5
        %v721 = vmul.f32 %v472, 0.5
        %v722 = vmul.f32 %v474, 0.5
        %v723 = vmul.f32 %v633, 0.5
        %v724 = vmul.f32 %v635, 0.5
        %v725 = vmul.f32 %v478, 0.5
        %v726 = vmul.f32 %v480, 0.5
        %v727 = vmul.f32 %v639, 0.5
        %v728 = vmul.f32 %v641, 0.5
        %v729 = vmul.f32 %v484, 0.5
        %v730 = vmul.f32 %v486, 0.5
        %v731 = vmul.f32 %v645, 0.5
        %v732 = vmul.f32 %v647, 0.5
        %v733 = vmul.f32 %v490, 0.5
        %v734 = vmul.f32 %v492, 0.5
        %v735 = vmul.f32 %v651, 0.5
        %v736 = vmul.f32 %v653, 0.5
        %v737 = vmul.f32 %v496, 0.5
        %v738 = vmul.f32 %v498, 0.5
        %v739 = vmul.f32 %v657, 0.5
        %v740 = vmul.f32 %v659, 0.5
        %v741 = vmul.f32 %v502, 0.5
        %v742 = vmul.f32 %v504, 0.5
        %v743 = vmul.f32 %v663, 0.5
        %v744 = vmul.f32 %v665, 0.5
        %v745 = vmul.f32 %v508, 0.5
        %v746 = vmul.f32 %v510, 0.5
        %v747 = vmul.f32 %v669, 0.5
        %v748 = vmul.f32 %v671, 0.5
        %v749 = vmul.f32 %v514, 0.5
        %v750 = vmul.f32 %v516, 0.5
        %v751 = vmul.f32 %v675, 0.5
        %v752 = vmul.f32 %v677, 0.5
        %v753 = vmul.f32 %v520, 0.5
        %v754 = vmul.f32 %v522, 0.5
        %v755 = vmul.f32 %v681, 0.5
        %v756 = vmul.f32 %v683, 0.5
        %v757 = vmul.f32 %v526, 0.5
        %v758 = vmul.f32 %v528, 0.5
        %v759 = vmul.f32 %v687, 0.5
        %v760 = vmul.f32 %v689, 0.5
        %v761 = vmul.f32 %v532, 0.5
        %v762 = vmul.f32 %v534, 0.5
        %v763 = vmul.f32 %v693, 0.5
        %v764 = vmul.f32 %v695, 0.5
        %v765 = vmul.f32 %v538, 0.5
        %v766 = vmul.f32 %v540, 0.5
        %v767 = vmul.f32 %v699, 0.5
        %v768 = vmul.f32 %v701, 0.5
        %v769 = vmul.f32 %v544, 0.5
        %v770 = vmul.f32 %v546, 0.5
        %v771 = vmul.f32 %v705, 0.5
        %v772 = vmul.f32 %v707, 0.5
        %v773 = vmul.f32 %v454, 0.70710677
        %v774 = vmul.f32 %v456, 0.70710677
        %v775 = vmul.f32 %v615, 0.70710677
        %v776 = vmul.f32 %v617, 0.70710677
        %v777 = vmul.f32 %v460, 0.70710677
        %v778 = vmul.f32 %v462, 0.70710677
        %v779 = vmul.f32 %v621, 0.70710677
        %v780 = vmul.f32 %v623, 0.70710677
        %v781 = vmul.f32 %v466, 0.70710677
        %v782 = vmul.f32 %v468, 0.70710677
        %v783 = vmul.f32 %v627, 0.70710677
        %v784 = vmul.f32 %v629, 0.70710677
        %v785 = vmul.f32 %v472, 0.70710677
        %v786 = vmul.f32 %v474, 0.70710677
        %v787 = vmul.f32 %v633, 0.70710677
        %v788 = vmul.f32 %v635, 0.70710677
        %v789 = vmul.f32 %v478, 0.70710677
        %v790 = vmul.f32 %v480, 0.70710677
        %v791 = vmul.f32 %v639, 0.70710677
        %v792 = vmul.f32 %v641, 0.70710677
        %v793 = vmul.f32 %v484, 0.70710677
        %v794 = vmul.f32 %v486, 0.70710677
        %v795 = vmul.f32 %v645, 0.70710677
        %v796 = vmul.f32 %v647, 0.70710677
        %v797 = vmul.f32 %v490, 0.70710677
        %v798 = vmul.f32 %v492, 0.70710677
        %v799 = vmul.f32 %v651, 0.70710677
        %v800 = vmul.f32 %v653, 0.70710677
        %v801 = vmul.f32 %v496, 0.70710677
        %v802 = vmul.f32 %v498, 0.70710677
        %v803 = vmul.f32 %v657, 0.70710677
        %v804 = vmul.f32 %v659, 0.70710677
        %v805 = vmul.f32 %v502, 0.70710677
        %v806 = vmul.f32 %v504, 0.70710677
        %v807 = vmul.f32 %v663, 0.70710677
        %v808 = vmul.f32 %v665, 0.70710677
        %v809 = vmul.f32 %v508, 0.70710677
        %v810 = vmul.f32 %v510, 0.70710677
        %v811 = vmul.f32 %v669, 0.70710677
        %v812 = vmul.f32 %v671, 0.70710677
        %v813 = vmul.f32 %v514, 0.70710677
        %v814 = vmul.f32 %v516, 0.70710677
        %v815 = vmul.f32 %v675, 0.70710677
        %v816 = vmul.f32 %v677, 0.70710677
        %v817 = vmul.f32 %v520, 0.70710677
        %v818 = vmul.f32 %v522, 0.70710677
        %v819 = vmul.f32 %v681, 0.70710677
        %v820 = vmul.f32 %v683, 0.70710677
        %v821 = vmul.f32 %v526, 0.70710677
        %v822 = vmul.f32 %v528, 0.70710677
        %v823 = vmul.f32 %v687, 0.70710677
        %v824 = vmul.f32 %v689, 0.70710677
        %v825 = vmul.f32 %v532, 0.70710677
        %v826 = vmul.f32 %v534, 0.70710677
        %v827 = vmul.f32 %v693, 0.70710677
        %v828 = vmul.f32 %v695, 0.70710677
        %v829 = vmul.f32 %v538, 0.70710677
        %v830 = vmul.f32 %v540, 0.70710677
        %v831 = vmul.f32 %v699, 0.70710677
        %v832 = vmul.f32 %v701, 0.70710677
        %v833 = vmul.f32 %v544, 0.70710677
        %v834 = vmul.f32 %v546, 0.70710677
        %v835 = vmul.f32 %v705, 0.70710677
        %v836 = vmul.f32 %v707, 0.70710677
        %v837 = verf.f32.pop %v773
        %v838 = verf.f32.pop %v774
        %v839 = verf.f32.pop %v775
        %v840 = verf.f32.pop %v776
        %v841 = verf.f32.pop %v777
        %v842 = verf.f32.pop %v778
        %v843 = verf.f32.pop %v779
        %v844 = verf.f32.pop %v780
        %v845 = verf.f32.pop %v781
        %v846 = verf.f32.pop %v782
        %v847 = verf.f32.pop %v783
        %v848 = verf.f32.pop %v784
        %v849 = verf.f32.pop %v785
        %v850 = verf.f32.pop %v786
        %v851 = verf.f32.pop %v787
        %v852 = verf.f32.pop %v788
        %v853 = verf.f32.pop %v789
        %v854 = verf.f32.pop %v790
        %v855 = verf.f32.pop %v791
        %v856 = verf.f32.pop %v792
        %v857 = verf.f32.pop %v793
        %v858 = verf.f32.pop %v794
        %v859 = verf.f32.pop %v795
        %v860 = verf.f32.pop %v796
        %v861 = verf.f32.pop %v797
        %v862 = verf.f32.pop %v798
        %v863 = verf.f32.pop %v799
        %v864 = verf.f32.pop %v800
        %v865 = verf.f32.pop %v801
        %v866 = verf.f32.pop %v802
        %v867 = verf.f32.pop %v803
        %v868 = verf.f32.pop %v804
        %v869 = verf.f32.pop %v805
        %v870 = verf.f32.pop %v806
        %v871 = verf.f32.pop %v807
        %v872 = verf.f32.pop %v808
        %v873 = verf.f32.pop %v809
        %v874 = verf.f32.pop %v810
        %v875 = verf.f32.pop %v811
        %v876 = verf.f32.pop %v812
        %v877 = verf.f32.pop %v813
        %v878 = verf.f32.pop %v814
        %v879 = verf.f32.pop %v815
        %v880 = verf.f32.pop %v816
        %v881 = verf.f32.pop %v817
        %v882 = verf.f32.pop %v818
        %v883 = verf.f32.pop %v819
        %v884 = verf.f32.pop %v820
        %v885 = verf.f32.pop %v821
        %v886 = verf.f32.pop %v822
        %v887 = verf.f32.pop %v823
        %v888 = verf.f32.pop %v824
        %v889 = verf.f32.pop %v825
        %v890 = verf.f32.pop %v826
        %v891 = verf.f32.pop %v827
        %v892 = verf.f32.pop %v828
        %v893 = verf.f32.pop %v829
        %v894 = verf.f32.pop %v830
        %v895 = verf.f32.pop %v831
        %v896 = verf.f32.pop %v832
        %v897 = verf.f32.pop %v833
        %v898 = verf.f32.pop %v834
        %v899 = verf.f32.pop %v835
        %v900 = verf.f32.pop %v836
        %v901 = vadd.f32 %v837, 1.0
        %v902 = vadd.f32 %v838, 1.0
        %v903 = vadd.f32 %v839, 1.0
        %v904 = vadd.f32 %v840, 1.0
        %v905 = vadd.f32 %v841, 1.0
        %v906 = vadd.f32 %v842, 1.0
        %v907 = vadd.f32 %v843, 1.0
        %v908 = vadd.f32 %v844, 1.0
        %v909 = vadd.f32 %v845, 1.0
        %v910 = vadd.f32 %v846, 1.0
        %v911 = vadd.f32 %v847, 1.0
        %v912 = vadd.f32 %v848, 1.0
        %v913 = vadd.f32 %v849, 1.0
        %v914 = vadd.f32 %v850, 1.0
        %v915 = vadd.f32 %v851, 1.0
        %v916 = vadd.f32 %v852, 1.0
        %v917 = vadd.f32 %v853, 1.0
        %v918 = vadd.f32 %v854, 1.0
        %v919 = vadd.f32 %v855, 1.0
        %v920 = vadd.f32 %v856, 1.0
        %v921 = vadd.f32 %v857, 1.0
        %v922 = vadd.f32 %v858, 1.0
        %v923 = vadd.f32 %v859, 1.0
        %v924 = vadd.f32 %v860, 1.0
        %v925 = vadd.f32 %v861, 1.0
        %v926 = vadd.f32 %v862, 1.0
        %v927 = vadd.f32 %v863, 1.0
        %v928 = vadd.f32 %v864, 1.0
        %v929 = vadd.f32 %v865, 1.0
        %v930 = vadd.f32 %v866, 1.0
        %v931 = vadd.f32 %v867, 1.0
        %v932 = vadd.f32 %v868, 1.0
        %v933 = vadd.f32 %v869, 1.0
        %v934 = vadd.f32 %v870, 1.0
        %v935 = vadd.f32 %v871, 1.0
        %v936 = vadd.f32 %v872, 1.0
        %v937 = vadd.f32 %v873, 1.0
        %v938 = vadd.f32 %v874, 1.0
        %v939 = vadd.f32 %v875, 1.0
        %v940 = vadd.f32 %v876, 1.0
        %v941 = vadd.f32 %v877, 1.0
        %v942 = vadd.f32 %v878, 1.0
        %v943 = vadd.f32 %v879, 1.0
        %v944 = vadd.f32 %v880, 1.0
        %v945 = vadd.f32 %v881, 1.0
        %v946 = vadd.f32 %v882, 1.0
        %v947 = vadd.f32 %v883, 1.0
        %v948 = vadd.f32 %v884, 1.0
        %v949 = vadd.f32 %v885, 1.0
        %v950 = vadd.f32 %v886, 1.0
        %v951 = vadd.f32 %v887, 1.0
        %v952 = vadd.f32 %v888, 1.0
        %v953 = vadd.f32 %v889, 1.0
        %v954 = vadd.f32 %v890, 1.0
        %v955 = vadd.f32 %v891, 1.0
        %v956 = vadd.f32 %v892, 1.0
        %v957 = vadd.f32 %v893, 1.0
        %v958 = vadd.f32 %v894, 1.0
        %v959 = vadd.f32 %v895, 1.0
        %v960 = vadd.f32 %v896, 1.0
        %v961 = vadd.f32 %v897, 1.0
        %v962 = vadd.f32 %v898, 1.0
        %v963 = vadd.f32 %v899, 1.0
        %v964 = vadd.f32 %v900, 1.0
        %v965 = vmul.f32 %v709, %v901
        %v966 = vmul.f32 %v710, %v902
        %v967 = vmul.f32 %v711, %v903
        %v968 = vmul.f32 %v712, %v904
        %v969 = vmul.f32 %v713, %v905
        %v970 = vmul.f32 %v714, %v906
        %v971 = vmul.f32 %v715, %v907
        %v972 = vmul.f32 %v716, %v908
        %v973 = vmul.f32 %v717, %v909
        %v974 = vmul.f32 %v718, %v910
        %v975 = vmul.f32 %v719, %v911
        %v976 = vmul.f32 %v720, %v912
        %v977 = vmul.f32 %v721, %v913
        %v978 = vmul.f32 %v722, %v914
        %v979 = vmul.f32 %v723, %v915
        %v980 = vmul.f32 %v724, %v916
        %v981 = vmul.f32 %v725, %v917
        %v982 = vmul.f32 %v726, %v918
        %v983 = vmul.f32 %v727, %v919
        %v984 = vmul.f32 %v728, %v920
        %v985 = vmul.f32 %v729, %v921
        %v986 = vmul.f32 %v730, %v922
        %v987 = vmul.f32 %v731, %v923
        %v988 = vmul.f32 %v732, %v924
        %v989 = vmul.f32 %v733, %v925
        %v990 = vmul.f32 %v734, %v926
        %v991 = vmul.f32 %v735, %v927
        %v992 = vmul.f32 %v736, %v928
        %v993 = vmul.f32 %v737, %v929
        %v994 = vmul.f32 %v738, %v930
        %v995 = vmul.f32 %v739, %v931
        %v996 = vmul.f32 %v740, %v932
        %v997 = vmul.f32 %v741, %v933
        %v998 = vmul.f32 %v742, %v934
        %v999 = vmul.f32 %v743, %v935
        %v1000 = vmul.f32 %v744, %v936
        %v1001 = vmul.f32 %v745, %v937
        %v1002 = vmul.f32 %v746, %v938
        %v1003 = vmul.f32 %v747, %v939
        %v1004 = vmul.f32 %v748, %v940
        %v1005 = vmul.f32 %v749, %v941
        %v1006 = vmul.f32 %v750, %v942
        %v1007 = vmul.f32 %v751, %v943
        %v1008 = vmul.f32 %v752, %v944
        %v1009 = vmul.f32 %v753, %v945
        %v1010 = vmul.f32 %v754, %v946
        %v1011 = vmul.f32 %v755, %v947
        %v1012 = vmul.f32 %v756, %v948
        %v1013 = vmul.f32 %v757, %v949
        %v1014 = vmul.f32 %v758, %v950
        %v1015 = vmul.f32 %v759, %v951
        %v1016 = vmul.f32 %v760, %v952
        %v1017 = vmul.f32 %v761, %v953
        %v1018 = vmul.f32 %v762, %v954
        %v1019 = vmul.f32 %v763, %v955
        %v1020 = vmul.f32 %v764, %v956
        %v1021 = vmul.f32 %v765, %v957
        %v1022 = vmul.f32 %v766, %v958
        %v1023 = vmul.f32 %v767, %v959
        %v1024 = vmul.f32 %v768, %v960
        %v1025 = vmul.f32 %v769, %v961
        %v1026 = vmul.f32 %v770, %v962
        %v1027 = vmul.f32 %v771, %v963
        %v1028 = vmul.f32 %v772, %v964
        %v1029 = vld [vmem:[%s3] sm:$0xff]
        %v1030 = vld [vmem:[%s3 + $0x8] sm:$0xff]
        %v1031 = vld [vmem:[%s3 + $0x10] sm:$0x3]
        %v1032 = vld [vmem:[%s4] sm:$0xff]
        %v1033 = vld [vmem:[%s4 + $0x8] sm:$0xff]
        %v1034 = vld [vmem:[%s4 + $0x10] sm:$0x3]
        %1036 = vset.pattern.permute.xlu0 0
        %1037 = vperm.xlu0 %1036, %v1032
        %v1038 = vpop.permute.xlu0 %1037
        %1041 = vset.pattern.permute.xlu0 0
        %1042 = vperm.xlu0 %1041, %v1033
        %v1043 = vpop.permute.xlu0 %1042
        %1046 = vset.pattern.permute.xlu0 0
        %1047 = vperm.xlu0 %1046, %v1034
        %v1048 = vpop.permute.xlu0 %1047
        %1050 = vmatprep.subr.mxu0 %v966
        %1051 = vmatpush1.msra.mxu0 %v965
        %1052 = vmatprep.subr.mxu0 %v970
        %1053 = vmatpush1.msra.mxu0 %v969
        %1054 = vmatprep.subr.mxu0 %v974
        %1055 = vmatpush1.msra.mxu0 %v973
        %1056 = vmatprep.subr.mxu0 %v978
        %1057 = vmatpush1.msra.mxu0 %v977
        %1058 = vmatprep.subr.mxu0 %v982
        %1059 = vmatpush1.msra.mxu0 %v981
        %1060 = vmatprep.subr.mxu0 %v986
        %1061 = vmatpush1.msra.mxu0 %v985
        %1062 = vmatprep.subr.mxu0 %v990
        %1063 = vmatpush1.msra.mxu0 %v989
        %1064 = vmatprep.subr.mxu0 %v994
        %1065 = vmatpush1.msra.mxu0 %v993
        %1066 = vmatprep.subr.mxu0 %v998
        %1067 = vmatpush1.msra.mxu0 %v997
        %1068 = vmatprep.subr.mxu0 %v1002
        %1069 = vmatpush1.msra.mxu0 %v1001
        %1070 = vmatprep.subr.mxu0 %v1006
        %1071 = vmatpush1.msra.mxu0 %v1005
        %1072 = vmatprep.subr.mxu0 %v1010
        %1073 = vmatpush1.msra.mxu0 %v1009
        %1074 = vmatprep.subr.mxu0 %v1014
        %1075 = vmatpush1.msra.mxu0 %v1013
        %1076 = vmatprep.subr.mxu0 %v1018
        %1077 = vmatpush1.msra.mxu0 %v1017
        %1078 = vmatprep.subr.mxu0 %v1022
        %1079 = vmatpush1.msra.mxu0 %v1021
        %1080 = vmatprep.subr.mxu0 %v1026
        %1081 = vmatpush1.msra.mxu0 %v1025
        %1082 = vmatprep.subr.mxu0 0.0
        %1083 = vmatpush1.msra.mxu0 0.0
        %1084 = vmatprep.subr.mxu0 0.0
        %1085 = vmatpush1.msra.mxu0 0.0
        %1086 = vmatprep.subr.mxu0 0.0
        %1087 = vmatpush1.msra.mxu0 0.0
        %1088 = vmatprep.subr.mxu0 0.0
        %1089 = vmatpush1.msra.mxu0 0.0
        %1090 = vmatprep.subr.mxu0 0.0
        %1091 = vmatpush1.msra.mxu0 0.0
        %1092 = vmatprep.subr.mxu0 0.0
        %1093 = vmatpush1.msra.mxu0 0.0
        %1094 = vmatprep.subr.mxu0 0.0
        %1095 = vmatpush1.msra.mxu0 0.0
        %1096 = vmatprep.subr.mxu0 0.0
        %1097 = vmatpush1.msra.mxu0 0.0
        %1098 = vmatprep.subr.mxu0 0.0
        %1099 = vmatpush1.msra.mxu0 0.0
        %1100 = vmatprep.subr.mxu0 0.0
        %1101 = vmatpush1.msra.mxu0 0.0
        %1102 = vmatprep.subr.mxu0 0.0
        %1103 = vmatpush1.msra.mxu0 0.0
        %1104 = vmatprep.subr.mxu0 0.0
        %1105 = vmatpush1.msra.mxu0 0.0
        %1106 = vmatprep.subr.mxu0 0.0
        %1107 = vmatpush1.msra.mxu0 0.0
        %1108 = vmatprep.subr.mxu0 0.0
        %1109 = vmatpush1.msra.mxu0 0.0
        %1110 = vmatprep.subr.mxu0 0.0
        %1111 = vmatpush1.msra.mxu0 0.0
        %1112 = vmatprep.subr.mxu0 0.0
        %1113 = vmatpush1.msra.mxu0 0.0
        %1114 = vmatprep.mubr.f32.mxu0 0.0
        %1115 = vmatmul.mubr.f32.gmra.mrb[0].mxu0 %v1029
        %v1116 = vpop.f32.mrb[0].mxu0
        %v1117 = vadd.f32 %v1038, %v1116
        %v1118 = vpop.f32.mrb[0].mxu0
        %v1119 = vadd.f32 %v1038, %v1118
        %1120 = vmatprep.mubr.f32.mxu0 0.0
        %1121 = vmatmul.mubr.f32.gmra.mrb[0].mxu0 %v1030
        %v1122 = vpop.f32.mrb[0].mxu0
        %v1123 = vadd.f32 %v1043, %v1122
        %v1124 = vpop.f32.mrb[0].mxu0
        %v1125 = vadd.f32 %v1043, %v1124
        %1126 = vmatprep.mubr.f32.mxu0 0.0
        %1127 = vmatmul.mubr.f32.gmra.mrb[0].mxu0 %v1031
        %v1128 = vpop.f32.mrb[0].mxu0
        %v1129 = vadd.f32 %v1048, %v1128
        %v1130 = vpop.f32.mrb[0].mxu0
        %v1131 = vadd.f32 %v1048, %v1130
        %1132 = vdwg.mxu0
        %1133 = vmatprep.subr.mxu0 %v968
        %1134 = vmatpush1.msra.mxu0 %v967
        %1135 = vmatprep.subr.mxu0 %v972
        %1136 = vmatpush1.msra.mxu0 %v971
        %1137 = vmatprep.subr.mxu0 %v976
        %1138 = vmatpush1.msra.mxu0 %v975
        %1139 = vmatprep.subr.mxu0 %v980
        %1140 = vmatpush1.msra.mxu0 %v979
        %1141 = vmatprep.subr.mxu0 %v984
        %1142 = vmatpush1.msra.mxu0 %v983
        %1143 = vmatprep.subr.mxu0 %v988
        %1144 = vmatpush1.msra.mxu0 %v987
        %1145 = vmatprep.subr.mxu0 %v992
        %1146 = vmatpush1.msra.mxu0 %v991
        %1147 = vmatprep.subr.mxu0 %v996
        %1148 = vmatpush1.msra.mxu0 %v995
        %1149 = vmatprep.subr.mxu0 %v1000
        %1150 = vmatpush1.msra.mxu0 %v999
        %1151 = vmatprep.subr.mxu0 %v1004
        %1152 = vmatpush1.msra.mxu0 %v1003
        %1153 = vmatprep.subr.mxu0 %v1008
        %1154 = vmatpush1.msra.mxu0 %v1007
        %1155 = vmatprep.subr.mxu0 %v1012
        %1156 = vmatpush1.msra.mxu0 %v1011
        %1157 = vmatprep.subr.mxu0 %v1016
        %1158 = vmatpush1.msra.mxu0 %v1015
        %1159 = vmatprep.subr.mxu0 %v1020
        %1160 = vmatpush1.msra.mxu0 %v1019
        %1161 = vmatprep.subr.mxu0 %v1024
        %1162 = vmatpush1.msra.mxu0 %v1023
        %1163 = vmatprep.subr.mxu0 %v1028
        %1164 = vmatpush1.msra.mxu0 %v1027
        %1165 = vmatprep.subr.mxu0 0.0
        %1166 = vmatpush1.msra.mxu0 0.0
        %1167 = vmatprep.subr.mxu0 0.0
        %1168 = vmatpush1.msra.mxu0 0.0
        %1169 = vmatprep.subr.mxu0 0.0
        %1170 = vmatpush1.msra.mxu0 0.0
        %1171 = vmatprep.subr.mxu0 0.0
        %1172 = vmatpush1.msra.mxu0 0.0
        %1173 = vmatprep.subr.mxu0 0.0
        %1174 = vmatpush1.msra.mxu0 0.0
        %1175 = vmatprep.subr.mxu0 0.0
        %1176 = vmatpush1.msra.mxu0 0.0
        %1177 = vmatprep.subr.mxu0 0.0
        %1178 = vmatpush1.msra.mxu0 0.0
        %1179 = vmatprep.subr.mxu0 0.0
        %1180 = vmatpush1.msra.mxu0 0.0
        %1181 = vmatprep.subr.mxu0 0.0
        %1182 = vmatpush1.msra.mxu0 0.0
        %1183 = vmatprep.subr.mxu0 0.0
        %1184 = vmatpush1.msra.mxu0 0.0
        %1185 = vmatprep.subr.mxu0 0.0
        %1186 = vmatpush1.msra.mxu0 0.0
        %1187 = vmatprep.subr.mxu0 0.0
        %1188 = vmatpush1.msra.mxu0 0.0
        %1189 = vmatprep.subr.mxu0 0.0
        %1190 = vmatpush1.msra.mxu0 0.0
        %1191 = vmatprep.subr.mxu0 0.0
        %1192 = vmatpush1.msra.mxu0 0.0
        %1193 = vmatprep.subr.mxu0 0.0
        %1194 = vmatpush1.msra.mxu0 0.0
        %1195 = vmatprep.subr.mxu0 0.0
        %1196 = vmatpush1.msra.mxu0 0.0
        %1197 = vmatprep.mubr.f32.mxu0 0.0
        %1198 = vmatmul.mubr.f32.gmra.mrb[0].mxu0 %v1029
        %v1199 = vpop.f32.mrb[0].mxu0
        %v1200 = vadd.f32 %v1038, %v1199
        %v1201 = vpop.f32.mrb[0].mxu0
        %v1202 = vadd.f32 %v1038, %v1201
        %1203 = vmatprep.mubr.f32.mxu0 0.0
        %1204 = vmatmul.mubr.f32.gmra.mrb[0].mxu0 %v1030
        %v1205 = vpop.f32.mrb[0].mxu0
        %v1206 = vadd.f32 %v1043, %v1205
        %v1207 = vpop.f32.mrb[0].mxu0
        %v1208 = vadd.f32 %v1043, %v1207
        %1209 = vmatprep.mubr.f32.mxu0 0.0
        %1210 = vmatmul.mubr.f32.gmra.mrb[0].mxu0 %v1031
        %v1211 = vpop.f32.mrb[0].mxu0
        %v1212 = vadd.f32 %v1048, %v1211
        %v1213 = vpop.f32.mrb[0].mxu0
        %v1214 = vadd.f32 %v1048, %v1213
        %1215 = vdwg.mxu0
        %1216 = vst [vmem:[%s214] sm:$0xff] %v1117
        %1217 = vst [vmem:[%s214 + $0x8] sm:$0xff] %v1119
        %1218 = vst [vmem:[%s214 + $0x10] sm:$0xff] %v1200
        %1219 = vst [vmem:[%s214 + $0x18] sm:$0xff] %v1202
        %1220 = vst [vmem:[%s214 + $0x20] sm:$0xff] %v1123
        %1221 = vst [vmem:[%s214 + $0x28] sm:$0xff] %v1125
        %1222 = vst [vmem:[%s214 + $0x30] sm:$0xff] %v1206
        %1223 = vst [vmem:[%s214 + $0x38] sm:$0xff] %v1208
        %1224 = vst [vmem:[%s214 + $0x40] sm:$0x3] %v1129
        %1225 = vst [vmem:[%s214 + $0x48] sm:$0x3] %v1131
        %1226 = vst [vmem:[%s214 + $0x50] sm:$0x3] %v1212
        %1227 = vst [vmem:[%s214 + $0x58] sm:$0x3] %v1214
        %s1228 = sand.u32 %s134, 1
        %s1229 = sand.u32 %s134, 1
        %s1230 = smul.addr %s1229, 96
        %s1231 = scalar_lea.vmem [#allocation2], %s1230
        // Predicated region
        $region41: #{fno3d_forward.19} parent=39 // pred_check
          %p1232 = pneg %p144
        $region42: #{fno3d_forward.19} parent=39 // pred_check_branch
          %1234 = sbr.rel (%p1232) target = $region44
        $region43: #{fno3d_forward.19} parent=39 // pred_region
          %s1235 = smul.u32 4, %s16
          %s1236 = smul.addr %s1235, 8
          %s1237 = scalar_lea.vmem %s5, %s1236
          // Predicated region
          $region45: #{fno3d_forward.19} parent=43 // pred_check
            _
          $region46: #{fno3d_forward.19} parent=43 // pred_check_branch
            %1239 = sbr.rel (0) target = $region48
          $region47: #{fno3d_forward.19} parent=43 // pred_region
            // Predicated region
            $region49: #{fno3d_forward.19} parent=47 // pred_check
              _
            $region50: #{fno3d_forward.19} parent=47 // pred_check_branch
              %1241 = sbr.rel (0) target = $region52
            $region51: #{fno3d_forward.19} parent=47 // pred_region
              loop: start=0, step=1, limit=1
              $region53: #{fno3d_forward.19} parent=51 // loop_pre_header
                _
              $region54: #{fno3d_forward.19} parent=51 // loop_header
                %s1243 = sphi 0, %s1247
                %p1244 = scmp.ge.s32.totalorder %s1243, 1
                %s1248 = sphi %s1231, %s1231
                %s1249 = sphi %s1237, %s1237
              $region55: #{fno3d_forward.19} parent=51 // loop_header_branch
                %1246 = sbr.rel (%p1244) target = $region59
              $region56: #{fno3d_forward.19} parent=51 // loop_body
                %v1250 = vld [vmem:[%s1248] sm:$0xff]
                %1251 = vst [vmem:[%s1249] sm:$0xff] %v1250
                %v1252 = vld [vmem:[%s1248 + $0x8] sm:$0xff]
                %1253 = vst [vmem:[%s1249 + $0x8] sm:$0xff] %v1252
                %v1254 = vld [vmem:[%s1248 + $0x10] sm:$0xff]
                %1255 = vst [vmem:[%s1249 + $0x10] sm:$0xff] %v1254
                %v1256 = vld [vmem:[%s1248 + $0x18] sm:$0xff]
                %1257 = vst [vmem:[%s1249 + $0x18] sm:$0xff] %v1256
                %v1258 = vld [vmem:[%s1248 + $0x20] sm:$0xff]
                %1259 = vst [vmem:[%s1249 + $0x40] sm:$0xff] %v1258
                %v1260 = vld [vmem:[%s1248 + $0x28] sm:$0xff]
                %1261 = vst [vmem:[%s1249 + $0x48] sm:$0xff] %v1260
                %v1262 = vld [vmem:[%s1248 + $0x30] sm:$0xff]
                %1263 = vst [vmem:[%s1249 + $0x50] sm:$0xff] %v1262
                %v1264 = vld [vmem:[%s1248 + $0x38] sm:$0xff]
                %1265 = vst [vmem:[%s1249 + $0x58] sm:$0xff] %v1264
                %v1266 = vld [vmem:[%s1248 + $0x40] sm:$0xff]
                %1267 = vst [vmem:[%s1249 + $0x80] sm:$0xff] %v1266
                %v1268 = vld [vmem:[%s1248 + $0x48] sm:$0xff]
                %1269 = vst [vmem:[%s1249 + $0x88] sm:$0xff] %v1268
                %v1270 = vld [vmem:[%s1248 + $0x50] sm:$0xff]
                %1271 = vst [vmem:[%s1249 + $0x90] sm:$0xff] %v1270
                %v1272 = vld [vmem:[%s1248 + $0x58] sm:$0xff]
                %1273 = vst [vmem:[%s1249 + $0x98] sm:$0xff] %v1272
              $region57: #{fno3d_forward.19} parent=51 // loop_footer
                %s1247 = sadd.s32 1, %s1243
              $region58: #{fno3d_forward.19} parent=51 // loop_footer_branch
                %1242 = sbr.rel target = $region54
              $region59: #{fno3d_forward.19} parent=51 // loop_exit
                _
            $region52: #{fno3d_forward.19} parent=47 // pred_fallthru
              _
            // Predicated region
            $region60: #{fno3d_forward.19} parent=47 // pred_check
              _
            $region61: #{fno3d_forward.19} parent=47 // pred_check_branch
              %1275 = sbr.rel target = $region63
            $region62: #{fno3d_forward.19} parent=47 // pred_region
              _
            $region63: #{fno3d_forward.19} parent=47 // pred_fallthru
              _
          $region48: #{fno3d_forward.19} parent=43 // pred_fallthru
            _
          %1276 = vnop
        $region44: #{fno3d_forward.19} parent=39 // pred_fallthru
          _
      $region40: #{fno3d_forward.19} parent=5 // pred_fallthru
        _
      %p1277 = scmp.le.s32.totalorder 2, %s11
      // Predicated region
      $region64: #{fno3d_forward.19} parent=5 // pred_check
        %p1278 = pneg %p1277
      $region65: #{fno3d_forward.19} parent=5 // pred_check_branch
        %1280 = sbr.rel (%p1278) target = $region67
      $region66: #{fno3d_forward.19} parent=5 // pred_region
        %s1281 = ssub.s32 %s11, 2
        // Predicated region
        $region68: #{fno3d_forward.19} parent=66 // pred_check
          %p1282 = pneg %p150
        $region69: #{fno3d_forward.19} parent=66 // pred_check_branch
          %1284 = sbr.rel (%p1282) target = $region71
        $region70: #{fno3d_forward.19} parent=66 // pred_region
          %s1285 = sand.u32 %s135, 1
          %s1286 = sand.u32 %s135, 1
          %s1287 = smul.addr %s1286, 96
          %s1288 = scalar_lea.vmem [#allocation2], %s1287
        $region71: #{fno3d_forward.19} parent=66 // pred_fallthru
          _
      $region67: #{fno3d_forward.19} parent=5 // pred_fallthru
        _
    $region6: #{fno3d_forward.19} parent=1 // loop_footer
      %s15 = sadd.s32 1, %s11
    $region7: #{fno3d_forward.19} parent=1 // loop_footer_branch
      %10 = sbr.rel target = $region3
    $region8: #{fno3d_forward.19} parent=1 // loop_exit
      _

</llo_original>
